<compile_context>
chip_gen: v7x
topology: tpu7x:2x2x1
jax: 0.10.0
libtpu: 0.0.40
codegen_flags: <defaults>
</compile_context>

<pallas_src>
import math

import jax
import jax.numpy as jnp
import numpy as np
from jax import lax
from jax.experimental import pallas as pl
from jax.experimental.pallas import tpu as pltpu


def _layernorm(v, g, b, eps=1e-5):
    mu = jnp.mean(v, axis=-1, keepdims=True)
    var = jnp.mean((v - mu) ** 2, axis=-1, keepdims=True)
    return (v - mu) * lax.rsqrt(var + eps) * g + b


def make_mla_kernel(BB, S, D, H, dh, nope, half):
    dn = (((1,), (1,)), ((), ()))  # contract last dim of both operands (q @ k.T)

    def kernel(x_ref, wdq_ref, qg_ref, qb_ref, wuqn_ref, wuq1_ref, wuq2_ref,
               wdkvl_ref, kvg_ref, kvb_ref, wdkv1_ref, wdkv2_ref,
               wukvk_ref, wukvv_ref, wot_ref, cosk_ref, sink_ref, out_ref):
        f32 = jnp.float32
        bf16 = jnp.bfloat16
        x = x_ref[0]                                                # (BS, D) bf16

        # ---- Q path: down-proj -> LN -> pre-split (and pre-scaled) up-proj ----
        cq = jnp.dot(x, wdq_ref[...], preferred_element_type=f32)
        cq = _layernorm(cq, qg_ref[...], qb_ref[...]).astype(bf16)
        qn_all = jnp.dot(cq, wuqn_ref[...], preferred_element_type=f32)  # (BS, H*nope)
        q1_all = jnp.dot(cq, wuq1_ref[...], preferred_element_type=f32)  # (BS, H*half)
        q2_all = jnp.dot(cq, wuq2_ref[...], preferred_element_type=f32)  # (BS, H*half)

        # ---- KV path: down-proj -> LN -> pre-split up-proj; rope keys direct ----
        ckv = jnp.dot(x, wdkvl_ref[...], preferred_element_type=f32)     # (BS, kvp)
        ckv = _layernorm(ckv, kvg_ref[...], kvb_ref[...]).astype(bf16)
        kn_all = jnp.dot(ckv, wukvk_ref[...], preferred_element_type=f32)  # (BS, H*nope)
        v_all = jnp.dot(ckv, wukvv_ref[...], preferred_element_type=f32).astype(bf16)
        kr1 = jnp.dot(x, wdkv1_ref[...], preferred_element_type=f32)       # (BS, half)
        kr2 = jnp.dot(x, wdkv2_ref[...], preferred_element_type=f32)       # (BS, half)

        # ---- K RoPE (shared across heads), split-half form, no rotate_half ----
        ck_, sk_ = cosk_ref[...], sink_ref[...]                     # (BS, half) f32
        k1r = kr1 * ck_ - kr2 * sk_
        k2r = kr2 * ck_ + kr1 * sk_

        # ---- Causal mask (past_length = 0), hoisted, finite sentinel ----
        row = lax.broadcasted_iota(jnp.int32, (S, S), 0)
        col = lax.broadcasted_iota(jnp.int32, (S, S), 1)
        causal = row >= col
        neg = jnp.float32(-1e30)
        inv_s = jnp.float32(1.0 / S)

        # Pooled per-(b, h) head outputs; the output projection runs ONCE below.
        head_out = [[None] * H for _ in range(BB)]
        for h in range(H):
            # Per-head Q RoPE using the shared (BS, half) tables (not replicated xH).
            q1_h = q1_all[:, h * half:(h + 1) * half]
            q2_h = q2_all[:, h * half:(h + 1) * half]
            q1r = q1_h * ck_ - q2_h * sk_
            q2r = q2_h * ck_ + q1_h * sk_
            # One lane concat per head -> a single score matmul contracting dh
            # (instead of 3 small-contraction MXU passes).  Hoisted out of b loop.
            q_h = jnp.concatenate(
                [qn_all[:, h * nope:(h + 1) * nope], q1r, q2r], axis=-1).astype(bf16)
            k_h = jnp.concatenate(
                [kn_all[:, h * nope:(h + 1) * nope], k1r, k2r], axis=-1).astype(bf16)
            v_h = v_all[:, h * dh:(h + 1) * dh]
            for b in range(BB):
                r = slice(b * S, (b + 1) * S)
                # 1/sqrt(dh) already folded into W_uq -> scores arrive scaled.
                sc = lax.dot_general(q_h[r], k_h[r], dn, preferred_element_type=f32)
                sc = jnp.where(causal, sc, neg)
                m = jnp.max(sc, axis=-1, keepdims=True)
                e = jnp.exp(sc - m)
                l = jnp.sum(e, axis=-1, keepdims=True)
                p = e * pl.reciprocal(l, approx=True)               # divide on EUP
                # Seq-mean pooling is linear: mean_q(p @ v) == (mean_q p) @ v,
                # so the full (S, dh) PV product and per-head output proj vanish.
                pbar = (jnp.sum(p, axis=0, keepdims=True) * inv_s).astype(bf16)
                head_out[b][h] = jnp.dot(pbar, v_h[r], preferred_element_type=f32)

        pooled = jnp.concatenate(
            [jnp.concatenate(head_out[b], axis=-1) for b in range(BB)], axis=0)
        # Single fused output projection for the whole batch block: (BB,D)@(D,D).
        out_ref[0] = jnp.dot(pooled.astype(bf16), wot_ref[...],
                             preferred_element_type=f32)

    return kernel


def mla_classifier_forward(x, p, H, dh, nope, rope, kvp, *, batch_block=None):
    B, S, D = x.shape
    if batch_block is None:
        # >= 2 grid steps when possible: pipelines the per-block input DMA and
        # lets the "parallel" batch axis use both TensorCores on v7x.
        batch_block = B // 2 if (B >= 2 and B % 2 == 0) else 1
    BB = batch_block
    assert B % BB == 0
    Gb = B // BB
    half = rope // 2
    q_proj = p['W_dq'].shape[1]
    bf16 = jnp.bfloat16
    scale = 1.0 / math.sqrt(dh)

    # ---- weight layout plumbing (wrapper-side; keeps the kernel MXU-clean) ----
    # 1/sqrt(dh) folded into the Q up-projection (commutes with the RoPE rotation).
    Wuq3 = (p['W_uq'] * scale).reshape(q_proj, H, dh)
    W_uq_nope = Wuq3[:, :, :nope].reshape(q_proj, H * nope)
    W_uq_r1 = Wuq3[:, :, nope:nope + half].reshape(q_proj, H * half)
    W_uq_r2 = Wuq3[:, :, nope + half:].reshape(q_proj, H * half)

    W_dkv_l = p['W_dkv'][:, :kvp]
    W_dkv_r1 = p['W_dkv'][:, kvp:kvp + half]
    W_dkv_r2 = p['W_dkv'][:, kvp + half:]

    Wukv3 = p['W_ukv'].reshape(kvp, H, nope + dh)
    W_ukv_k = Wukv3[:, :, :nope].reshape(kvp, H * nope)
    W_ukv_v = Wukv3[:, :, nope:].reshape(kvp, H * dh)

    W_oT = p['W_o'].T                       # (D, D): heads fold into ONE matmul

    # Shared RoPE tables for one batch block (rows ordered (b, s)); NOT
    # replicated per head.  past_length = 0 -> Q and K share the same table.
    cosK = jnp.tile(p['cos_half'], (BB, 1)).astype(jnp.float32)    # (BB*S, half)
    sinK = jnp.tile(p['sin_half'], (BB, 1)).astype(jnp.float32)

    # Leading grid-mapped axis so every block's last two dims equal the full
    # array dims (no (8,128) divisibility concerns for odd toy shapes).
    x3 = x.reshape(Gb, BB * S, D).astype(bf16)

    to_bf = lambda a: a.astype(bf16)
    weight_args = (
        to_bf(p['W_dq']), p['q_g'], p['q_b'],
        to_bf(W_uq_nope), to_bf(W_uq_r1), to_bf(W_uq_r2),
        to_bf(W_dkv_l), p['kv_g'], p['kv_b'],
        to_bf(W_dkv_r1), to_bf(W_dkv_r2),
        to_bf(W_ukv_k), to_bf(W_ukv_v), to_bf(W_oT),
        cosK, sinK,
    )

    def run(single_buffer_consts):
        # Constant (never re-fetched) weight/table slabs: single-buffer them to
        # halve their VMEM residency (biggest relative impact on v7x 64 MiB).
        extra = {"pipeline_mode": pl.Buffered(1)} if single_buffer_consts else {}

        def const_spec(a):
            nd = a.ndim
            return pl.BlockSpec(a.shape, lambda i, _n=nd: (0,) * _n, **extra)

        call = pl.pallas_call(
            make_mla_kernel(BB, S, D, H, dh, nope, half),
            out_shape=jax.ShapeDtypeStruct((Gb, BB, D), jnp.float32),
            grid=(Gb,),
            in_specs=[pl.BlockSpec((1, BB * S, D), lambda i: (i, 0, 0))]
                     + [const_spec(a) for a in weight_args],
            out_specs=pl.BlockSpec((1, BB, D), lambda i: (i, 0, 0)),
            compiler_params=pltpu.CompilerParams(
                dimension_semantics=("parallel",),
                vmem_limit_bytes=64 * 1024 * 1024),
        )
        return jax.block_until_ready(call(x3, *weight_args))

    try:
        out3 = run(True)
    except Exception:
        # pl.Buffered(1) / pipeline_mode not supported on this jax/backend ->
        # fall back to default double-buffered constant specs (identical math).
        out3 = run(False)

    # attended.mean(dim=1) is already done in-kernel (pooled rewrite);
    # torch.sum(x, dim=0) over the batch happens here.
    return out3.reshape(B, D).sum(axis=0)


# --------------------------- pure-JAX reference -----------------------------
def _rotate_half(v):
    half = v.shape[-1] // 2
    return jnp.concatenate([-v[..., half:], v[..., :half]], axis=-1)


def reference_forward(x, p, H, dh, nope, rope, kvp):
    """Pure-JAX f32 mirror of the PyTorch forward (training mode, kv_cache=None)."""
    B, S, D = x.shape
    cos = jnp.tile(p['cos_half'], (1, 2))[None, None]               # (1,1,S,rope)
    sin = jnp.tile(p['sin_half'], (1, 2))[None, None]
    cq = _layernorm(x @ p['W_dq'], p['q_g'], p['q_b'])
    Q = (cq @ p['W_uq']).reshape(B, S, H, dh).transpose(0, 2, 1, 3)
    Q_nope, Q_rope = Q[..., :nope], Q[..., nope:]
    Q_rope = Q_rope * cos + _rotate_half(Q_rope) * sin
    ckv = x @ p['W_dkv']
    kv_lora = _layernorm(ckv[..., :kvp], p['kv_g'], p['kv_b'])
    k_rope_in = ckv[..., kvp:]
    KV = (kv_lora @ p['W_ukv']).reshape(B, S, H, dh + nope).transpose(0, 2, 1, 3)
    K_nope, V = KV[..., :nope], KV[..., nope:]
    Kr = k_rope_in[:, None] * cos + _rotate_half(k_rope_in[:, None]) * sin
    Kr = jnp.broadcast_to(Kr, (B, H, S, rope))
    q_heads = jnp.concatenate([Q_nope, Q_rope], axis=-1)
    k_heads = jnp.concatenate([K_nope, Kr], axis=-1)
    scores = jnp.einsum('bhqd,bhkd->bhqk', q_heads, k_heads) / math.sqrt(dh)
    mask = jnp.tril(jnp.ones((S, S), bool))
    scores = jnp.where(mask[None, None], scores, -jnp.inf)
    attn = jax.nn.softmax(scores, axis=-1)
    out = jnp.einsum('bhqk,bhkd->bhqd', attn, V)
    out = out.transpose(0, 2, 1, 3).reshape(B, S, D) @ p['W_o'].T
    return out.mean(axis=1).sum(axis=0)


if __name__ == "__main__":
    # Small shapes consistent with the module (embed_dim divisible by heads,
    # rope dim even so torch's RoPE branch is well-defined).
    B, S = 2, 8
    embed_dim, num_heads = 48, 4
    dh = embed_dim // num_heads                 # 12
    q_proj = embed_dim // 2                     # 24
    kvp = 2 * embed_dim // 3                    # 32
    nope = dh // 2                              # 6
    rope = dh - nope                            # 6
    assert rope % 2 == 0
    half = rope // 2
    max_len, theta = 1024, 10000.0

    key = jax.random.PRNGKey(0)
    k = jax.random.split(key, 6)
    W_dq = 0.01 * jax.random.normal(k[0], (embed_dim, q_proj), jnp.float32)
    W_uq = 0.01 * jax.random.normal(k[1], (q_proj, embed_dim), jnp.float32)
    W_dkv = 0.01 * jax.random.normal(k[2], (embed_dim, kvp + rope), jnp.float32)
    W_ukv = 0.01 * jax.random.normal(k[3], (kvp, embed_dim + num_heads * nope), jnp.float32)
    W_o = 0.01 * jax.random.normal(k[4], (embed_dim, embed_dim), jnp.float32)
    x = jax.random.normal(k[5], (B, S, embed_dim), dtype=jnp.float32)

    # RoPE half-width cache (past_length=0 -> Q and K share the same table).
    freqs = 1.0 / theta ** (jnp.arange(0, dh, 2, dtype=jnp.float32) / dh)
    emb = jnp.outer(jnp.arange(max_len, dtype=jnp.float32), freqs)
    cos_half = jnp.cos(emb)[:S, :half]
    sin_half = jnp.sin(emb)[:S, :half]

    params = dict(
        W_dq=W_dq, W_uq=W_uq, W_dkv=W_dkv, W_ukv=W_ukv, W_o=W_o,
        q_g=jnp.ones((1, q_proj), jnp.float32), q_b=jnp.zeros((1, q_proj), jnp.float32),
        kv_g=jnp.ones((1, kvp), jnp.float32), kv_b=jnp.zeros((1, kvp), jnp.float32),
        cos_half=cos_half, sin_half=sin_half,
    )

    out = mla_classifier_forward(x, params, num_heads, dh, nope, rope, kvp)
    out = jax.block_until_ready(out)

    with jax.default_matmul_precision("highest"):
        ref = reference_forward(x, params, num_heads, dh, nope, rope, kvp)
    # Tolerance reflects bf16 MXU operands (f32 accumulation) + approx
    # reciprocal in the softmax vs the f32 reference.
    np.testing.assert_allclose(np.asarray(out), np.asarray(ref), rtol=2e-2, atol=5e-4)

    print("KERNEL_OK")
</pallas_src>

<mosaic_0001>
module attributes {stable_mosaic.version = 11 : i64} {
  func.func @kernel(%arg0: i32, %arg1: memref<1x8x48xbf16, #tpu.memory_space<vmem>>, %arg2: memref<48x24xbf16, #tpu.memory_space<vmem>>, %arg3: memref<1x24xf32, #tpu.memory_space<vmem>>, %arg4: memref<1x24xf32, #tpu.memory_space<vmem>>, %arg5: memref<24x24xbf16, #tpu.memory_space<vmem>>, %arg6: memref<24x12xbf16, #tpu.memory_space<vmem>>, %arg7: memref<24x12xbf16, #tpu.memory_space<vmem>>, %arg8: memref<48x32xbf16, #tpu.memory_space<vmem>>, %arg9: memref<1x32xf32, #tpu.memory_space<vmem>>, %arg10: memref<1x32xf32, #tpu.memory_space<vmem>>, %arg11: memref<48x3xbf16, #tpu.memory_space<vmem>>, %arg12: memref<48x3xbf16, #tpu.memory_space<vmem>>, %arg13: memref<32x24xbf16, #tpu.memory_space<vmem>>, %arg14: memref<32x48xbf16, #tpu.memory_space<vmem>>, %arg15: memref<48x48xbf16, #tpu.memory_space<vmem>>, %arg16: memref<8x3xf32, #tpu.memory_space<vmem>>, %arg17: memref<8x3xf32, #tpu.memory_space<vmem>>, %arg18: memref<1x1x48xf32, #tpu.memory_space<vmem>>) attributes {dimension_semantics = [#tpu.dimension_semantics<parallel>], iteration_bounds = array<i64: 2>, scalar_prefetch = 0 : i64, scratch_operands = 0 : i64, tpu.core_type = #tpu.core_type<tc>, window_params = [{transform_indices = @transform_0, window_bounds = array<i64: 1, 8, 48>}, {pipeline_mode = #tpu.pipeline_mode<synchronous>, transform_indices = @transform_1, window_bounds = array<i64: 48, 24>}, {pipeline_mode = #tpu.pipeline_mode<synchronous>, transform_indices = @transform_2, window_bounds = array<i64: 1, 24>}, {pipeline_mode = #tpu.pipeline_mode<synchronous>, transform_indices = @transform_3, window_bounds = array<i64: 1, 24>}, {pipeline_mode = #tpu.pipeline_mode<synchronous>, transform_indices = @transform_4, window_bounds = array<i64: 24, 24>}, {pipeline_mode = #tpu.pipeline_mode<synchronous>, transform_indices = @transform_5, window_bounds = array<i64: 24, 12>}, {pipeline_mode = #tpu.pipeline_mode<synchronous>, transform_indices = @transform_6, window_bounds = array<i64: 24, 12>}, {pipeline_mode = #tpu.pipeline_mode<synchronous>, transform_indices = @transform_7, window_bounds = array<i64: 48, 32>}, {pipeline_mode = #tpu.pipeline_mode<synchronous>, transform_indices = @transform_8, window_bounds = array<i64: 1, 32>}, {pipeline_mode = #tpu.pipeline_mode<synchronous>, transform_indices = @transform_9, window_bounds = array<i64: 1, 32>}, {pipeline_mode = #tpu.pipeline_mode<synchronous>, transform_indices = @transform_10, window_bounds = array<i64: 48, 3>}, {pipeline_mode = #tpu.pipeline_mode<synchronous>, transform_indices = @transform_11, window_bounds = array<i64: 48, 3>}, {pipeline_mode = #tpu.pipeline_mode<synchronous>, transform_indices = @transform_12, window_bounds = array<i64: 32, 24>}, {pipeline_mode = #tpu.pipeline_mode<synchronous>, transform_indices = @transform_13, window_bounds = array<i64: 32, 48>}, {pipeline_mode = #tpu.pipeline_mode<synchronous>, transform_indices = @transform_14, window_bounds = array<i64: 48, 48>}, {pipeline_mode = #tpu.pipeline_mode<synchronous>, transform_indices = @transform_15, window_bounds = array<i64: 8, 3>}, {pipeline_mode = #tpu.pipeline_mode<synchronous>, transform_indices = @transform_16, window_bounds = array<i64: 8, 3>}, {transform_indices = @transform_17, window_bounds = array<i64: 1, 1, 48>}]} {
    %c0 = arith.constant 0 : index
    %c0_0 = arith.constant 0 : index
    %c0_1 = arith.constant 0 : index
    %0 = vector.load %arg1[%c0, %c0_0, %c0_1] : memref<1x8x48xbf16, #tpu.memory_space<vmem>>, vector<1x8x48xbf16>
    %1 = vector.shape_cast %0 : vector<1x8x48xbf16> to vector<8x48xbf16>
    %c0_2 = arith.constant 0 : index
    %c0_3 = arith.constant 0 : index
    %2 = vector.load %arg2[%c0_2, %c0_3] : memref<48x24xbf16, #tpu.memory_space<vmem>>, vector<48x24xbf16>
    %cst = arith.constant dense<0.000000e+00> : vector<8x24xf32>
    %3 = tpu.matmul %1, %2, %cst {dimension_numbers = #tpu.dot_dimension_numbers<[1], [0], [0], [1], [0, 0, 1, 1], [], []>} : vector<8x48xbf16>, vector<48x24xbf16>, vector<8x24xf32> -> vector<8x24xf32>
    %c0_4 = arith.constant 0 : index
    %c0_5 = arith.constant 0 : index
    %4 = vector.load %arg3[%c0_4, %c0_5] : memref<1x24xf32, #tpu.memory_space<vmem>>, vector<1x24xf32>
    %c0_6 = arith.constant 0 : index
    %c0_7 = arith.constant 0 : index
    %5 = vector.load %arg4[%c0_6, %c0_7] : memref<1x24xf32, #tpu.memory_space<vmem>>, vector<1x24xf32>
    %cst_8 = arith.constant dense<0.000000e+00> : vector<8xf32>
    %6 = vector.multi_reduction <add>, %3, %cst_8 [1] : vector<8x24xf32> to vector<8xf32>
    %7 = vector.shape_cast %6 : vector<8xf32> to vector<8x1xf32>
    %cst_9 = arith.constant 2.400000e+01 : f32
    %8 = vector.broadcast %cst_9 : f32 to vector<8x1xf32>
    %9 = arith.divf %7, %8 : vector<8x1xf32>
    %10 = vector.broadcast %9 : vector<8x1xf32> to vector<8x24xf32>
    %11 = arith.subf %3, %10 : vector<8x24xf32>
    %12 = arith.mulf %11, %11 : vector<8x24xf32>
    %cst_10 = arith.constant dense<0.000000e+00> : vector<8xf32>
    %13 = vector.multi_reduction <add>, %12, %cst_10 [1] : vector<8x24xf32> to vector<8xf32>
    %14 = vector.shape_cast %13 : vector<8xf32> to vector<8x1xf32>
    %cst_11 = arith.constant 2.400000e+01 : f32
    %15 = vector.broadcast %cst_11 : f32 to vector<8x1xf32>
    %16 = arith.divf %14, %15 : vector<8x1xf32>
    %17 = vector.broadcast %9 : vector<8x1xf32> to vector<8x24xf32>
    %18 = arith.subf %3, %17 : vector<8x24xf32>
    %cst_12 = arith.constant 9.99999974E-6 : f32
    %19 = vector.broadcast %cst_12 : f32 to vector<8x1xf32>
    %20 = arith.addf %16, %19 : vector<8x1xf32>
    %21 = math.rsqrt %20 : vector<8x1xf32>
    %22 = vector.broadcast %21 : vector<8x1xf32> to vector<8x24xf32>
    %23 = arith.mulf %18, %22 : vector<8x24xf32>
    %24 = vector.broadcast %4 : vector<1x24xf32> to vector<8x24xf32>
    %25 = arith.mulf %23, %24 : vector<8x24xf32>
    %26 = vector.broadcast %5 : vector<1x24xf32> to vector<8x24xf32>
    %27 = arith.addf %25, %26 : vector<8x24xf32>
    %28 = arith.truncf %27 : vector<8x24xf32> to vector<8x24xbf16>
    %c0_13 = arith.constant 0 : index
    %c0_14 = arith.constant 0 : index
    %29 = vector.load %arg5[%c0_13, %c0_14] : memref<24x24xbf16, #tpu.memory_space<vmem>>, vector<24x24xbf16>
    %cst_15 = arith.constant dense<0.000000e+00> : vector<8x24xf32>
    %30 = tpu.matmul %28, %29, %cst_15 {dimension_numbers = #tpu.dot_dimension_numbers<[1], [0], [0], [1], [0, 0, 1, 1], [], []>} : vector<8x24xbf16>, vector<24x24xbf16>, vector<8x24xf32> -> vector<8x24xf32>
    %c0_16 = arith.constant 0 : index
    %c0_17 = arith.constant 0 : index
    %31 = vector.load %arg6[%c0_16, %c0_17] : memref<24x12xbf16, #tpu.memory_space<vmem>>, vector<24x12xbf16>
    %cst_18 = arith.constant dense<0.000000e+00> : vector<8x12xf32>
    %32 = tpu.matmul %28, %31, %cst_18 {dimension_numbers = #tpu.dot_dimension_numbers<[1], [0], [0], [1], [0, 0, 1, 1], [], []>} : vector<8x24xbf16>, vector<24x12xbf16>, vector<8x12xf32> -> vector<8x12xf32>
    %c0_19 = arith.constant 0 : index
    %c0_20 = arith.constant 0 : index
    %33 = vector.load %arg7[%c0_19, %c0_20] : memref<24x12xbf16, #tpu.memory_space<vmem>>, vector<24x12xbf16>
    %cst_21 = arith.constant dense<0.000000e+00> : vector<8x12xf32>
    %34 = tpu.matmul %28, %33, %cst_21 {dimension_numbers = #tpu.dot_dimension_numbers<[1], [0], [0], [1], [0, 0, 1, 1], [], []>} : vector<8x24xbf16>, vector<24x12xbf16>, vector<8x12xf32> -> vector<8x12xf32>
    %c0_22 = arith.constant 0 : index
    %c0_23 = arith.constant 0 : index
    %35 = vector.load %arg8[%c0_22, %c0_23] : memref<48x32xbf16, #tpu.memory_space<vmem>>, vector<48x32xbf16>
    %cst_24 = arith.constant dense<0.000000e+00> : vector<8x32xf32>
    %36 = tpu.matmul %1, %35, %cst_24 {dimension_numbers = #tpu.dot_dimension_numbers<[1], [0], [0], [1], [0, 0, 1, 1], [], []>} : vector<8x48xbf16>, vector<48x32xbf16>, vector<8x32xf32> -> vector<8x32xf32>
    %c0_25 = arith.constant 0 : index
    %c0_26 = arith.constant 0 : index
    %37 = vector.load %arg9[%c0_25, %c0_26] : memref<1x32xf32, #tpu.memory_space<vmem>>, vector<1x32xf32>
    %c0_27 = arith.constant 0 : index
    %c0_28 = arith.constant 0 : index
    %38 = vector.load %arg10[%c0_27, %c0_28] : memref<1x32xf32, #tpu.memory_space<vmem>>, vector<1x32xf32>
    %cst_29 = arith.constant dense<0.000000e+00> : vector<8xf32>
    %39 = vector.multi_reduction <add>, %36, %cst_29 [1] : vector<8x32xf32> to vector<8xf32>
    %40 = vector.shape_cast %39 : vector<8xf32> to vector<8x1xf32>
    %cst_30 = arith.constant 3.200000e+01 : f32
    %41 = vector.broadcast %cst_30 : f32 to vector<8x1xf32>
    %42 = arith.divf %40, %41 : vector<8x1xf32>
    %43 = vector.broadcast %42 : vector<8x1xf32> to vector<8x32xf32>
    %44 = arith.subf %36, %43 : vector<8x32xf32>
    %45 = arith.mulf %44, %44 : vector<8x32xf32>
    %cst_31 = arith.constant dense<0.000000e+00> : vector<8xf32>
    %46 = vector.multi_reduction <add>, %45, %cst_31 [1] : vector<8x32xf32> to vector<8xf32>
    %47 = vector.shape_cast %46 : vector<8xf32> to vector<8x1xf32>
    %cst_32 = arith.constant 3.200000e+01 : f32
    %48 = vector.broadcast %cst_32 : f32 to vector<8x1xf32>
    %49 = arith.divf %47, %48 : vector<8x1xf32>
    %50 = vector.broadcast %42 : vector<8x1xf32> to vector<8x32xf32>
    %51 = arith.subf %36, %50 : vector<8x32xf32>
    %cst_33 = arith.constant 9.99999974E-6 : f32
    %52 = vector.broadcast %cst_33 : f32 to vector<8x1xf32>
    %53 = arith.addf %49, %52 : vector<8x1xf32>
    %54 = math.rsqrt %53 : vector<8x1xf32>
    %55 = vector.broadcast %54 : vector<8x1xf32> to vector<8x32xf32>
    %56 = arith.mulf %51, %55 : vector<8x32xf32>
    %57 = vector.broadcast %37 : vector<1x32xf32> to vector<8x32xf32>
    %58 = arith.mulf %56, %57 : vector<8x32xf32>
    %59 = vector.broadcast %38 : vector<1x32xf32> to vector<8x32xf32>
    %60 = arith.addf %58, %59 : vector<8x32xf32>
    %61 = arith.truncf %60 : vector<8x32xf32> to vector<8x32xbf16>
    %c0_34 = arith.constant 0 : index
    %c0_35 = arith.constant 0 : index
    %62 = vector.load %arg13[%c0_34, %c0_35] : memref<32x24xbf16, #tpu.memory_space<vmem>>, vector<32x24xbf16>
    %cst_36 = arith.constant dense<0.000000e+00> : vector<8x24xf32>
    %63 = tpu.matmul %61, %62, %cst_36 {dimension_numbers = #tpu.dot_dimension_numbers<[1], [0], [0], [1], [0, 0, 1, 1], [], []>} : vector<8x32xbf16>, vector<32x24xbf16>, vector<8x24xf32> -> vector<8x24xf32>
    %c0_37 = arith.constant 0 : index
    %c0_38 = arith.constant 0 : index
    %64 = vector.load %arg14[%c0_37, %c0_38] : memref<32x48xbf16, #tpu.memory_space<vmem>>, vector<32x48xbf16>
    %cst_39 = arith.constant dense<0.000000e+00> : vector<8x48xf32>
    %65 = tpu.matmul %61, %64, %cst_39 {dimension_numbers = #tpu.dot_dimension_numbers<[1], [0], [0], [1], [0, 0, 1, 1], [], []>} : vector<8x32xbf16>, vector<32x48xbf16>, vector<8x48xf32> -> vector<8x48xf32>
    %66 = arith.truncf %65 : vector<8x48xf32> to vector<8x48xbf16>
    %c0_40 = arith.constant 0 : index
    %c0_41 = arith.constant 0 : index
    %67 = vector.load %arg11[%c0_40, %c0_41] : memref<48x3xbf16, #tpu.memory_space<vmem>>, vector<48x3xbf16>
    %cst_42 = arith.constant dense<0.000000e+00> : vector<8x3xf32>
    %68 = tpu.matmul %1, %67, %cst_42 {dimension_numbers = #tpu.dot_dimension_numbers<[1], [0], [0], [1], [0, 0, 1, 1], [], []>} : vector<8x48xbf16>, vector<48x3xbf16>, vector<8x3xf32> -> vector<8x3xf32>
    %c0_43 = arith.constant 0 : index
    %c0_44 = arith.constant 0 : index
    %69 = vector.load %arg12[%c0_43, %c0_44] : memref<48x3xbf16, #tpu.memory_space<vmem>>, vector<48x3xbf16>
    %cst_45 = arith.constant dense<0.000000e+00> : vector<8x3xf32>
    %70 = tpu.matmul %1, %69, %cst_45 {dimension_numbers = #tpu.dot_dimension_numbers<[1], [0], [0], [1], [0, 0, 1, 1], [], []>} : vector<8x48xbf16>, vector<48x3xbf16>, vector<8x3xf32> -> vector<8x3xf32>
    %c0_46 = arith.constant 0 : index
    %c0_47 = arith.constant 0 : index
    %71 = vector.load %arg16[%c0_46, %c0_47] : memref<8x3xf32, #tpu.memory_space<vmem>>, vector<8x3xf32>
    %c0_48 = arith.constant 0 : index
    %c0_49 = arith.constant 0 : index
    %72 = vector.load %arg17[%c0_48, %c0_49] : memref<8x3xf32, #tpu.memory_space<vmem>>, vector<8x3xf32>
    %73 = arith.mulf %68, %71 : vector<8x3xf32>
    %74 = arith.mulf %70, %72 : vector<8x3xf32>
    %75 = arith.subf %73, %74 : vector<8x3xf32>
    %76 = arith.mulf %70, %71 : vector<8x3xf32>
    %77 = arith.mulf %68, %72 : vector<8x3xf32>
    %78 = arith.addf %76, %77 : vector<8x3xf32>
    %79 = tpu.iota {dimensions = array<i32: 0>} : vector<8x8xi32>
    %80 = tpu.iota {dimensions = array<i32: 1>} : vector<8x8xi32>
    %81 = arith.cmpi sge, %79, %80 : vector<8x8xi32>
    %82 = vector.extract_strided_slice %32 {offsets = [0, 0], sizes = [8, 3], strides = [1, 1]} : vector<8x12xf32> to vector<8x3xf32>
    %83 = vector.extract_strided_slice %34 {offsets = [0, 0], sizes = [8, 3], strides = [1, 1]} : vector<8x12xf32> to vector<8x3xf32>
    %84 = arith.mulf %82, %71 : vector<8x3xf32>
    %85 = arith.mulf %83, %72 : vector<8x3xf32>
    %86 = arith.subf %84, %85 : vector<8x3xf32>
    %87 = arith.mulf %83, %71 : vector<8x3xf32>
    %88 = arith.mulf %82, %72 : vector<8x3xf32>
    %89 = arith.addf %87, %88 : vector<8x3xf32>
    %90 = vector.extract_strided_slice %30 {offsets = [0, 0], sizes = [8, 6], strides = [1, 1]} : vector<8x24xf32> to vector<8x6xf32>
    %91 = tpu.concatenate %90, %86, %89 in 1 : vector<8x6xf32>, vector<8x3xf32>, vector<8x3xf32> -> vector<8x12xf32>
    %92 = arith.truncf %91 : vector<8x12xf32> to vector<8x12xbf16>
    %93 = vector.extract_strided_slice %63 {offsets = [0, 0], sizes = [8, 6], strides = [1, 1]} : vector<8x24xf32> to vector<8x6xf32>
    %94 = tpu.concatenate %93, %75, %78 in 1 : vector<8x6xf32>, vector<8x3xf32>, vector<8x3xf32> -> vector<8x12xf32>
    %95 = arith.truncf %94 : vector<8x12xf32> to vector<8x12xbf16>
    %96 = vector.extract_strided_slice %66 {offsets = [0, 0], sizes = [8, 12], strides = [1, 1]} : vector<8x48xbf16> to vector<8x12xbf16>
    %cst_50 = arith.constant dense<0.000000e+00> : vector<8x8xf32>
    %97 = tpu.matmul %92, %95, %cst_50 {dimension_numbers = #tpu.dot_dimension_numbers<[1], [1], [0], [0], [0, 0, 1, 0], [], []>} : vector<8x12xbf16>, vector<8x12xbf16>, vector<8x8xf32> -> vector<8x8xf32>
    %cst_51 = arith.constant -1.000000e+30 : f32
    %98 = vector.broadcast %cst_51 : f32 to vector<8x8xf32>
    %99 = arith.select %81, %97, %98 : vector<8x8xi1>, vector<8x8xf32>
    %cst_52 = arith.constant dense<0xFF800000> : vector<8xf32>
    %100 = vector.multi_reduction <maximumf>, %99, %cst_52 [1] : vector<8x8xf32> to vector<8xf32>
    %101 = vector.shape_cast %100 : vector<8xf32> to vector<8x1xf32>
    %102 = vector.broadcast %101 : vector<8x1xf32> to vector<8x8xf32>
    %103 = arith.subf %99, %102 : vector<8x8xf32>
    %104 = math.exp %103 : vector<8x8xf32>
    %cst_53 = arith.constant dense<0.000000e+00> : vector<8xf32>
    %105 = vector.multi_reduction <add>, %104, %cst_53 [1] : vector<8x8xf32> to vector<8xf32>
    %106 = vector.shape_cast %105 : vector<8xf32> to vector<8x1xf32>
    %107 = tpu.reciprocal %106 {approx = true} : vector<8x1xf32> -> vector<8x1xf32>
    %108 = vector.broadcast %107 : vector<8x1xf32> to vector<8x8xf32>
    %109 = arith.mulf %104, %108 : vector<8x8xf32>
    %cst_54 = arith.constant dense<0.000000e+00> : vector<8xf32>
    %110 = vector.multi_reduction <add>, %109, %cst_54 [0] : vector<8x8xf32> to vector<8xf32>
    %111 = vector.shape_cast %110 : vector<8xf32> to vector<1x8xf32>
    %cst_55 = arith.constant 1.250000e-01 : f32
    %112 = vector.broadcast %cst_55 : f32 to vector<1x8xf32>
    %113 = arith.mulf %111, %112 : vector<1x8xf32>
    %114 = arith.truncf %113 : vector<1x8xf32> to vector<1x8xbf16>
    %cst_56 = arith.constant dense<0.000000e+00> : vector<1x12xf32>
    %115 = tpu.matmul %114, %96, %cst_56 {dimension_numbers = #tpu.dot_dimension_numbers<[1], [0], [0], [1], [0, 0, 1, 1], [], []>} : vector<1x8xbf16>, vector<8x12xbf16>, vector<1x12xf32> -> vector<1x12xf32>
    %116 = vector.extract_strided_slice %32 {offsets = [0, 3], sizes = [8, 3], strides = [1, 1]} : vector<8x12xf32> to vector<8x3xf32>
    %117 = vector.extract_strided_slice %34 {offsets = [0, 3], sizes = [8, 3], strides = [1, 1]} : vector<8x12xf32> to vector<8x3xf32>
    %118 = arith.mulf %116, %71 : vector<8x3xf32>
    %119 = arith.mulf %117, %72 : vector<8x3xf32>
    %120 = arith.subf %118, %119 : vector<8x3xf32>
    %121 = arith.mulf %117, %71 : vector<8x3xf32>
    %122 = arith.mulf %116, %72 : vector<8x3xf32>
    %123 = arith.addf %121, %122 : vector<8x3xf32>
    %124 = vector.extract_strided_slice %30 {offsets = [0, 6], sizes = [8, 6], strides = [1, 1]} : vector<8x24xf32> to vector<8x6xf32>
    %125 = tpu.concatenate %124, %120, %123 in 1 : vector<8x6xf32>, vector<8x3xf32>, vector<8x3xf32> -> vector<8x12xf32>
    %126 = arith.truncf %125 : vector<8x12xf32> to vector<8x12xbf16>
    %127 = vector.extract_strided_slice %63 {offsets = [0, 6], sizes = [8, 6], strides = [1, 1]} : vector<8x24xf32> to vector<8x6xf32>
    %128 = tpu.concatenate %127, %75, %78 in 1 : vector<8x6xf32>, vector<8x3xf32>, vector<8x3xf32> -> vector<8x12xf32>
    %129 = arith.truncf %128 : vector<8x12xf32> to vector<8x12xbf16>
    %130 = vector.extract_strided_slice %66 {offsets = [0, 12], sizes = [8, 12], strides = [1, 1]} : vector<8x48xbf16> to vector<8x12xbf16>
    %cst_57 = arith.constant dense<0.000000e+00> : vector<8x8xf32>
    %131 = tpu.matmul %126, %129, %cst_57 {dimension_numbers = #tpu.dot_dimension_numbers<[1], [1], [0], [0], [0, 0, 1, 0], [], []>} : vector<8x12xbf16>, vector<8x12xbf16>, vector<8x8xf32> -> vector<8x8xf32>
    %cst_58 = arith.constant -1.000000e+30 : f32
    %132 = vector.broadcast %cst_58 : f32 to vector<8x8xf32>
    %133 = arith.select %81, %131, %132 : vector<8x8xi1>, vector<8x8xf32>
    %cst_59 = arith.constant dense<0xFF800000> : vector<8xf32>
    %134 = vector.multi_reduction <maximumf>, %133, %cst_59 [1] : vector<8x8xf32> to vector<8xf32>
    %135 = vector.shape_cast %134 : vector<8xf32> to vector<8x1xf32>
    %136 = vector.broadcast %135 : vector<8x1xf32> to vector<8x8xf32>
    %137 = arith.subf %133, %136 : vector<8x8xf32>
    %138 = math.exp %137 : vector<8x8xf32>
    %cst_60 = arith.constant dense<0.000000e+00> : vector<8xf32>
    %139 = vector.multi_reduction <add>, %138, %cst_60 [1] : vector<8x8xf32> to vector<8xf32>
    %140 = vector.shape_cast %139 : vector<8xf32> to vector<8x1xf32>
    %141 = tpu.reciprocal %140 {approx = true} : vector<8x1xf32> -> vector<8x1xf32>
    %142 = vector.broadcast %141 : vector<8x1xf32> to vector<8x8xf32>
    %143 = arith.mulf %138, %142 : vector<8x8xf32>
    %cst_61 = arith.constant dense<0.000000e+00> : vector<8xf32>
    %144 = vector.multi_reduction <add>, %143, %cst_61 [0] : vector<8x8xf32> to vector<8xf32>
    %145 = vector.shape_cast %144 : vector<8xf32> to vector<1x8xf32>
    %cst_62 = arith.constant 1.250000e-01 : f32
    %146 = vector.broadcast %cst_62 : f32 to vector<1x8xf32>
    %147 = arith.mulf %145, %146 : vector<1x8xf32>
    %148 = arith.truncf %147 : vector<1x8xf32> to vector<1x8xbf16>
    %cst_63 = arith.constant dense<0.000000e+00> : vector<1x12xf32>
    %149 = tpu.matmul %148, %130, %cst_63 {dimension_numbers = #tpu.dot_dimension_numbers<[1], [0], [0], [1], [0, 0, 1, 1], [], []>} : vector<1x8xbf16>, vector<8x12xbf16>, vector<1x12xf32> -> vector<1x12xf32>
    %150 = vector.extract_strided_slice %32 {offsets = [0, 6], sizes = [8, 3], strides = [1, 1]} : vector<8x12xf32> to vector<8x3xf32>
    %151 = vector.extract_strided_slice %34 {offsets = [0, 6], sizes = [8, 3], strides = [1, 1]} : vector<8x12xf32> to vector<8x3xf32>
    %152 = arith.mulf %150, %71 : vector<8x3xf32>
    %153 = arith.mulf %151, %72 : vector<8x3xf32>
    %154 = arith.subf %152, %153 : vector<8x3xf32>
    %155 = arith.mulf %151, %71 : vector<8x3xf32>
    %156 = arith.mulf %150, %72 : vector<8x3xf32>
    %157 = arith.addf %155, %156 : vector<8x3xf32>
    %158 = vector.extract_strided_slice %30 {offsets = [0, 12], sizes = [8, 6], strides = [1, 1]} : vector<8x24xf32> to vector<8x6xf32>
    %159 = tpu.concatenate %158, %154, %157 in 1 : vector<8x6xf32>, vector<8x3xf32>, vector<8x3xf32> -> vector<8x12xf32>
    %160 = arith.truncf %159 : vector<8x12xf32> to vector<8x12xbf16>
    %161 = vector.extract_strided_slice %63 {offsets = [0, 12], sizes = [8, 6], strides = [1, 1]} : vector<8x24xf32> to vector<8x6xf32>
    %162 = tpu.concatenate %161, %75, %78 in 1 : vector<8x6xf32>, vector<8x3xf32>, vector<8x3xf32> -> vector<8x12xf32>
    %163 = arith.truncf %162 : vector<8x12xf32> to vector<8x12xbf16>
    %164 = vector.extract_strided_slice %66 {offsets = [0, 24], sizes = [8, 12], strides = [1, 1]} : vector<8x48xbf16> to vector<8x12xbf16>
    %cst_64 = arith.constant dense<0.000000e+00> : vector<8x8xf32>
    %165 = tpu.matmul %160, %163, %cst_64 {dimension_numbers = #tpu.dot_dimension_numbers<[1], [1], [0], [0], [0, 0, 1, 0], [], []>} : vector<8x12xbf16>, vector<8x12xbf16>, vector<8x8xf32> -> vector<8x8xf32>
    %cst_65 = arith.constant -1.000000e+30 : f32
    %166 = vector.broadcast %cst_65 : f32 to vector<8x8xf32>
    %167 = arith.select %81, %165, %166 : vector<8x8xi1>, vector<8x8xf32>
    %cst_66 = arith.constant dense<0xFF800000> : vector<8xf32>
    %168 = vector.multi_reduction <maximumf>, %167, %cst_66 [1] : vector<8x8xf32> to vector<8xf32>
    %169 = vector.shape_cast %168 : vector<8xf32> to vector<8x1xf32>
    %170 = vector.broadcast %169 : vector<8x1xf32> to vector<8x8xf32>
    %171 = arith.subf %167, %170 : vector<8x8xf32>
    %172 = math.exp %171 : vector<8x8xf32>
    %cst_67 = arith.constant dense<0.000000e+00> : vector<8xf32>
    %173 = vector.multi_reduction <add>, %172, %cst_67 [1] : vector<8x8xf32> to vector<8xf32>
    %174 = vector.shape_cast %173 : vector<8xf32> to vector<8x1xf32>
    %175 = tpu.reciprocal %174 {approx = true} : vector<8x1xf32> -> vector<8x1xf32>
    %176 = vector.broadcast %175 : vector<8x1xf32> to vector<8x8xf32>
    %177 = arith.mulf %172, %176 : vector<8x8xf32>
    %cst_68 = arith.constant dense<0.000000e+00> : vector<8xf32>
    %178 = vector.multi_reduction <add>, %177, %cst_68 [0] : vector<8x8xf32> to vector<8xf32>
    %179 = vector.shape_cast %178 : vector<8xf32> to vector<1x8xf32>
    %cst_69 = arith.constant 1.250000e-01 : f32
    %180 = vector.broadcast %cst_69 : f32 to vector<1x8xf32>
    %181 = arith.mulf %179, %180 : vector<1x8xf32>
    %182 = arith.truncf %181 : vector<1x8xf32> to vector<1x8xbf16>
    %cst_70 = arith.constant dense<0.000000e+00> : vector<1x12xf32>
    %183 = tpu.matmul %182, %164, %cst_70 {dimension_numbers = #tpu.dot_dimension_numbers<[1], [0], [0], [1], [0, 0, 1, 1], [], []>} : vector<1x8xbf16>, vector<8x12xbf16>, vector<1x12xf32> -> vector<1x12xf32>
    %184 = vector.extract_strided_slice %32 {offsets = [0, 9], sizes = [8, 3], strides = [1, 1]} : vector<8x12xf32> to vector<8x3xf32>
    %185 = vector.extract_strided_slice %34 {offsets = [0, 9], sizes = [8, 3], strides = [1, 1]} : vector<8x12xf32> to vector<8x3xf32>
    %186 = arith.mulf %184, %71 : vector<8x3xf32>
    %187 = arith.mulf %185, %72 : vector<8x3xf32>
    %188 = arith.subf %186, %187 : vector<8x3xf32>
    %189 = arith.mulf %185, %71 : vector<8x3xf32>
    %190 = arith.mulf %184, %72 : vector<8x3xf32>
    %191 = arith.addf %189, %190 : vector<8x3xf32>
    %192 = vector.extract_strided_slice %30 {offsets = [0, 18], sizes = [8, 6], strides = [1, 1]} : vector<8x24xf32> to vector<8x6xf32>
    %193 = tpu.concatenate %192, %188, %191 in 1 : vector<8x6xf32>, vector<8x3xf32>, vector<8x3xf32> -> vector<8x12xf32>
    %194 = arith.truncf %193 : vector<8x12xf32> to vector<8x12xbf16>
    %195 = vector.extract_strided_slice %63 {offsets = [0, 18], sizes = [8, 6], strides = [1, 1]} : vector<8x24xf32> to vector<8x6xf32>
    %196 = tpu.concatenate %195, %75, %78 in 1 : vector<8x6xf32>, vector<8x3xf32>, vector<8x3xf32> -> vector<8x12xf32>
    %197 = arith.truncf %196 : vector<8x12xf32> to vector<8x12xbf16>
    %198 = vector.extract_strided_slice %66 {offsets = [0, 36], sizes = [8, 12], strides = [1, 1]} : vector<8x48xbf16> to vector<8x12xbf16>
    %cst_71 = arith.constant dense<0.000000e+00> : vector<8x8xf32>
    %199 = tpu.matmul %194, %197, %cst_71 {dimension_numbers = #tpu.dot_dimension_numbers<[1], [1], [0], [0], [0, 0, 1, 0], [], []>} : vector<8x12xbf16>, vector<8x12xbf16>, vector<8x8xf32> -> vector<8x8xf32>
    %cst_72 = arith.constant -1.000000e+30 : f32
    %200 = vector.broadcast %cst_72 : f32 to vector<8x8xf32>
    %201 = arith.select %81, %199, %200 : vector<8x8xi1>, vector<8x8xf32>
    %cst_73 = arith.constant dense<0xFF800000> : vector<8xf32>
    %202 = vector.multi_reduction <maximumf>, %201, %cst_73 [1] : vector<8x8xf32> to vector<8xf32>
    %203 = vector.shape_cast %202 : vector<8xf32> to vector<8x1xf32>
    %204 = vector.broadcast %203 : vector<8x1xf32> to vector<8x8xf32>
    %205 = arith.subf %201, %204 : vector<8x8xf32>
    %206 = math.exp %205 : vector<8x8xf32>
    %cst_74 = arith.constant dense<0.000000e+00> : vector<8xf32>
    %207 = vector.multi_reduction <add>, %206, %cst_74 [1] : vector<8x8xf32> to vector<8xf32>
    %208 = vector.shape_cast %207 : vector<8xf32> to vector<8x1xf32>
    %209 = tpu.reciprocal %208 {approx = true} : vector<8x1xf32> -> vector<8x1xf32>
    %210 = vector.broadcast %209 : vector<8x1xf32> to vector<8x8xf32>
    %211 = arith.mulf %206, %210 : vector<8x8xf32>
    %cst_75 = arith.constant dense<0.000000e+00> : vector<8xf32>
    %212 = vector.multi_reduction <add>, %211, %cst_75 [0] : vector<8x8xf32> to vector<8xf32>
    %213 = vector.shape_cast %212 : vector<8xf32> to vector<1x8xf32>
    %cst_76 = arith.constant 1.250000e-01 : f32
    %214 = vector.broadcast %cst_76 : f32 to vector<1x8xf32>
    %215 = arith.mulf %213, %214 : vector<1x8xf32>
    %216 = arith.truncf %215 : vector<1x8xf32> to vector<1x8xbf16>
    %cst_77 = arith.constant dense<0.000000e+00> : vector<1x12xf32>
    %217 = tpu.matmul %216, %198, %cst_77 {dimension_numbers = #tpu.dot_dimension_numbers<[1], [0], [0], [1], [0, 0, 1, 1], [], []>} : vector<1x8xbf16>, vector<8x12xbf16>, vector<1x12xf32> -> vector<1x12xf32>
    %218 = tpu.concatenate %115, %149, %183, %217 in 1 : vector<1x12xf32>, vector<1x12xf32>, vector<1x12xf32>, vector<1x12xf32> -> vector<1x48xf32>
    %219 = arith.truncf %218 : vector<1x48xf32> to vector<1x48xbf16>
    %c0_78 = arith.constant 0 : index
    %c0_79 = arith.constant 0 : index
    %220 = vector.load %arg15[%c0_78, %c0_79] : memref<48x48xbf16, #tpu.memory_space<vmem>>, vector<48x48xbf16>
    %cst_80 = arith.constant dense<0.000000e+00> : vector<1x48xf32>
    %221 = tpu.matmul %219, %220, %cst_80 {dimension_numbers = #tpu.dot_dimension_numbers<[1], [0], [0], [1], [0, 0, 1, 1], [], []>} : vector<1x48xbf16>, vector<48x48xbf16>, vector<1x48xf32> -> vector<1x48xf32>
    %c0_81 = arith.constant 0 : index
    %c0_82 = arith.constant 0 : index
    %c0_83 = arith.constant 0 : index
    %222 = vector.load %arg18[%c0_81, %c0_82, %c0_83] : memref<1x1x48xf32, #tpu.memory_space<vmem>>, vector<1x1x48xf32>
    %223 = vector.shape_cast %222 : vector<1x1x48xf32> to vector<1x48xf32>
    %224 = vector.shape_cast %221 : vector<1x48xf32> to vector<1x1x48xf32>
    tpu.vector_store %arg18[%c0_81, %c0_82, %c0_83], %224 {strides = array<i32>} : memref<1x1x48xf32, #tpu.memory_space<vmem>>, vector<1x1x48xf32>,
    return
  }
  func.func @transform_0(%arg0: i32) -> (i32, i32, i32) {
    %c0_i32 = arith.constant 0 : i32
    %c0_i32_0 = arith.constant 0 : i32
    %c0_i32_1 = arith.constant 0 : i32
    return %arg0, %c0_i32, %c0_i32_0 : i32, i32, i32
  }
  func.func @transform_1(%arg0: i32) -> (i32, i32) {
    %c0_i32 = arith.constant 0 : i32
    %c0_i32_0 = arith.constant 0 : i32
    %c0_i32_1 = arith.constant 0 : i32
    return %c0_i32, %c0_i32_0 : i32, i32
  }
  func.func @transform_2(%arg0: i32) -> (i32, i32) {
    %c0_i32 = arith.constant 0 : i32
    %c0_i32_0 = arith.constant 0 : i32
    %c0_i32_1 = arith.constant 0 : i32
    return %c0_i32, %c0_i32_0 : i32, i32
  }
  func.func @transform_3(%arg0: i32) -> (i32, i32) {
    %c0_i32 = arith.constant 0 : i32
    %c0_i32_0 = arith.constant 0 : i32
    %c0_i32_1 = arith.constant 0 : i32
    return %c0_i32, %c0_i32_0 : i32, i32
  }
  func.func @transform_4(%arg0: i32) -> (i32, i32) {
    %c0_i32 = arith.constant 0 : i32
    %c0_i32_0 = arith.constant 0 : i32
    %c0_i32_1 = arith.constant 0 : i32
    return %c0_i32, %c0_i32_0 : i32, i32
  }
  func.func @transform_5(%arg0: i32) -> (i32, i32) {
    %c0_i32 = arith.constant 0 : i32
    %c0_i32_0 = arith.constant 0 : i32
    %c0_i32_1 = arith.constant 0 : i32
    return %c0_i32, %c0_i32_0 : i32, i32
  }
  func.func @transform_6(%arg0: i32) -> (i32, i32) {
    %c0_i32 = arith.constant 0 : i32
    %c0_i32_0 = arith.constant 0 : i32
    %c0_i32_1 = arith.constant 0 : i32
    return %c0_i32, %c0_i32_0 : i32, i32
  }
  func.func @transform_7(%arg0: i32) -> (i32, i32) {
    %c0_i32 = arith.constant 0 : i32
    %c0_i32_0 = arith.constant 0 : i32
    %c0_i32_1 = arith.constant 0 : i32
    return %c0_i32, %c0_i32_0 : i32, i32
  }
  func.func @transform_8(%arg0: i32) -> (i32, i32) {
    %c0_i32 = arith.constant 0 : i32
    %c0_i32_0 = arith.constant 0 : i32
    %c0_i32_1 = arith.constant 0 : i32
    return %c0_i32, %c0_i32_0 : i32, i32
  }
  func.func @transform_9(%arg0: i32) -> (i32, i32) {
    %c0_i32 = arith.constant 0 : i32
    %c0_i32_0 = arith.constant 0 : i32
    %c0_i32_1 = arith.constant 0 : i32
    return %c0_i32, %c0_i32_0 : i32, i32
  }
  func.func @transform_10(%arg0: i32) -> (i32, i32) {
    %c0_i32 = arith.constant 0 : i32
    %c0_i32_0 = arith.constant 0 : i32
    %c0_i32_1 = arith.constant 0 : i32
    return %c0_i32, %c0_i32_0 : i32, i32
  }
  func.func @transform_11(%arg0: i32) -> (i32, i32) {
    %c0_i32 = arith.constant 0 : i32
    %c0_i32_0 = arith.constant 0 : i32
    %c0_i32_1 = arith.constant 0 : i32
    return %c0_i32, %c0_i32_0 : i32, i32
  }
  func.func @transform_12(%arg0: i32) -> (i32, i32) {
    %c0_i32 = arith.constant 0 : i32
    %c0_i32_0 = arith.constant 0 : i32
    %c0_i32_1 = arith.constant 0 : i32
    return %c0_i32, %c0_i32_0 : i32, i32
  }
  func.func @transform_13(%arg0: i32) -> (i32, i32) {
    %c0_i32 = arith.constant 0 : i32
    %c0_i32_0 = arith.constant 0 : i32
    %c0_i32_1 = arith.constant 0 : i32
    return %c0_i32, %c0_i32_0 : i32, i32
  }
  func.func @transform_14(%arg0: i32) -> (i32, i32) {
    %c0_i32 = arith.constant 0 : i32
    %c0_i32_0 = arith.constant 0 : i32
    %c0_i32_1 = arith.constant 0 : i32
    return %c0_i32, %c0_i32_0 : i32, i32
  }
  func.func @transform_15(%arg0: i32) -> (i32, i32) {
    %c0_i32 = arith.constant 0 : i32
    %c0_i32_0 = arith.constant 0 : i32
    %c0_i32_1 = arith.constant 0 : i32
    return %c0_i32, %c0_i32_0 : i32, i32
  }
  func.func @transform_16(%arg0: i32) -> (i32, i32) {
    %c0_i32 = arith.constant 0 : i32
    %c0_i32_0 = arith.constant 0 : i32
    %c0_i32_1 = arith.constant 0 : i32
    return %c0_i32, %c0_i32_0 : i32, i32
  }
  func.func @transform_17(%arg0: i32) -> (i32, i32, i32) {
    %c0_i32 = arith.constant 0 : i32
    %c0_i32_0 = arith.constant 0 : i32
    %c0_i32_1 = arith.constant 0 : i32
    return %arg0, %c0_i32, %c0_i32_0 : i32, i32, i32
  }
}

module attributes {stable_mosaic.version = 11 : i64} {
  func.func @kernel(%arg0: i32, %arg1: memref<1x8x48xbf16, #tpu.memory_space<vmem>>, %arg2: memref<48x24xbf16, #tpu.memory_space<vmem>>, %arg3: memref<1x24xf32, #tpu.memory_space<vmem>>, %arg4: memref<1x24xf32, #tpu.memory_space<vmem>>, %arg5: memref<24x24xbf16, #tpu.memory_space<vmem>>, %arg6: memref<24x12xbf16, #tpu.memory_space<vmem>>, %arg7: memref<24x12xbf16, #tpu.memory_space<vmem>>, %arg8: memref<48x32xbf16, #tpu.memory_space<vmem>>, %arg9: memref<1x32xf32, #tpu.memory_space<vmem>>, %arg10: memref<1x32xf32, #tpu.memory_space<vmem>>, %arg11: memref<48x3xbf16, #tpu.memory_space<vmem>>, %arg12: memref<48x3xbf16, #tpu.memory_space<vmem>>, %arg13: memref<32x24xbf16, #tpu.memory_space<vmem>>, %arg14: memref<32x48xbf16, #tpu.memory_space<vmem>>, %arg15: memref<48x48xbf16, #tpu.memory_space<vmem>>, %arg16: memref<8x3xf32, #tpu.memory_space<vmem>>, %arg17: memref<8x3xf32, #tpu.memory_space<vmem>>, %arg18: memref<1x1x48xf32, #tpu.memory_space<vmem>>) attributes {dimension_semantics = [#tpu.dimension_semantics<parallel>], iteration_bounds = array<i64: 2>, scalar_prefetch = 0 : i64, scratch_operands = 0 : i64, tpu.core_type = #tpu.core_type<tc>, window_params = [{transform_indices = @transform_0, window_bounds = array<i64: 1, 8, 48>}, {pipeline_mode = #tpu.pipeline_mode<synchronous>, transform_indices = @transform_1, window_bounds = array<i64: 48, 24>}, {pipeline_mode = #tpu.pipeline_mode<synchronous>, transform_indices = @transform_2, window_bounds = array<i64: 1, 24>}, {pipeline_mode = #tpu.pipeline_mode<synchronous>, transform_indices = @transform_3, window_bounds = array<i64: 1, 24>}, {pipeline_mode = #tpu.pipeline_mode<synchronous>, transform_indices = @transform_4, window_bounds = array<i64: 24, 24>}, {pipeline_mode = #tpu.pipeline_mode<synchronous>, transform_indices = @transform_5, window_bounds = array<i64: 24, 12>}, {pipeline_mode = #tpu.pipeline_mode<synchronous>, transform_indices = @transform_6, window_bounds = array<i64: 24, 12>}, {pipeline_mode = #tpu.pipeline_mode<synchronous>, transform_indices = @transform_7, window_bounds = array<i64: 48, 32>}, {pipeline_mode = #tpu.pipeline_mode<synchronous>, transform_indices = @transform_8, window_bounds = array<i64: 1, 32>}, {pipeline_mode = #tpu.pipeline_mode<synchronous>, transform_indices = @transform_9, window_bounds = array<i64: 1, 32>}, {pipeline_mode = #tpu.pipeline_mode<synchronous>, transform_indices = @transform_10, window_bounds = array<i64: 48, 3>}, {pipeline_mode = #tpu.pipeline_mode<synchronous>, transform_indices = @transform_11, window_bounds = array<i64: 48, 3>}, {pipeline_mode = #tpu.pipeline_mode<synchronous>, transform_indices = @transform_12, window_bounds = array<i64: 32, 24>}, {pipeline_mode = #tpu.pipeline_mode<synchronous>, transform_indices = @transform_13, window_bounds = array<i64: 32, 48>}, {pipeline_mode = #tpu.pipeline_mode<synchronous>, transform_indices = @transform_14, window_bounds = array<i64: 48, 48>}, {pipeline_mode = #tpu.pipeline_mode<synchronous>, transform_indices = @transform_15, window_bounds = array<i64: 8, 3>}, {pipeline_mode = #tpu.pipeline_mode<synchronous>, transform_indices = @transform_16, window_bounds = array<i64: 8, 3>}, {transform_indices = @transform_17, window_bounds = array<i64: 1, 1, 48>}]} {
    %c0 = arith.constant 0 : index
    %c0_0 = arith.constant 0 : index
    %c0_1 = arith.constant 0 : index
    %0 = vector.load %arg1[%c0, %c0_0, %c0_1] : memref<1x8x48xbf16, #tpu.memory_space<vmem>>, vector<1x8x48xbf16>
    %1 = vector.shape_cast %0 : vector<1x8x48xbf16> to vector<8x48xbf16>
    %c0_2 = arith.constant 0 : index
    %c0_3 = arith.constant 0 : index
    %2 = vector.load %arg2[%c0_2, %c0_3] : memref<48x24xbf16, #tpu.memory_space<vmem>>, vector<48x24xbf16>
    %cst = arith.constant dense<0.000000e+00> : vector<8x24xf32>
    %3 = tpu.matmul %1, %2, %cst {dimension_numbers = #tpu.dot_dimension_numbers<[1], [0], [0], [1], [0, 0, 1, 1], [], []>} : vector<8x48xbf16>, vector<48x24xbf16>, vector<8x24xf32> -> vector<8x24xf32>
    %c0_4 = arith.constant 0 : index
    %c0_5 = arith.constant 0 : index
    %4 = vector.load %arg3[%c0_4, %c0_5] : memref<1x24xf32, #tpu.memory_space<vmem>>, vector<1x24xf32>
    %c0_6 = arith.constant 0 : index
    %c0_7 = arith.constant 0 : index
    %5 = vector.load %arg4[%c0_6, %c0_7] : memref<1x24xf32, #tpu.memory_space<vmem>>, vector<1x24xf32>
    %cst_8 = arith.constant dense<0.000000e+00> : vector<8xf32>
    %6 = vector.multi_reduction <add>, %3, %cst_8 [1] : vector<8x24xf32> to vector<8xf32>
    %7 = vector.shape_cast %6 : vector<8xf32> to vector<8x1xf32>
    %cst_9 = arith.constant 2.400000e+01 : f32
    %8 = vector.broadcast %cst_9 : f32 to vector<8x1xf32>
    %9 = arith.divf %7, %8 : vector<8x1xf32>
    %10 = vector.broadcast %9 : vector<8x1xf32> to vector<8x24xf32>
    %11 = arith.subf %3, %10 : vector<8x24xf32>
    %12 = arith.mulf %11, %11 : vector<8x24xf32>
    %cst_10 = arith.constant dense<0.000000e+00> : vector<8xf32>
    %13 = vector.multi_reduction <add>, %12, %cst_10 [1] : vector<8x24xf32> to vector<8xf32>
    %14 = vector.shape_cast %13 : vector<8xf32> to vector<8x1xf32>
    %cst_11 = arith.constant 2.400000e+01 : f32
    %15 = vector.broadcast %cst_11 : f32 to vector<8x1xf32>
    %16 = arith.divf %14, %15 : vector<8x1xf32>
    %17 = vector.broadcast %9 : vector<8x1xf32> to vector<8x24xf32>
    %18 = arith.subf %3, %17 : vector<8x24xf32>
    %cst_12 = arith.constant 9.99999974E-6 : f32
    %19 = vector.broadcast %cst_12 : f32 to vector<8x1xf32>
    %20 = arith.addf %16, %19 : vector<8x1xf32>
    %21 = math.rsqrt %20 : vector<8x1xf32>
    %22 = vector.broadcast %21 : vector<8x1xf32> to vector<8x24xf32>
    %23 = arith.mulf %18, %22 : vector<8x24xf32>
    %24 = vector.broadcast %4 : vector<1x24xf32> to vector<8x24xf32>
    %25 = arith.mulf %23, %24 : vector<8x24xf32>
    %26 = vector.broadcast %5 : vector<1x24xf32> to vector<8x24xf32>
    %27 = arith.addf %25, %26 : vector<8x24xf32>
    %28 = arith.truncf %27 : vector<8x24xf32> to vector<8x24xbf16>
    %c0_13 = arith.constant 0 : index
    %c0_14 = arith.constant 0 : index
    %29 = vector.load %arg5[%c0_13, %c0_14] : memref<24x24xbf16, #tpu.memory_space<vmem>>, vector<24x24xbf16>
    %cst_15 = arith.constant dense<0.000000e+00> : vector<8x24xf32>
    %30 = tpu.matmul %28, %29, %cst_15 {dimension_numbers = #tpu.dot_dimension_numbers<[1], [0], [0], [1], [0, 0, 1, 1], [], []>} : vector<8x24xbf16>, vector<24x24xbf16>, vector<8x24xf32> -> vector<8x24xf32>
    %c0_16 = arith.constant 0 : index
    %c0_17 = arith.constant 0 : index
    %31 = vector.load %arg6[%c0_16, %c0_17] : memref<24x12xbf16, #tpu.memory_space<vmem>>, vector<24x12xbf16>
    %cst_18 = arith.constant dense<0.000000e+00> : vector<8x12xf32>
    %32 = tpu.matmul %28, %31, %cst_18 {dimension_numbers = #tpu.dot_dimension_numbers<[1], [0], [0], [1], [0, 0, 1, 1], [], []>} : vector<8x24xbf16>, vector<24x12xbf16>, vector<8x12xf32> -> vector<8x12xf32>
    %c0_19 = arith.constant 0 : index
    %c0_20 = arith.constant 0 : index
    %33 = vector.load %arg7[%c0_19, %c0_20] : memref<24x12xbf16, #tpu.memory_space<vmem>>, vector<24x12xbf16>
    %cst_21 = arith.constant dense<0.000000e+00> : vector<8x12xf32>
    %34 = tpu.matmul %28, %33, %cst_21 {dimension_numbers = #tpu.dot_dimension_numbers<[1], [0], [0], [1], [0, 0, 1, 1], [], []>} : vector<8x24xbf16>, vector<24x12xbf16>, vector<8x12xf32> -> vector<8x12xf32>
    %c0_22 = arith.constant 0 : index
    %c0_23 = arith.constant 0 : index
    %35 = vector.load %arg8[%c0_22, %c0_23] : memref<48x32xbf16, #tpu.memory_space<vmem>>, vector<48x32xbf16>
    %cst_24 = arith.constant dense<0.000000e+00> : vector<8x32xf32>
    %36 = tpu.matmul %1, %35, %cst_24 {dimension_numbers = #tpu.dot_dimension_numbers<[1], [0], [0], [1], [0, 0, 1, 1], [], []>} : vector<8x48xbf16>, vector<48x32xbf16>, vector<8x32xf32> -> vector<8x32xf32>
    %c0_25 = arith.constant 0 : index
    %c0_26 = arith.constant 0 : index
    %37 = vector.load %arg9[%c0_25, %c0_26] : memref<1x32xf32, #tpu.memory_space<vmem>>, vector<1x32xf32>
    %c0_27 = arith.constant 0 : index
    %c0_28 = arith.constant 0 : index
    %38 = vector.load %arg10[%c0_27, %c0_28] : memref<1x32xf32, #tpu.memory_space<vmem>>, vector<1x32xf32>
    %cst_29 = arith.constant dense<0.000000e+00> : vector<8xf32>
    %39 = vector.multi_reduction <add>, %36, %cst_29 [1] : vector<8x32xf32> to vector<8xf32>
    %40 = vector.shape_cast %39 : vector<8xf32> to vector<8x1xf32>
    %cst_30 = arith.constant 3.200000e+01 : f32
    %41 = vector.broadcast %cst_30 : f32 to vector<8x1xf32>
    %42 = arith.divf %40, %41 : vector<8x1xf32>
    %43 = vector.broadcast %42 : vector<8x1xf32> to vector<8x32xf32>
    %44 = arith.subf %36, %43 : vector<8x32xf32>
    %45 = arith.mulf %44, %44 : vector<8x32xf32>
    %cst_31 = arith.constant dense<0.000000e+00> : vector<8xf32>
    %46 = vector.multi_reduction <add>, %45, %cst_31 [1] : vector<8x32xf32> to vector<8xf32>
    %47 = vector.shape_cast %46 : vector<8xf32> to vector<8x1xf32>
    %cst_32 = arith.constant 3.200000e+01 : f32
    %48 = vector.broadcast %cst_32 : f32 to vector<8x1xf32>
    %49 = arith.divf %47, %48 : vector<8x1xf32>
    %50 = vector.broadcast %42 : vector<8x1xf32> to vector<8x32xf32>
    %51 = arith.subf %36, %50 : vector<8x32xf32>
    %cst_33 = arith.constant 9.99999974E-6 : f32
    %52 = vector.broadcast %cst_33 : f32 to vector<8x1xf32>
    %53 = arith.addf %49, %52 : vector<8x1xf32>
    %54 = math.rsqrt %53 : vector<8x1xf32>
    %55 = vector.broadcast %54 : vector<8x1xf32> to vector<8x32xf32>
    %56 = arith.mulf %51, %55 : vector<8x32xf32>
    %57 = vector.broadcast %37 : vector<1x32xf32> to vector<8x32xf32>
    %58 = arith.mulf %56, %57 : vector<8x32xf32>
    %59 = vector.broadcast %38 : vector<1x32xf32> to vector<8x32xf32>
    %60 = arith.addf %58, %59 : vector<8x32xf32>
    %61 = arith.truncf %60 : vector<8x32xf32> to vector<8x32xbf16>
    %c0_34 = arith.constant 0 : index
    %c0_35 = arith.constant 0 : index
    %62 = vector.load %arg13[%c0_34, %c0_35] : memref<32x24xbf16, #tpu.memory_space<vmem>>, vector<32x24xbf16>
    %cst_36 = arith.constant dense<0.000000e+00> : vector<8x24xf32>
    %63 = tpu.matmul %61, %62, %cst_36 {dimension_numbers = #tpu.dot_dimension_numbers<[1], [0], [0], [1], [0, 0, 1, 1], [], []>} : vector<8x32xbf16>, vector<32x24xbf16>, vector<8x24xf32> -> vector<8x24xf32>
    %c0_37 = arith.constant 0 : index
    %c0_38 = arith.constant 0 : index
    %64 = vector.load %arg14[%c0_37, %c0_38] : memref<32x48xbf16, #tpu.memory_space<vmem>>, vector<32x48xbf16>
    %cst_39 = arith.constant dense<0.000000e+00> : vector<8x48xf32>
    %65 = tpu.matmul %61, %64, %cst_39 {dimension_numbers = #tpu.dot_dimension_numbers<[1], [0], [0], [1], [0, 0, 1, 1], [], []>} : vector<8x32xbf16>, vector<32x48xbf16>, vector<8x48xf32> -> vector<8x48xf32>
    %66 = arith.truncf %65 : vector<8x48xf32> to vector<8x48xbf16>
    %c0_40 = arith.constant 0 : index
    %c0_41 = arith.constant 0 : index
    %67 = vector.load %arg11[%c0_40, %c0_41] : memref<48x3xbf16, #tpu.memory_space<vmem>>, vector<48x3xbf16>
    %cst_42 = arith.constant dense<0.000000e+00> : vector<8x3xf32>
    %68 = tpu.matmul %1, %67, %cst_42 {dimension_numbers = #tpu.dot_dimension_numbers<[1], [0], [0], [1], [0, 0, 1, 1], [], []>} : vector<8x48xbf16>, vector<48x3xbf16>, vector<8x3xf32> -> vector<8x3xf32>
    %c0_43 = arith.constant 0 : index
    %c0_44 = arith.constant 0 : index
    %69 = vector.load %arg12[%c0_43, %c0_44] : memref<48x3xbf16, #tpu.memory_space<vmem>>, vector<48x3xbf16>
    %cst_45 = arith.constant dense<0.000000e+00> : vector<8x3xf32>
    %70 = tpu.matmul %1, %69, %cst_45 {dimension_numbers = #tpu.dot_dimension_numbers<[1], [0], [0], [1], [0, 0, 1, 1], [], []>} : vector<8x48xbf16>, vector<48x3xbf16>, vector<8x3xf32> -> vector<8x3xf32>
    %c0_46 = arith.constant 0 : index
    %c0_47 = arith.constant 0 : index
    %71 = vector.load %arg16[%c0_46, %c0_47] : memref<8x3xf32, #tpu.memory_space<vmem>>, vector<8x3xf32>
    %c0_48 = arith.constant 0 : index
    %c0_49 = arith.constant 0 : index
    %72 = vector.load %arg17[%c0_48, %c0_49] : memref<8x3xf32, #tpu.memory_space<vmem>>, vector<8x3xf32>
    %73 = arith.mulf %68, %71 : vector<8x3xf32>
    %74 = arith.mulf %70, %72 : vector<8x3xf32>
    %75 = arith.subf %73, %74 : vector<8x3xf32>
    %76 = arith.mulf %70, %71 : vector<8x3xf32>
    %77 = arith.mulf %68, %72 : vector<8x3xf32>
    %78 = arith.addf %76, %77 : vector<8x3xf32>
    %79 = tpu.iota {dimensions = array<i32: 0>} : vector<8x8xi32>
    %80 = tpu.iota {dimensions = array<i32: 1>} : vector<8x8xi32>
    %81 = arith.cmpi sge, %79, %80 : vector<8x8xi32>
    %82 = vector.extract_strided_slice %32 {offsets = [0, 0], sizes = [8, 3], strides = [1, 1]} : vector<8x12xf32> to vector<8x3xf32>
    %83 = vector.extract_strided_slice %34 {offsets = [0, 0], sizes = [8, 3], strides = [1, 1]} : vector<8x12xf32> to vector<8x3xf32>
    %84 = arith.mulf %82, %71 : vector<8x3xf32>
    %85 = arith.mulf %83, %72 : vector<8x3xf32>
    %86 = arith.subf %84, %85 : vector<8x3xf32>
    %87 = arith.mulf %83, %71 : vector<8x3xf32>
    %88 = arith.mulf %82, %72 : vector<8x3xf32>
    %89 = arith.addf %87, %88 : vector<8x3xf32>
    %90 = vector.extract_strided_slice %30 {offsets = [0, 0], sizes = [8, 6], strides = [1, 1]} : vector<8x24xf32> to vector<8x6xf32>
    %91 = tpu.concatenate %90, %86, %89 in 1 : vector<8x6xf32>, vector<8x3xf32>, vector<8x3xf32> -> vector<8x12xf32>
    %92 = arith.truncf %91 : vector<8x12xf32> to vector<8x12xbf16>
    %93 = vector.extract_strided_slice %63 {offsets = [0, 0], sizes = [8, 6], strides = [1, 1]} : vector<8x24xf32> to vector<8x6xf32>
    %94 = tpu.concatenate %93, %75, %78 in 1 : vector<8x6xf32>, vector<8x3xf32>, vector<8x3xf32> -> vector<8x12xf32>
    %95 = arith.truncf %94 : vector<8x12xf32> to vector<8x12xbf16>
    %96 = vector.extract_strided_slice %66 {offsets = [0, 0], sizes = [8, 12], strides = [1, 1]} : vector<8x48xbf16> to vector<8x12xbf16>
    %cst_50 = arith.constant dense<0.000000e+00> : vector<8x8xf32>
    %97 = tpu.matmul %92, %95, %cst_50 {dimension_numbers = #tpu.dot_dimension_numbers<[1], [1], [0], [0], [0, 0, 1, 0], [], []>} : vector<8x12xbf16>, vector<8x12xbf16>, vector<8x8xf32> -> vector<8x8xf32>
    %cst_51 = arith.constant -1.000000e+30 : f32
    %98 = vector.broadcast %cst_51 : f32 to vector<8x8xf32>
    %99 = arith.select %81, %97, %98 : vector<8x8xi1>, vector<8x8xf32>
    %cst_52 = arith.constant dense<0xFF800000> : vector<8xf32>
    %100 = vector.multi_reduction <maximumf>, %99, %cst_52 [1] : vector<8x8xf32> to vector<8xf32>
    %101 = vector.shape_cast %100 : vector<8xf32> to vector<8x1xf32>
    %102 = vector.broadcast %101 : vector<8x1xf32> to vector<8x8xf32>
    %103 = arith.subf %99, %102 : vector<8x8xf32>
    %104 = math.exp %103 : vector<8x8xf32>
    %cst_53 = arith.constant dense<0.000000e+00> : vector<8xf32>
    %105 = vector.multi_reduction <add>, %104, %cst_53 [1] : vector<8x8xf32> to vector<8xf32>
    %106 = vector.shape_cast %105 : vector<8xf32> to vector<8x1xf32>
    %107 = tpu.reciprocal %106 {approx = true} : vector<8x1xf32> -> vector<8x1xf32>
    %108 = vector.broadcast %107 : vector<8x1xf32> to vector<8x8xf32>
    %109 = arith.mulf %104, %108 : vector<8x8xf32>
    %cst_54 = arith.constant dense<0.000000e+00> : vector<8xf32>
    %110 = vector.multi_reduction <add>, %109, %cst_54 [0] : vector<8x8xf32> to vector<8xf32>
    %111 = vector.shape_cast %110 : vector<8xf32> to vector<1x8xf32>
    %cst_55 = arith.constant 1.250000e-01 : f32
    %112 = vector.broadcast %cst_55 : f32 to vector<1x8xf32>
    %113 = arith.mulf %111, %112 : vector<1x8xf32>
    %114 = arith.truncf %113 : vector<1x8xf32> to vector<1x8xbf16>
    %cst_56 = arith.constant dense<0.000000e+00> : vector<1x12xf32>
    %115 = tpu.matmul %114, %96, %cst_56 {dimension_numbers = #tpu.dot_dimension_numbers<[1], [0], [0], [1], [0, 0, 1, 1], [], []>} : vector<1x8xbf16>, vector<8x12xbf16>, vector<1x12xf32> -> vector<1x12xf32>
    %116 = vector.extract_strided_slice %32 {offsets = [0, 3], sizes = [8, 3], strides = [1, 1]} : vector<8x12xf32> to vector<8x3xf32>
    %117 = vector.extract_strided_slice %34 {offsets = [0, 3], sizes = [8, 3], strides = [1, 1]} : vector<8x12xf32> to vector<8x3xf32>
    %118 = arith.mulf %116, %71 : vector<8x3xf32>
    %119 = arith.mulf %117, %72 : vector<8x3xf32>
    %120 = arith.subf %118, %119 : vector<8x3xf32>
    %121 = arith.mulf %117, %71 : vector<8x3xf32>
    %122 = arith.mulf %116, %72 : vector<8x3xf32>
    %123 = arith.addf %121, %122 : vector<8x3xf32>
    %124 = vector.extract_strided_slice %30 {offsets = [0, 6], sizes = [8, 6], strides = [1, 1]} : vector<8x24xf32> to vector<8x6xf32>
    %125 = tpu.concatenate %124, %120, %123 in 1 : vector<8x6xf32>, vector<8x3xf32>, vector<8x3xf32> -> vector<8x12xf32>
    %126 = arith.truncf %125 : vector<8x12xf32> to vector<8x12xbf16>
    %127 = vector.extract_strided_slice %63 {offsets = [0, 6], sizes = [8, 6], strides = [1, 1]} : vector<8x24xf32> to vector<8x6xf32>
    %128 = tpu.concatenate %127, %75, %78 in 1 : vector<8x6xf32>, vector<8x3xf32>, vector<8x3xf32> -> vector<8x12xf32>
    %129 = arith.truncf %128 : vector<8x12xf32> to vector<8x12xbf16>
    %130 = vector.extract_strided_slice %66 {offsets = [0, 12], sizes = [8, 12], strides = [1, 1]} : vector<8x48xbf16> to vector<8x12xbf16>
    %cst_57 = arith.constant dense<0.000000e+00> : vector<8x8xf32>
    %131 = tpu.matmul %126, %129, %cst_57 {dimension_numbers = #tpu.dot_dimension_numbers<[1], [1], [0], [0], [0, 0, 1, 0], [], []>} : vector<8x12xbf16>, vector<8x12xbf16>, vector<8x8xf32> -> vector<8x8xf32>
    %cst_58 = arith.constant -1.000000e+30 : f32
    %132 = vector.broadcast %cst_58 : f32 to vector<8x8xf32>
    %133 = arith.select %81, %131, %132 : vector<8x8xi1>, vector<8x8xf32>
    %cst_59 = arith.constant dense<0xFF800000> : vector<8xf32>
    %134 = vector.multi_reduction <maximumf>, %133, %cst_59 [1] : vector<8x8xf32> to vector<8xf32>
    %135 = vector.shape_cast %134 : vector<8xf32> to vector<8x1xf32>
    %136 = vector.broadcast %135 : vector<8x1xf32> to vector<8x8xf32>
    %137 = arith.subf %133, %136 : vector<8x8xf32>
    %138 = math.exp %137 : vector<8x8xf32>
    %cst_60 = arith.constant dense<0.000000e+00> : vector<8xf32>
    %139 = vector.multi_reduction <add>, %138, %cst_60 [1] : vector<8x8xf32> to vector<8xf32>
    %140 = vector.shape_cast %139 : vector<8xf32> to vector<8x1xf32>
    %141 = tpu.reciprocal %140 {approx = true} : vector<8x1xf32> -> vector<8x1xf32>
    %142 = vector.broadcast %141 : vector<8x1xf32> to vector<8x8xf32>
    %143 = arith.mulf %138, %142 : vector<8x8xf32>
    %cst_61 = arith.constant dense<0.000000e+00> : vector<8xf32>
    %144 = vector.multi_reduction <add>, %143, %cst_61 [0] : vector<8x8xf32> to vector<8xf32>
    %145 = vector.shape_cast %144 : vector<8xf32> to vector<1x8xf32>
    %cst_62 = arith.constant 1.250000e-01 : f32
    %146 = vector.broadcast %cst_62 : f32 to vector<1x8xf32>
    %147 = arith.mulf %145, %146 : vector<1x8xf32>
    %148 = arith.truncf %147 : vector<1x8xf32> to vector<1x8xbf16>
    %cst_63 = arith.constant dense<0.000000e+00> : vector<1x12xf32>
    %149 = tpu.matmul %148, %130, %cst_63 {dimension_numbers = #tpu.dot_dimension_numbers<[1], [0], [0], [1], [0, 0, 1, 1], [], []>} : vector<1x8xbf16>, vector<8x12xbf16>, vector<1x12xf32> -> vector<1x12xf32>
    %150 = vector.extract_strided_slice %32 {offsets = [0, 6], sizes = [8, 3], strides = [1, 1]} : vector<8x12xf32> to vector<8x3xf32>
    %151 = vector.extract_strided_slice %34 {offsets = [0, 6], sizes = [8, 3], strides = [1, 1]} : vector<8x12xf32> to vector<8x3xf32>
    %152 = arith.mulf %150, %71 : vector<8x3xf32>
    %153 = arith.mulf %151, %72 : vector<8x3xf32>
    %154 = arith.subf %152, %153 : vector<8x3xf32>
    %155 = arith.mulf %151, %71 : vector<8x3xf32>
    %156 = arith.mulf %150, %72 : vector<8x3xf32>
    %157 = arith.addf %155, %156 : vector<8x3xf32>
    %158 = vector.extract_strided_slice %30 {offsets = [0, 12], sizes = [8, 6], strides = [1, 1]} : vector<8x24xf32> to vector<8x6xf32>
    %159 = tpu.concatenate %158, %154, %157 in 1 : vector<8x6xf32>, vector<8x3xf32>, vector<8x3xf32> -> vector<8x12xf32>
    %160 = arith.truncf %159 : vector<8x12xf32> to vector<8x12xbf16>
    %161 = vector.extract_strided_slice %63 {offsets = [0, 12], sizes = [8, 6], strides = [1, 1]} : vector<8x24xf32> to vector<8x6xf32>
    %162 = tpu.concatenate %161, %75, %78 in 1 : vector<8x6xf32>, vector<8x3xf32>, vector<8x3xf32> -> vector<8x12xf32>
    %163 = arith.truncf %162 : vector<8x12xf32> to vector<8x12xbf16>
    %164 = vector.extract_strided_slice %66 {offsets = [0, 24], sizes = [8, 12], strides = [1, 1]} : vector<8x48xbf16> to vector<8x12xbf16>
    %cst_64 = arith.constant dense<0.000000e+00> : vector<8x8xf32>
    %165 = tpu.matmul %160, %163, %cst_64 {dimension_numbers = #tpu.dot_dimension_numbers<[1], [1], [0], [0], [0, 0, 1, 0], [], []>} : vector<8x12xbf16>, vector<8x12xbf16>, vector<8x8xf32> -> vector<8x8xf32>
    %cst_65 = arith.constant -1.000000e+30 : f32
    %166 = vector.broadcast %cst_65 : f32 to vector<8x8xf32>
    %167 = arith.select %81, %165, %166 : vector<8x8xi1>, vector<8x8xf32>
    %cst_66 = arith.constant dense<0xFF800000> : vector<8xf32>
    %168 = vector.multi_reduction <maximumf>, %167, %cst_66 [1] : vector<8x8xf32> to vector<8xf32>
    %169 = vector.shape_cast %168 : vector<8xf32> to vector<8x1xf32>
    %170 = vector.broadcast %169 : vector<8x1xf32> to vector<8x8xf32>
    %171 = arith.subf %167, %170 : vector<8x8xf32>
    %172 = math.exp %171 : vector<8x8xf32>
    %cst_67 = arith.constant dense<0.000000e+00> : vector<8xf32>
    %173 = vector.multi_reduction <add>, %172, %cst_67 [1] : vector<8x8xf32> to vector<8xf32>
    %174 = vector.shape_cast %173 : vector<8xf32> to vector<8x1xf32>
    %175 = tpu.reciprocal %174 {approx = true} : vector<8x1xf32> -> vector<8x1xf32>
    %176 = vector.broadcast %175 : vector<8x1xf32> to vector<8x8xf32>
    %177 = arith.mulf %172, %176 : vector<8x8xf32>
    %cst_68 = arith.constant dense<0.000000e+00> : vector<8xf32>
    %178 = vector.multi_reduction <add>, %177, %cst_68 [0] : vector<8x8xf32> to vector<8xf32>
    %179 = vector.shape_cast %178 : vector<8xf32> to vector<1x8xf32>
    %cst_69 = arith.constant 1.250000e-01 : f32
    %180 = vector.broadcast %cst_69 : f32 to vector<1x8xf32>
    %181 = arith.mulf %179, %180 : vector<1x8xf32>
    %182 = arith.truncf %181 : vector<1x8xf32> to vector<1x8xbf16>
    %cst_70 = arith.constant dense<0.000000e+00> : vector<1x12xf32>
    %183 = tpu.matmul %182, %164, %cst_70 {dimension_numbers = #tpu.dot_dimension_numbers<[1], [0], [0], [1], [0, 0, 1, 1], [], []>} : vector<1x8xbf16>, vector<8x12xbf16>, vector<1x12xf32> -> vector<1x12xf32>
    %184 = vector.extract_strided_slice %32 {offsets = [0, 9], sizes = [8, 3], strides = [1, 1]} : vector<8x12xf32> to vector<8x3xf32>
    %185 = vector.extract_strided_slice %34 {offsets = [0, 9], sizes = [8, 3], strides = [1, 1]} : vector<8x12xf32> to vector<8x3xf32>
    %186 = arith.mulf %184, %71 : vector<8x3xf32>
    %187 = arith.mulf %185, %72 : vector<8x3xf32>
    %188 = arith.subf %186, %187 : vector<8x3xf32>
    %189 = arith.mulf %185, %71 : vector<8x3xf32>
    %190 = arith.mulf %184, %72 : vector<8x3xf32>
    %191 = arith.addf %189, %190 : vector<8x3xf32>
    %192 = vector.extract_strided_slice %30 {offsets = [0, 18], sizes = [8, 6], strides = [1, 1]} : vector<8x24xf32> to vector<8x6xf32>
    %193 = tpu.concatenate %192, %188, %191 in 1 : vector<8x6xf32>, vector<8x3xf32>, vector<8x3xf32> -> vector<8x12xf32>
    %194 = arith.truncf %193 : vector<8x12xf32> to vector<8x12xbf16>
    %195 = vector.extract_strided_slice %63 {offsets = [0, 18], sizes = [8, 6], strides = [1, 1]} : vector<8x24xf32> to vector<8x6xf32>
    %196 = tpu.concatenate %195, %75, %78 in 1 : vector<8x6xf32>, vector<8x3xf32>, vector<8x3xf32> -> vector<8x12xf32>
    %197 = arith.truncf %196 : vector<8x12xf32> to vector<8x12xbf16>
    %198 = vector.extract_strided_slice %66 {offsets = [0, 36], sizes = [8, 12], strides = [1, 1]} : vector<8x48xbf16> to vector<8x12xbf16>
    %cst_71 = arith.constant dense<0.000000e+00> : vector<8x8xf32>
    %199 = tpu.matmul %194, %197, %cst_71 {dimension_numbers = #tpu.dot_dimension_numbers<[1], [1], [0], [0], [0, 0, 1, 0], [], []>} : vector<8x12xbf16>, vector<8x12xbf16>, vector<8x8xf32> -> vector<8x8xf32>
    %cst_72 = arith.constant -1.000000e+30 : f32
    %200 = vector.broadcast %cst_72 : f32 to vector<8x8xf32>
    %201 = arith.select %81, %199, %200 : vector<8x8xi1>, vector<8x8xf32>
    %cst_73 = arith.constant dense<0xFF800000> : vector<8xf32>
    %202 = vector.multi_reduction <maximumf>, %201, %cst_73 [1] : vector<8x8xf32> to vector<8xf32>
    %203 = vector.shape_cast %202 : vector<8xf32> to vector<8x1xf32>
    %204 = vector.broadcast %203 : vector<8x1xf32> to vector<8x8xf32>
    %205 = arith.subf %201, %204 : vector<8x8xf32>
    %206 = math.exp %205 : vector<8x8xf32>
    %cst_74 = arith.constant dense<0.000000e+00> : vector<8xf32>
    %207 = vector.multi_reduction <add>, %206, %cst_74 [1] : vector<8x8xf32> to vector<8xf32>
    %208 = vector.shape_cast %207 : vector<8xf32> to vector<8x1xf32>
    %209 = tpu.reciprocal %208 {approx = true} : vector<8x1xf32> -> vector<8x1xf32>
    %210 = vector.broadcast %209 : vector<8x1xf32> to vector<8x8xf32>
    %211 = arith.mulf %206, %210 : vector<8x8xf32>
    %cst_75 = arith.constant dense<0.000000e+00> : vector<8xf32>
    %212 = vector.multi_reduction <add>, %211, %cst_75 [0] : vector<8x8xf32> to vector<8xf32>
    %213 = vector.shape_cast %212 : vector<8xf32> to vector<1x8xf32>
    %cst_76 = arith.constant 1.250000e-01 : f32
    %214 = vector.broadcast %cst_76 : f32 to vector<1x8xf32>
    %215 = arith.mulf %213, %214 : vector<1x8xf32>
    %216 = arith.truncf %215 : vector<1x8xf32> to vector<1x8xbf16>
    %cst_77 = arith.constant dense<0.000000e+00> : vector<1x12xf32>
    %217 = tpu.matmul %216, %198, %cst_77 {dimension_numbers = #tpu.dot_dimension_numbers<[1], [0], [0], [1], [0, 0, 1, 1], [], []>} : vector<1x8xbf16>, vector<8x12xbf16>, vector<1x12xf32> -> vector<1x12xf32>
    %218 = tpu.concatenate %115, %149, %183, %217 in 1 : vector<1x12xf32>, vector<1x12xf32>, vector<1x12xf32>, vector<1x12xf32> -> vector<1x48xf32>
    %219 = arith.truncf %218 : vector<1x48xf32> to vector<1x48xbf16>
    %c0_78 = arith.constant 0 : index
    %c0_79 = arith.constant 0 : index
    %220 = vector.load %arg15[%c0_78, %c0_79] : memref<48x48xbf16, #tpu.memory_space<vmem>>, vector<48x48xbf16>
    %cst_80 = arith.constant dense<0.000000e+00> : vector<1x48xf32>
    %221 = tpu.matmul %219, %220, %cst_80 {dimension_numbers = #tpu.dot_dimension_numbers<[1], [0], [0], [1], [0, 0, 1, 1], [], []>} : vector<1x48xbf16>, vector<48x48xbf16>, vector<1x48xf32> -> vector<1x48xf32>
    %c0_81 = arith.constant 0 : index
    %c0_82 = arith.constant 0 : index
    %c0_83 = arith.constant 0 : index
    %222 = vector.load %arg18[%c0_81, %c0_82, %c0_83] : memref<1x1x48xf32, #tpu.memory_space<vmem>>, vector<1x1x48xf32>
    %223 = vector.shape_cast %222 : vector<1x1x48xf32> to vector<1x48xf32>
    %224 = vector.shape_cast %221 : vector<1x48xf32> to vector<1x1x48xf32>
    tpu.vector_store %arg18[%c0_81, %c0_82, %c0_83], %224 {strides = array<i32>} : memref<1x1x48xf32, #tpu.memory_space<vmem>>, vector<1x1x48xf32>,
    return
  }
  func.func @transform_0(%arg0: i32) -> (i32, i32, i32) {
    %c0_i32 = arith.constant 0 : i32
    %c0_i32_0 = arith.constant 0 : i32
    %c0_i32_1 = arith.constant 0 : i32
    return %arg0, %c0_i32, %c0_i32_0 : i32, i32, i32
  }
  func.func @transform_1(%arg0: i32) -> (i32, i32) {
    %c0_i32 = arith.constant 0 : i32
    %c0_i32_0 = arith.constant 0 : i32
    %c0_i32_1 = arith.constant 0 : i32
    return %c0_i32, %c0_i32_0 : i32, i32
  }
  func.func @transform_2(%arg0: i32) -> (i32, i32) {
    %c0_i32 = arith.constant 0 : i32
    %c0_i32_0 = arith.constant 0 : i32
    %c0_i32_1 = arith.constant 0 : i32
    return %c0_i32, %c0_i32_0 : i32, i32
  }
  func.func @transform_3(%arg0: i32) -> (i32, i32) {
    %c0_i32 = arith.constant 0 : i32
    %c0_i32_0 = arith.constant 0 : i32
    %c0_i32_1 = arith.constant 0 : i32
    return %c0_i32, %c0_i32_0 : i32, i32
  }
  func.func @transform_4(%arg0: i32) -> (i32, i32) {
    %c0_i32 = arith.constant 0 : i32
    %c0_i32_0 = arith.constant 0 : i32
    %c0_i32_1 = arith.constant 0 : i32
    return %c0_i32, %c0_i32_0 : i32, i32
  }
  func.func @transform_5(%arg0: i32) -> (i32, i32) {
    %c0_i32 = arith.constant 0 : i32
    %c0_i32_0 = arith.constant 0 : i32
    %c0_i32_1 = arith.constant 0 : i32
    return %c0_i32, %c0_i32_0 : i32, i32
  }
  func.func @transform_6(%arg0: i32) -> (i32, i32) {
    %c0_i32 = arith.constant 0 : i32
    %c0_i32_0 = arith.constant 0 : i32
    %c0_i32_1 = arith.constant 0 : i32
    return %c0_i32, %c0_i32_0 : i32, i32
  }
  func.func @transform_7(%arg0: i32) -> (i32, i32) {
    %c0_i32 = arith.constant 0 : i32
    %c0_i32_0 = arith.constant 0 : i32
    %c0_i32_1 = arith.constant 0 : i32
    return %c0_i32, %c0_i32_0 : i32, i32
  }
  func.func @transform_8(%arg0: i32) -> (i32, i32) {
    %c0_i32 = arith.constant 0 : i32
    %c0_i32_0 = arith.constant 0 : i32
    %c0_i32_1 = arith.constant 0 : i32
    return %c0_i32, %c0_i32_0 : i32, i32
  }
  func.func @transform_9(%arg0: i32) -> (i32, i32) {
    %c0_i32 = arith.constant 0 : i32
    %c0_i32_0 = arith.constant 0 : i32
    %c0_i32_1 = arith.constant 0 : i32
    return %c0_i32, %c0_i32_0 : i32, i32
  }
  func.func @transform_10(%arg0: i32) -> (i32, i32) {
    %c0_i32 = arith.constant 0 : i32
    %c0_i32_0 = arith.constant 0 : i32
    %c0_i32_1 = arith.constant 0 : i32
    return %c0_i32, %c0_i32_0 : i32, i32
  }
  func.func @transform_11(%arg0: i32) -> (i32, i32) {
    %c0_i32 = arith.constant 0 : i32
    %c0_i32_0 = arith.constant 0 : i32
    %c0_i32_1 = arith.constant 0 : i32
    return %c0_i32, %c0_i32_0 : i32, i32
  }
  func.func @transform_12(%arg0: i32) -> (i32, i32) {
    %c0_i32 = arith.constant 0 : i32
    %c0_i32_0 = arith.constant 0 : i32
    %c0_i32_1 = arith.constant 0 : i32
    return %c0_i32, %c0_i32_0 : i32, i32
  }
  func.func @transform_13(%arg0: i32) -> (i32, i32) {
    %c0_i32 = arith.constant 0 : i32
    %c0_i32_0 = arith.constant 0 : i32
    %c0_i32_1 = arith.constant 0 : i32
    return %c0_i32, %c0_i32_0 : i32, i32
  }
  func.func @transform_14(%arg0: i32) -> (i32, i32) {
    %c0_i32 = arith.constant 0 : i32
    %c0_i32_0 = arith.constant 0 : i32
    %c0_i32_1 = arith.constant 0 : i32
    return %c0_i32, %c0_i32_0 : i32, i32
  }
  func.func @transform_15(%arg0: i32) -> (i32, i32) {
    %c0_i32 = arith.constant 0 : i32
    %c0_i32_0 = arith.constant 0 : i32
    %c0_i32_1 = arith.constant 0 : i32
    return %c0_i32, %c0_i32_0 : i32, i32
  }
  func.func @transform_16(%arg0: i32) -> (i32, i32) {
    %c0_i32 = arith.constant 0 : i32
    %c0_i32_0 = arith.constant 0 : i32
    %c0_i32_1 = arith.constant 0 : i32
    return %c0_i32, %c0_i32_0 : i32, i32
  }
  func.func @transform_17(%arg0: i32) -> (i32, i32, i32) {
    %c0_i32 = arith.constant 0 : i32
    %c0_i32_0 = arith.constant 0 : i32
    %c0_i32_1 = arith.constant 0 : i32
    return %arg0, %c0_i32, %c0_i32_0 : i32, i32, i32
  }
}

</mosaic_0001>

<llo_original>
// kernel: tpu_custom_call.1
$region0: #{tpu_custom_call.1}
  #allocation0 [shape = 'u32[]', space=smem, size = 0x4, offset = 0x4, fixed_abs, tag = 'smem constant byte address 0x4 - core index']
  #allocation1 [shape = 'u32[144,128]{1,0:T(1,128)}', space=vmem, size = 0x12000, scoped, tag = 'internal scratch']
  %s0 = inlined_call_operand.hbm [shape: bf16[2,8,48], index: 0, kind: input, shape index: {}]
  %s1 = inlined_call_operand.hbm [shape: bf16[48,24], index: 1, kind: input, shape index: {}]
  %s2 = inlined_call_operand.hbm [shape: f32[1,24], index: 2, kind: input, shape index: {}]
  %s3 = inlined_call_operand.hbm [shape: f32[1,24], index: 3, kind: input, shape index: {}]
  %s4 = inlined_call_operand.hbm [shape: bf16[24,24], index: 4, kind: input, shape index: {}]
  %s5 = inlined_call_operand.hbm [shape: bf16[24,12], index: 5, kind: input, shape index: {}]
  %s6 = inlined_call_operand.hbm [shape: bf16[24,12], index: 6, kind: input, shape index: {}]
  %s7 = inlined_call_operand.hbm [shape: bf16[48,32], index: 7, kind: input, shape index: {}]
  %s8 = inlined_call_operand.hbm [shape: f32[1,32], index: 8, kind: input, shape index: {}]
  %s9 = inlined_call_operand.hbm [shape: f32[1,32], index: 9, kind: input, shape index: {}]
  %s10 = inlined_call_operand.hbm [shape: bf16[48,3], index: 10, kind: input, shape index: {}]
  %s11 = inlined_call_operand.hbm [shape: bf16[48,3], index: 11, kind: input, shape index: {}]
  %s12 = inlined_call_operand.hbm [shape: bf16[32,24], index: 12, kind: input, shape index: {}]
  %s13 = inlined_call_operand.hbm [shape: bf16[32,48], index: 13, kind: input, shape index: {}]
  %s14 = inlined_call_operand.hbm [shape: bf16[48,48], index: 14, kind: input, shape index: {}]
  %s15 = inlined_call_operand.hbm [shape: f32[8,3], index: 15, kind: input, shape index: {}]
  %s16 = inlined_call_operand.hbm [shape: f32[8,3], index: 16, kind: input, shape index: {}]
  %s17 = inlined_call_operand.hbm [shape: f32[2,1,48], index: 17, kind: output, shape index: {}]
  %s18 = sld [smem:[#allocation0]]
  $region169: #{tpu_custom_call.1} parent=0
    _
  %s20 = ssub.s32 1, %s18
  %s21 = scalar_select 0, %s20, %s18
  $region1: #{tpu_custom_call.1} parent=0
    #allocation2 [shape = 'u8[4096]{0}', space=vmem, size = 0x1000, scoped, tag = 'input window, operand 0']
    #allocation3 [shape = 's32[2]{0}', space=sflag, size = 0x8, scoped, tag = 'scoped memory for tpu_custom_call.1']
    #allocation4 [shape = 's32[2]{0}', space=sflag, size = 0x8, scoped, tag = 'scoped memory for tpu_custom_call.1']
    #allocation5 [shape = 'u8[12288]{0}', space=vmem, size = 0x3000, scoped, tag = 'input window, operand 1, single buffered']
    #allocation6 [shape = 's32[1]{0}', space=sflag, size = 0x4, scoped, tag = 'scoped memory for tpu_custom_call.1']
    #allocation7 [shape = 'u8[512]{0}', space=vmem, size = 0x400, scoped, tag = 'input window, operand 2, single buffered']
    #allocation8 [shape = 'u8[512]{0}', space=vmem, size = 0x400, scoped, tag = 'input window, operand 3, single buffered']
    #allocation9 [shape = 's32[1]{0}', space=sflag, size = 0x4, scoped, tag = 'scoped memory for tpu_custom_call.1']
    #allocation10 [shape = 'u8[6144]{0}', space=vmem, size = 0x1800, scoped, tag = 'input window, operand 4, single buffered']
    #allocation11 [shape = 'u8[6144]{0}', space=vmem, size = 0x1800, scoped, tag = 'input window, operand 5, single buffered']
    #allocation12 [shape = 's32[1]{0}', space=sflag, size = 0x4, scoped, tag = 'scoped memory for tpu_custom_call.1']
    #allocation13 [shape = 'u8[6144]{0}', space=vmem, size = 0x1800, scoped, tag = 'input window, operand 6, single buffered']
    #allocation14 [shape = 'u8[12288]{0}', space=vmem, size = 0x3000, scoped, tag = 'input window, operand 7, single buffered']
    #allocation15 [shape = 's32[1]{0}', space=sflag, size = 0x4, scoped, tag = 'scoped memory for tpu_custom_call.1']
    #allocation16 [shape = 'u8[512]{0}', space=vmem, size = 0x400, scoped, tag = 'input window, operand 8, single buffered']
    #allocation17 [shape = 'u8[512]{0}', space=vmem, size = 0x400, scoped, tag = 'input window, operand 9, single buffered']
    #allocation18 [shape = 's32[1]{0}', space=sflag, size = 0x4, scoped, tag = 'scoped memory for tpu_custom_call.1']
    #allocation19 [shape = 'u8[12288]{0}', space=vmem, size = 0x3000, scoped, tag = 'input window, operand 10, single buffered']
    #allocation20 [shape = 'u8[12288]{0}', space=vmem, size = 0x3000, scoped, tag = 'input window, operand 11, single buffered']
    #allocation21 [shape = 's32[1]{0}', space=sflag, size = 0x4, scoped, tag = 'scoped memory for tpu_custom_call.1']
    #allocation22 [shape = 'u8[8192]{0}', space=vmem, size = 0x2000, scoped, tag = 'input window, operand 12, single buffered']
    #allocation23 [shape = 'u8[8192]{0}', space=vmem, size = 0x2000, scoped, tag = 'input window, operand 13, single buffered']
    #allocation24 [shape = 's32[1]{0}', space=sflag, size = 0x4, scoped, tag = 'scoped memory for tpu_custom_call.1']
    #allocation25 [shape = 'u8[12288]{0}', space=vmem, size = 0x3000, scoped, tag = 'input window, operand 14, single buffered']
    #allocation26 [shape = 'u8[4096]{0}', space=vmem, size = 0x1000, scoped, tag = 'input window, operand 15, single buffered']
    #allocation27 [shape = 's32[1]{0}', space=sflag, size = 0x4, scoped, tag = 'scoped memory for tpu_custom_call.1']
    #allocation28 [shape = 'u8[4096]{0}', space=vmem, size = 0x1000, scoped, tag = 'input window, operand 16, single buffered']
    #allocation29 [shape = 'u8[1024]{0}', space=vmem, size = 0x400, scoped, tag = 'output window, operand 0']
    %22 = vsyncpa [#allocation3], 0
    %s23 = scalar_lea.sflag [#allocation3], 1
    %24 = vsyncpa %s23, 0
    %25 = vsyncpa [#allocation6], 0
    %26 = vsyncpa [#allocation9], 0
    %27 = vsyncpa [#allocation12], 0
    %28 = vsyncpa [#allocation15], 0
    %29 = vsyncpa [#allocation18], 0
    %30 = vsyncpa [#allocation21], 0
    %31 = vsyncpa [#allocation24], 0
    %32 = vsyncpa [#allocation27], 0
    %33 = vsyncpa [#allocation4], 0
    %s34 = scalar_lea.sflag [#allocation4], 1
    %35 = vsyncpa %s34, 0
    loop: start=0, step=1, limit=4
    $region2: #{tpu_custom_call.1} parent=1 // loop_pre_header
      _
    $region3: #{tpu_custom_call.1} parent=1 // loop_header
      %s37 = sphi 0, %s41
      %p38 = scmp.ge.s32.totalorder %s37, 4
      %s47 = sphi 0, %s49
      %s50 = sphi 0, %s47
      %s51 = sphi 0, %s50
      %s67 = sphi 0, %s51
      %s71 = sphi 0, %s71
      %s73 = sphi 0, %s71
      %s74 = sphi 0, %s73
      %s88 = sphi 0, %s74
      %s92 = sphi 0, %s92
      %s94 = sphi 0, %s92
      %s95 = sphi 0, %s94
      %s109 = sphi 0, %s95
      %s113 = sphi 0, %s113
      %s115 = sphi 0, %s113
      %s116 = sphi 0, %s115
      %s130 = sphi 0, %s116
      %s134 = sphi 0, %s134
      %s136 = sphi 0, %s134
      %s137 = sphi 0, %s136
      %s151 = sphi 0, %s137
      %s155 = sphi 0, %s155
      %s157 = sphi 0, %s155
      %s158 = sphi 0, %s157
      %s172 = sphi 0, %s158
      %s176 = sphi 0, %s176
      %s178 = sphi 0, %s176
      %s179 = sphi 0, %s178
      %s193 = sphi 0, %s179
      %s197 = sphi 0, %s197
      %s199 = sphi 0, %s197
      %s200 = sphi 0, %s199
      %s214 = sphi 0, %s200
      %s218 = sphi 0, %s218
      %s220 = sphi 0, %s218
      %s221 = sphi 0, %s220
      %s235 = sphi 0, %s221
      %s239 = sphi 0, %s239
      %s241 = sphi 0, %s239
      %s242 = sphi 0, %s241
      %s256 = sphi 0, %s242
      %s260 = sphi 0, %s260
      %s262 = sphi 0, %s260
      %s263 = sphi 0, %s262
      %s277 = sphi 0, %s263
      %s281 = sphi 0, %s281
      %s283 = sphi 0, %s281
      %s284 = sphi 0, %s283
      %s298 = sphi 0, %s284
      %s302 = sphi 0, %s302
      %s304 = sphi 0, %s302
      %s305 = sphi 0, %s304
      %s319 = sphi 0, %s305
      %s323 = sphi 0, %s323
      %s325 = sphi 0, %s323
      %s326 = sphi 0, %s325
      %s340 = sphi 0, %s326
      %s344 = sphi 0, %s344
      %s346 = sphi 0, %s344
      %s347 = sphi 0, %s346
      %s361 = sphi 0, %s347
      %s365 = sphi 0, %s365
      %s367 = sphi 0, %s365
      %s368 = sphi 0, %s367
      %s382 = sphi 0, %s368
      %s386 = sphi 0, %s386
      %s388 = sphi 0, %s386
      %s389 = sphi 0, %s388
      %s403 = sphi 0, %s389
      %s409 = sphi 0, %s411
      %s412 = sphi 0, %s409
      %s413 = sphi 0, %s412
      %s429 = sphi 0, %s413
    $region4: #{tpu_custom_call.1} parent=1 // loop_header_branch
      %40 = sbr.rel (%p38) target = $region8
    $region5: #{tpu_custom_call.1} parent=1 // loop_body
      %s42 = ssub.s32 %s37, 1
      %s43 = ssub.s32 %s37, 2
      %s44 = sadd.s32 %s37, 1
      %s45 = ssub.s32 %s37, %s44
      %p46 = scmp.eq.s32.totalorder %s45, 0
      %s48 = sadd.s32 %s47, 1
      %s49 = scalar_select %p46, %s47, %s48
      %p52 = pneg %p46
      %p53 = scmp.eq.s32.totalorder %s37, 1
      %p54 = por %p52, %p53
      %p55 = scmp.ne.s32.totalorder %s47, %s50
      %p56 = scmp.eq.s32.totalorder %s37, 0
      %p57 = por %p55, %p56
      %p58 = scmp.ne.s32.totalorder %s47, %s50
      %p59 = scmp.eq.s32.totalorder %s42, 1
      %p60 = por %p58, %p59
      %p61 = scmp.ne.s32.totalorder %s50, %s51
      %p62 = scmp.eq.s32.totalorder %s42, 0
      %p63 = por %p61, %p62
      %p64 = scmp.ne.s32.totalorder %s50, %s51
      %p65 = scmp.eq.s32.totalorder %s43, 1
      %p66 = por %p64, %p65
      %p68 = scmp.ne.s32.totalorder %s51, %s67
      %p69 = scmp.eq.s32.totalorder %s43, 0
      %p70 = por %p68, %p69
      %s72 = sadd.s32 %s71, 1
      %p75 = scmp.eq.s32.totalorder %s37, 1
      %p76 = scmp.ne.s32.totalorder %s71, %s73
      %p77 = scmp.eq.s32.totalorder %s37, 0
      %p78 = por %p76, %p77
      %p79 = scmp.ne.s32.totalorder %s71, %s73
      %p80 = scmp.eq.s32.totalorder %s42, 1
      %p81 = por %p79, %p80
      %p82 = scmp.ne.s32.totalorder %s73, %s74
      %p83 = scmp.eq.s32.totalorder %s42, 0
      %p84 = por %p82, %p83
      %p85 = scmp.ne.s32.totalorder %s73, %s74
      %p86 = scmp.eq.s32.totalorder %s43, 1
      %p87 = por %p85, %p86
      %p89 = scmp.ne.s32.totalorder %s74, %s88
      %p90 = scmp.eq.s32.totalorder %s43, 0
      %p91 = por %p89, %p90
      %s93 = sadd.s32 %s92, 1
      %p96 = scmp.eq.s32.totalorder %s37, 1
      %p97 = scmp.ne.s32.totalorder %s92, %s94
      %p98 = scmp.eq.s32.totalorder %s37, 0
      %p99 = por %p97, %p98
      %p100 = scmp.ne.s32.totalorder %s92, %s94
      %p101 = scmp.eq.s32.totalorder %s42, 1
      %p102 = por %p100, %p101
      %p103 = scmp.ne.s32.totalorder %s94, %s95
      %p104 = scmp.eq.s32.totalorder %s42, 0
      %p105 = por %p103, %p104
      %p106 = scmp.ne.s32.totalorder %s94, %s95
      %p107 = scmp.eq.s32.totalorder %s43, 1
      %p108 = por %p106, %p107
      %p110 = scmp.ne.s32.totalorder %s95, %s109
      %p111 = scmp.eq.s32.totalorder %s43, 0
      %p112 = por %p110, %p111
      %s114 = sadd.s32 %s113, 1
      %p117 = scmp.eq.s32.totalorder %s37, 1
      %p118 = scmp.ne.s32.totalorder %s113, %s115
      %p119 = scmp.eq.s32.totalorder %s37, 0
      %p120 = por %p118, %p119
      %p121 = scmp.ne.s32.totalorder %s113, %s115
      %p122 = scmp.eq.s32.totalorder %s42, 1
      %p123 = por %p121, %p122
      %p124 = scmp.ne.s32.totalorder %s115, %s116
      %p125 = scmp.eq.s32.totalorder %s42, 0
      %p126 = por %p124, %p125
      %p127 = scmp.ne.s32.totalorder %s115, %s116
      %p128 = scmp.eq.s32.totalorder %s43, 1
      %p129 = por %p127, %p128
      %p131 = scmp.ne.s32.totalorder %s116, %s130
      %p132 = scmp.eq.s32.totalorder %s43, 0
      %p133 = por %p131, %p132
      %s135 = sadd.s32 %s134, 1
      %p138 = scmp.eq.s32.totalorder %s37, 1
      %p139 = scmp.ne.s32.totalorder %s134, %s136
      %p140 = scmp.eq.s32.totalorder %s37, 0
      %p141 = por %p139, %p140
      %p142 = scmp.ne.s32.totalorder %s134, %s136
      %p143 = scmp.eq.s32.totalorder %s42, 1
      %p144 = por %p142, %p143
      %p145 = scmp.ne.s32.totalorder %s136, %s137
      %p146 = scmp.eq.s32.totalorder %s42, 0
      %p147 = por %p145, %p146
      %p148 = scmp.ne.s32.totalorder %s136, %s137
      %p149 = scmp.eq.s32.totalorder %s43, 1
      %p150 = por %p148, %p149
      %p152 = scmp.ne.s32.totalorder %s137, %s151
      %p153 = scmp.eq.s32.totalorder %s43, 0
      %p154 = por %p152, %p153
      %s156 = sadd.s32 %s155, 1
      %p159 = scmp.eq.s32.totalorder %s37, 1
      %p160 = scmp.ne.s32.totalorder %s155, %s157
      %p161 = scmp.eq.s32.totalorder %s37, 0
      %p162 = por %p160, %p161
      %p163 = scmp.ne.s32.totalorder %s155, %s157
      %p164 = scmp.eq.s32.totalorder %s42, 1
      %p165 = por %p163, %p164
      %p166 = scmp.ne.s32.totalorder %s157, %s158
      %p167 = scmp.eq.s32.totalorder %s42, 0
      %p168 = por %p166, %p167
      %p169 = scmp.ne.s32.totalorder %s157, %s158
      %p170 = scmp.eq.s32.totalorder %s43, 1
      %p171 = por %p169, %p170
      %p173 = scmp.ne.s32.totalorder %s158, %s172
      %p174 = scmp.eq.s32.totalorder %s43, 0
      %p175 = por %p173, %p174
      %s177 = sadd.s32 %s176, 1
      %p180 = scmp.eq.s32.totalorder %s37, 1
      %p181 = scmp.ne.s32.totalorder %s176, %s178
      %p182 = scmp.eq.s32.totalorder %s37, 0
      %p183 = por %p181, %p182
      %p184 = scmp.ne.s32.totalorder %s176, %s178
      %p185 = scmp.eq.s32.totalorder %s42, 1
      %p186 = por %p184, %p185
      %p187 = scmp.ne.s32.totalorder %s178, %s179
      %p188 = scmp.eq.s32.totalorder %s42, 0
      %p189 = por %p187, %p188
      %p190 = scmp.ne.s32.totalorder %s178, %s179
      %p191 = scmp.eq.s32.totalorder %s43, 1
      %p192 = por %p190, %p191
      %p194 = scmp.ne.s32.totalorder %s179, %s193
      %p195 = scmp.eq.s32.totalorder %s43, 0
      %p196 = por %p194, %p195
      %s198 = sadd.s32 %s197, 1
      %p201 = scmp.eq.s32.totalorder %s37, 1
      %p202 = scmp.ne.s32.totalorder %s197, %s199
      %p203 = scmp.eq.s32.totalorder %s37, 0
      %p204 = por %p202, %p203
      %p205 = scmp.ne.s32.totalorder %s197, %s199
      %p206 = scmp.eq.s32.totalorder %s42, 1
      %p207 = por %p205, %p206
      %p208 = scmp.ne.s32.totalorder %s199, %s200
      %p209 = scmp.eq.s32.totalorder %s42, 0
      %p210 = por %p208, %p209
      %p211 = scmp.ne.s32.totalorder %s199, %s200
      %p212 = scmp.eq.s32.totalorder %s43, 1
      %p213 = por %p211, %p212
      %p215 = scmp.ne.s32.totalorder %s200, %s214
      %p216 = scmp.eq.s32.totalorder %s43, 0
      %p217 = por %p215, %p216
      %s219 = sadd.s32 %s218, 1
      %p222 = scmp.eq.s32.totalorder %s37, 1
      %p223 = scmp.ne.s32.totalorder %s218, %s220
      %p224 = scmp.eq.s32.totalorder %s37, 0
      %p225 = por %p223, %p224
      %p226 = scmp.ne.s32.totalorder %s218, %s220
      %p227 = scmp.eq.s32.totalorder %s42, 1
      %p228 = por %p226, %p227
      %p229 = scmp.ne.s32.totalorder %s220, %s221
      %p230 = scmp.eq.s32.totalorder %s42, 0
      %p231 = por %p229, %p230
      %p232 = scmp.ne.s32.totalorder %s220, %s221
      %p233 = scmp.eq.s32.totalorder %s43, 1
      %p234 = por %p232, %p233
      %p236 = scmp.ne.s32.totalorder %s221, %s235
      %p237 = scmp.eq.s32.totalorder %s43, 0
      %p238 = por %p236, %p237
      %s240 = sadd.s32 %s239, 1
      %p243 = scmp.eq.s32.totalorder %s37, 1
      %p244 = scmp.ne.s32.totalorder %s239, %s241
      %p245 = scmp.eq.s32.totalorder %s37, 0
      %p246 = por %p244, %p245
      %p247 = scmp.ne.s32.totalorder %s239, %s241
      %p248 = scmp.eq.s32.totalorder %s42, 1
      %p249 = por %p247, %p248
      %p250 = scmp.ne.s32.totalorder %s241, %s242
      %p251 = scmp.eq.s32.totalorder %s42, 0
      %p252 = por %p250, %p251
      %p253 = scmp.ne.s32.totalorder %s241, %s242
      %p254 = scmp.eq.s32.totalorder %s43, 1
      %p255 = por %p253, %p254
      %p257 = scmp.ne.s32.totalorder %s242, %s256
      %p258 = scmp.eq.s32.totalorder %s43, 0
      %p259 = por %p257, %p258
      %s261 = sadd.s32 %s260, 1
      %p264 = scmp.eq.s32.totalorder %s37, 1
      %p265 = scmp.ne.s32.totalorder %s260, %s262
      %p266 = scmp.eq.s32.totalorder %s37, 0
      %p267 = por %p265, %p266
      %p268 = scmp.ne.s32.totalorder %s260, %s262
      %p269 = scmp.eq.s32.totalorder %s42, 1
      %p270 = por %p268, %p269
      %p271 = scmp.ne.s32.totalorder %s262, %s263
      %p272 = scmp.eq.s32.totalorder %s42, 0
      %p273 = por %p271, %p272
      %p274 = scmp.ne.s32.totalorder %s262, %s263
      %p275 = scmp.eq.s32.totalorder %s43, 1
      %p276 = por %p274, %p275
      %p278 = scmp.ne.s32.totalorder %s263, %s277
      %p279 = scmp.eq.s32.totalorder %s43, 0
      %p280 = por %p278, %p279
      %s282 = sadd.s32 %s281, 1
      %p285 = scmp.eq.s32.totalorder %s37, 1
      %p286 = scmp.ne.s32.totalorder %s281, %s283
      %p287 = scmp.eq.s32.totalorder %s37, 0
      %p288 = por %p286, %p287
      %p289 = scmp.ne.s32.totalorder %s281, %s283
      %p290 = scmp.eq.s32.totalorder %s42, 1
      %p291 = por %p289, %p290
      %p292 = scmp.ne.s32.totalorder %s283, %s284
      %p293 = scmp.eq.s32.totalorder %s42, 0
      %p294 = por %p292, %p293
      %p295 = scmp.ne.s32.totalorder %s283, %s284
      %p296 = scmp.eq.s32.totalorder %s43, 1
      %p297 = por %p295, %p296
      %p299 = scmp.ne.s32.totalorder %s284, %s298
      %p300 = scmp.eq.s32.totalorder %s43, 0
      %p301 = por %p299, %p300
      %s303 = sadd.s32 %s302, 1
      %p306 = scmp.eq.s32.totalorder %s37, 1
      %p307 = scmp.ne.s32.totalorder %s302, %s304
      %p308 = scmp.eq.s32.totalorder %s37, 0
      %p309 = por %p307, %p308
      %p310 = scmp.ne.s32.totalorder %s302, %s304
      %p311 = scmp.eq.s32.totalorder %s42, 1
      %p312 = por %p310, %p311
      %p313 = scmp.ne.s32.totalorder %s304, %s305
      %p314 = scmp.eq.s32.totalorder %s42, 0
      %p315 = por %p313, %p314
      %p316 = scmp.ne.s32.totalorder %s304, %s305
      %p317 = scmp.eq.s32.totalorder %s43, 1
      %p318 = por %p316, %p317
      %p320 = scmp.ne.s32.totalorder %s305, %s319
      %p321 = scmp.eq.s32.totalorder %s43, 0
      %p322 = por %p320, %p321
      %s324 = sadd.s32 %s323, 1
      %p327 = scmp.eq.s32.totalorder %s37, 1
      %p328 = scmp.ne.s32.totalorder %s323, %s325
      %p329 = scmp.eq.s32.totalorder %s37, 0
      %p330 = por %p328, %p329
      %p331 = scmp.ne.s32.totalorder %s323, %s325
      %p332 = scmp.eq.s32.totalorder %s42, 1
      %p333 = por %p331, %p332
      %p334 = scmp.ne.s32.totalorder %s325, %s326
      %p335 = scmp.eq.s32.totalorder %s42, 0
      %p336 = por %p334, %p335
      %p337 = scmp.ne.s32.totalorder %s325, %s326
      %p338 = scmp.eq.s32.totalorder %s43, 1
      %p339 = por %p337, %p338
      %p341 = scmp.ne.s32.totalorder %s326, %s340
      %p342 = scmp.eq.s32.totalorder %s43, 0
      %p343 = por %p341, %p342
      %s345 = sadd.s32 %s344, 1
      %p348 = scmp.eq.s32.totalorder %s37, 1
      %p349 = scmp.ne.s32.totalorder %s344, %s346
      %p350 = scmp.eq.s32.totalorder %s37, 0
      %p351 = por %p349, %p350
      %p352 = scmp.ne.s32.totalorder %s344, %s346
      %p353 = scmp.eq.s32.totalorder %s42, 1
      %p354 = por %p352, %p353
      %p355 = scmp.ne.s32.totalorder %s346, %s347
      %p356 = scmp.eq.s32.totalorder %s42, 0
      %p357 = por %p355, %p356
      %p358 = scmp.ne.s32.totalorder %s346, %s347
      %p359 = scmp.eq.s32.totalorder %s43, 1
      %p360 = por %p358, %p359
      %p362 = scmp.ne.s32.totalorder %s347, %s361
      %p363 = scmp.eq.s32.totalorder %s43, 0
      %p364 = por %p362, %p363
      %s366 = sadd.s32 %s365, 1
      %p369 = scmp.eq.s32.totalorder %s37, 1
      %p370 = scmp.ne.s32.totalorder %s365, %s367
      %p371 = scmp.eq.s32.totalorder %s37, 0
      %p372 = por %p370, %p371
      %p373 = scmp.ne.s32.totalorder %s365, %s367
      %p374 = scmp.eq.s32.totalorder %s42, 1
      %p375 = por %p373, %p374
      %p376 = scmp.ne.s32.totalorder %s367, %s368
      %p377 = scmp.eq.s32.totalorder %s42, 0
      %p378 = por %p376, %p377
      %p379 = scmp.ne.s32.totalorder %s367, %s368
      %p380 = scmp.eq.s32.totalorder %s43, 1
      %p381 = por %p379, %p380
      %p383 = scmp.ne.s32.totalorder %s368, %s382
      %p384 = scmp.eq.s32.totalorder %s43, 0
      %p385 = por %p383, %p384
      %s387 = sadd.s32 %s386, 1
      %p390 = scmp.eq.s32.totalorder %s37, 1
      %p391 = scmp.ne.s32.totalorder %s386, %s388
      %p392 = scmp.eq.s32.totalorder %s37, 0
      %p393 = por %p391, %p392
      %p394 = scmp.ne.s32.totalorder %s386, %s388
      %p395 = scmp.eq.s32.totalorder %s42, 1
      %p396 = por %p394, %p395
      %p397 = scmp.ne.s32.totalorder %s388, %s389
      %p398 = scmp.eq.s32.totalorder %s42, 0
      %p399 = por %p397, %p398
      %p400 = scmp.ne.s32.totalorder %s388, %s389
      %p401 = scmp.eq.s32.totalorder %s43, 1
      %p402 = por %p400, %p401
      %p404 = scmp.ne.s32.totalorder %s389, %s403
      %p405 = scmp.eq.s32.totalorder %s43, 0
      %p406 = por %p404, %p405
      %s407 = ssub.s32 %s37, %s44
      %p408 = scmp.eq.s32.totalorder %s407, 0
      %s410 = sadd.s32 %s409, 1
      %s411 = scalar_select %p408, %s409, %s410
      %p414 = pneg %p408
      %p415 = scmp.eq.s32.totalorder %s37, 1
      %p416 = por %p414, %p415
      %p417 = scmp.ne.s32.totalorder %s409, %s412
      %p418 = scmp.eq.s32.totalorder %s37, 0
      %p419 = por %p417, %p418
      %p420 = scmp.ne.s32.totalorder %s409, %s412
      %p421 = scmp.eq.s32.totalorder %s42, 1
      %p422 = por %p420, %p421
      %p423 = scmp.ne.s32.totalorder %s412, %s413
      %p424 = scmp.eq.s32.totalorder %s42, 0
      %p425 = por %p423, %p424
      %p426 = scmp.ne.s32.totalorder %s412, %s413
      %p427 = scmp.eq.s32.totalorder %s43, 1
      %p428 = por %p426, %p427
      %p430 = scmp.ne.s32.totalorder %s413, %s429
      %p431 = scmp.eq.s32.totalorder %s43, 0
      %p432 = por %p430, %p431
      %p433 = scmp.le.s32.totalorder 1, %s37
      %p434 = scmp.lt.s32.totalorder %s37, 3
      %p435 = pnand %p433, %p434
      %p436 = pneg %p435
      // Predicated region
      $region9: #{tpu_custom_call.1} parent=5 // pred_check
        _
      $region10: #{tpu_custom_call.1} parent=5 // pred_check_branch
        %438 = sbr.rel (%p435) target = $region12
      $region11: #{tpu_custom_call.1} parent=5 // pred_region
        %s439 = ssub.s32 %s37, 1
        // Predicated region
        $region13: #{tpu_custom_call.1} parent=11 // pred_check
          %p440 = pneg %p84
        $region14: #{tpu_custom_call.1} parent=11 // pred_check_branch
          %442 = sbr.rel (%p440) target = $region16
        $region15: #{tpu_custom_call.1} parent=11 // pred_region
          %s444 = ssub.s32 384, 384
          %445 = vsyncadd [#allocation6], %s444
          %s446 = sshll.u32 [#allocation5], 4
          %s447 = int_to_ptr.vmem [resolvable:$true] %s446
          %452 = dma.hbm_to_vmem [thread:$0]  %s1, 384, %s447, [#allocation6], 64, 64, 4
        $region16: #{tpu_custom_call.1} parent=11 // pred_fallthru
          _
        // Predicated region
        $region17: #{tpu_custom_call.1} parent=11 // pred_check
          %p453 = pneg %p105
        $region18: #{tpu_custom_call.1} parent=11 // pred_check_branch
          %455 = sbr.rel (%p453) target = $region20
        $region19: #{tpu_custom_call.1} parent=11 // pred_region
          %s457 = ssub.s32 16, 16
          %458 = vsyncadd [#allocation6], %s457
          %s460 = sshll.u32 [#allocation7], 4
          %s461 = int_to_ptr.vmem [resolvable:$true] %s460
          %463 = dma.hbm_to_vmem [thread:$0]  %s2, 16, %s461, [#allocation6]
        $region20: #{tpu_custom_call.1} parent=11 // pred_fallthru
          _
        // Predicated region
        $region21: #{tpu_custom_call.1} parent=11 // pred_check
          %p464 = pneg %p126
        $region22: #{tpu_custom_call.1} parent=11 // pred_check_branch
          %466 = sbr.rel (%p464) target = $region24
        $region23: #{tpu_custom_call.1} parent=11 // pred_region
          %s468 = ssub.s32 16, 16
          %469 = vsyncadd [#allocation9], %s468
          %s471 = sshll.u32 [#allocation8], 4
          %s472 = int_to_ptr.vmem [resolvable:$true] %s471
          %474 = dma.hbm_to_vmem [thread:$0]  %s3, 16, %s472, [#allocation9]
        $region24: #{tpu_custom_call.1} parent=11 // pred_fallthru
          _
        // Predicated region
        $region25: #{tpu_custom_call.1} parent=11 // pred_check
          %p475 = pneg %p147
        $region26: #{tpu_custom_call.1} parent=11 // pred_check_branch
          %477 = sbr.rel (%p475) target = $region28
        $region27: #{tpu_custom_call.1} parent=11 // pred_region
          %s479 = ssub.s32 192, 192
          %480 = vsyncadd [#allocation9], %s479
          %s481 = sshll.u32 [#allocation10], 4
          %s482 = int_to_ptr.vmem [resolvable:$true] %s481
          %487 = dma.hbm_to_vmem [thread:$0]  %s4, 192, %s482, [#allocation9], 64, 64, 4
        $region28: #{tpu_custom_call.1} parent=11 // pred_fallthru
          _
        // Predicated region
        $region29: #{tpu_custom_call.1} parent=11 // pred_check
          %p488 = pneg %p168
        $region30: #{tpu_custom_call.1} parent=11 // pred_check_branch
          %490 = sbr.rel (%p488) target = $region32
        $region31: #{tpu_custom_call.1} parent=11 // pred_region
          %s492 = ssub.s32 192, 192
          %493 = vsyncadd [#allocation12], %s492
          %s494 = sshll.u32 [#allocation11], 4
          %s495 = int_to_ptr.vmem [resolvable:$true] %s494
          %500 = dma.hbm_to_vmem [thread:$0]  %s5, 192, %s495, [#allocation12], 64, 64, 4
        $region32: #{tpu_custom_call.1} parent=11 // pred_fallthru
          _
        // Predicated region
        $region33: #{tpu_custom_call.1} parent=11 // pred_check
          %p501 = pneg %p189
        $region34: #{tpu_custom_call.1} parent=11 // pred_check_branch
          %503 = sbr.rel (%p501) target = $region36
        $region35: #{tpu_custom_call.1} parent=11 // pred_region
          %s505 = ssub.s32 192, 192
          %506 = vsyncadd [#allocation12], %s505
          %s507 = sshll.u32 [#allocation13], 4
          %s508 = int_to_ptr.vmem [resolvable:$true] %s507
          %513 = dma.hbm_to_vmem [thread:$0]  %s6, 192, %s508, [#allocation12], 64, 64, 4
        $region36: #{tpu_custom_call.1} parent=11 // pred_fallthru
          _
        // Predicated region
        $region37: #{tpu_custom_call.1} parent=11 // pred_check
          %p514 = pneg %p210
        $region38: #{tpu_custom_call.1} parent=11 // pred_check_branch
          %516 = sbr.rel (%p514) target = $region40
        $region39: #{tpu_custom_call.1} parent=11 // pred_region
          %s518 = ssub.s32 384, 384
          %519 = vsyncadd [#allocation15], %s518
          %s520 = sshll.u32 [#allocation14], 4
          %s521 = int_to_ptr.vmem [resolvable:$true] %s520
          %526 = dma.hbm_to_vmem [thread:$0]  %s7, 384, %s521, [#allocation15], 64, 64, 4
        $region40: #{tpu_custom_call.1} parent=11 // pred_fallthru
          _
        // Predicated region
        $region41: #{tpu_custom_call.1} parent=11 // pred_check
          %p527 = pneg %p231
        $region42: #{tpu_custom_call.1} parent=11 // pred_check_branch
          %529 = sbr.rel (%p527) target = $region44
        $region43: #{tpu_custom_call.1} parent=11 // pred_region
          %s531 = ssub.s32 16, 16
          %532 = vsyncadd [#allocation15], %s531
          %s534 = sshll.u32 [#allocation16], 4
          %s535 = int_to_ptr.vmem [resolvable:$true] %s534
          %537 = dma.hbm_to_vmem [thread:$0]  %s8, 16, %s535, [#allocation15]
        $region44: #{tpu_custom_call.1} parent=11 // pred_fallthru
          _
        // Predicated region
        $region45: #{tpu_custom_call.1} parent=11 // pred_check
          %p538 = pneg %p252
        $region46: #{tpu_custom_call.1} parent=11 // pred_check_branch
          %540 = sbr.rel (%p538) target = $region48
        $region47: #{tpu_custom_call.1} parent=11 // pred_region
          %s542 = ssub.s32 16, 16
          %543 = vsyncadd [#allocation18], %s542
          %s545 = sshll.u32 [#allocation17], 4
          %s546 = int_to_ptr.vmem [resolvable:$true] %s545
          %548 = dma.hbm_to_vmem [thread:$0]  %s9, 16, %s546, [#allocation18]
        $region48: #{tpu_custom_call.1} parent=11 // pred_fallthru
          _
        // Predicated region
        $region49: #{tpu_custom_call.1} parent=11 // pred_check
          %p549 = pneg %p273
        $region50: #{tpu_custom_call.1} parent=11 // pred_check_branch
          %551 = sbr.rel (%p549) target = $region52
        $region51: #{tpu_custom_call.1} parent=11 // pred_region
          %s553 = ssub.s32 384, 384
          %554 = vsyncadd [#allocation18], %s553
          %s555 = sshll.u32 [#allocation19], 4
          %s556 = int_to_ptr.vmem [resolvable:$true] %s555
          %561 = dma.hbm_to_vmem [thread:$0]  %s10, 384, %s556, [#allocation18], 64, 64, 4
        $region52: #{tpu_custom_call.1} parent=11 // pred_fallthru
          _
        // Predicated region
        $region53: #{tpu_custom_call.1} parent=11 // pred_check
          %p562 = pneg %p294
        $region54: #{tpu_custom_call.1} parent=11 // pred_check_branch
          %564 = sbr.rel (%p562) target = $region56
        $region55: #{tpu_custom_call.1} parent=11 // pred_region
          %s566 = ssub.s32 384, 384
          %567 = vsyncadd [#allocation21], %s566
          %s568 = sshll.u32 [#allocation20], 4
          %s569 = int_to_ptr.vmem [resolvable:$true] %s568
          %574 = dma.hbm_to_vmem [thread:$0]  %s11, 384, %s569, [#allocation21], 64, 64, 4
        $region56: #{tpu_custom_call.1} parent=11 // pred_fallthru
          _
        // Predicated region
        $region57: #{tpu_custom_call.1} parent=11 // pred_check
          %p575 = pneg %p315
        $region58: #{tpu_custom_call.1} parent=11 // pred_check_branch
          %577 = sbr.rel (%p575) target = $region60
        $region59: #{tpu_custom_call.1} parent=11 // pred_region
          %s579 = ssub.s32 256, 256
          %580 = vsyncadd [#allocation21], %s579
          %s581 = sshll.u32 [#allocation22], 4
          %s582 = int_to_ptr.vmem [resolvable:$true] %s581
          %587 = dma.hbm_to_vmem [thread:$0]  %s12, 256, %s582, [#allocation21], 64, 64, 4
        $region60: #{tpu_custom_call.1} parent=11 // pred_fallthru
          _
        // Predicated region
        $region61: #{tpu_custom_call.1} parent=11 // pred_check
          %p588 = pneg %p336
        $region62: #{tpu_custom_call.1} parent=11 // pred_check_branch
          %590 = sbr.rel (%p588) target = $region64
        $region63: #{tpu_custom_call.1} parent=11 // pred_region
          %s592 = ssub.s32 256, 256
          %593 = vsyncadd [#allocation24], %s592
          %s594 = sshll.u32 [#allocation23], 4
          %s595 = int_to_ptr.vmem [resolvable:$true] %s594
          %600 = dma.hbm_to_vmem [thread:$0]  %s13, 256, %s595, [#allocation24], 64, 64, 4
        $region64: #{tpu_custom_call.1} parent=11 // pred_fallthru
          _
        // Predicated region
        $region65: #{tpu_custom_call.1} parent=11 // pred_check
          %p601 = pneg %p357
        $region66: #{tpu_custom_call.1} parent=11 // pred_check_branch
          %603 = sbr.rel (%p601) target = $region68
        $region67: #{tpu_custom_call.1} parent=11 // pred_region
          %s605 = ssub.s32 384, 384
          %606 = vsyncadd [#allocation24], %s605
          %s607 = sshll.u32 [#allocation25], 4
          %s608 = int_to_ptr.vmem [resolvable:$true] %s607
          %613 = dma.hbm_to_vmem [thread:$0]  %s14, 384, %s608, [#allocation24], 64, 64, 4
        $region68: #{tpu_custom_call.1} parent=11 // pred_fallthru
          _
        // Predicated region
        $region69: #{tpu_custom_call.1} parent=11 // pred_check
          %p614 = pneg %p378
        $region70: #{tpu_custom_call.1} parent=11 // pred_check_branch
          %616 = sbr.rel (%p614) target = $region72
        $region71: #{tpu_custom_call.1} parent=11 // pred_region
          %s618 = ssub.s32 128, 128
          %619 = vsyncadd [#allocation27], %s618
          %s621 = sshll.u32 [#allocation26], 4
          %s622 = int_to_ptr.vmem [resolvable:$true] %s621
          %624 = dma.hbm_to_vmem [thread:$0]  %s15, 128, %s622, [#allocation27]
        $region72: #{tpu_custom_call.1} parent=11 // pred_fallthru
          _
        // Predicated region
        $region73: #{tpu_custom_call.1} parent=11 // pred_check
          %p625 = pneg %p399
        $region74: #{tpu_custom_call.1} parent=11 // pred_check_branch
          %627 = sbr.rel (%p625) target = $region76
        $region75: #{tpu_custom_call.1} parent=11 // pred_region
          %s629 = ssub.s32 128, 128
          %630 = vsyncadd [#allocation27], %s629
          %s632 = sshll.u32 [#allocation28], 4
          %s633 = int_to_ptr.vmem [resolvable:$true] %s632
          %635 = dma.hbm_to_vmem [thread:$0]  %s16, 128, %s633, [#allocation27]
        $region76: #{tpu_custom_call.1} parent=11 // pred_fallthru
          _
      $region12: #{tpu_custom_call.1} parent=5 // pred_fallthru
        _
      %p636 = scmp.lt.s32.totalorder %s37, 2
      // Predicated region
      $region77: #{tpu_custom_call.1} parent=5 // pred_check
        %p637 = pneg %p636
      $region78: #{tpu_custom_call.1} parent=5 // pred_check_branch
        %639 = sbr.rel (%p637) target = $region80
      $region79: #{tpu_custom_call.1} parent=5 // pred_region
        // Predicated region
        $region81: #{tpu_custom_call.1} parent=79 // pred_check
          %p640 = pneg %p57
        $region82: #{tpu_custom_call.1} parent=79 // pred_check_branch
          %642 = sbr.rel (%p640) target = $region84
        $region83: #{tpu_custom_call.1} parent=79 // pred_region
          %s643 = sand.u32 %s47, 1
          %s644 = scalar_lea.sflag [#allocation3], %s643
          %s645 = sand.u32 %s47, 1
          %s646 = smul.addr %s645, 4
          %s647 = scalar_lea.vmem [#allocation2], %s646
          %s649 = ssub.s32 64, 64
          %650 = vsyncadd %s644, %s649
          %s651 = smul.addr %s37, 64
          %s652 = scalar_lea.hbm %s0, %s651
          %s654 = sshll.u32 %s647, 4
          %s655 = int_to_ptr.vmem [resolvable:$true] %s654
          %657 = dma.hbm_to_vmem [thread:$0]  %s652, 64, %s655, %s644
        $region84: #{tpu_custom_call.1} parent=79 // pred_fallthru
          _
      $region80: #{tpu_custom_call.1} parent=5 // pred_fallthru
        _
      %p658 = scmp.le.s32.totalorder 1, %s37
      %p659 = scmp.lt.s32.totalorder %s37, 3
      %p660 = pnand %p658, %p659
      %p661 = pneg %p660
      // Predicated region
      $region85: #{tpu_custom_call.1} parent=5 // pred_check
        _
      $region86: #{tpu_custom_call.1} parent=5 // pred_check_branch
        %663 = sbr.rel (%p660) target = $region88
      $region87: #{tpu_custom_call.1} parent=5 // pred_region
        %s664 = ssub.s32 %s37, 1
        %s665 = sand.u32 %s50, 1
        %s666 = scalar_lea.sflag [#allocation3], %s665
        %s667 = sand.u32 %s50, 1
        %s668 = smul.addr %s667, 4
        %s669 = scalar_lea.vmem [#allocation2], %s668
        // Predicated region
        $region89: #{tpu_custom_call.1} parent=87 // pred_check
          %p670 = pneg %p63
        $region90: #{tpu_custom_call.1} parent=87 // pred_check_branch
          %672 = sbr.rel (%p670) target = $region92
        $region91: #{tpu_custom_call.1} parent=87 // pred_region
          %673 = dma.done %s666, 64
        $region92: #{tpu_custom_call.1} parent=87 // pred_fallthru
          _
        // Predicated region
        $region93: #{tpu_custom_call.1} parent=87 // pred_check
          %p674 = pneg %p84
        $region94: #{tpu_custom_call.1} parent=87 // pred_check_branch
          %676 = sbr.rel (%p674) target = $region96
        $region95: #{tpu_custom_call.1} parent=87 // pred_region
          %677 = dma.done [#allocation6], 384
        $region96: #{tpu_custom_call.1} parent=87 // pred_fallthru
          _
        // Predicated region
        $region97: #{tpu_custom_call.1} parent=87 // pred_check
          %p678 = pneg %p105
        $region98: #{tpu_custom_call.1} parent=87 // pred_check_branch
          %680 = sbr.rel (%p678) target = $region100
        $region99: #{tpu_custom_call.1} parent=87 // pred_region
          %681 = dma.done [#allocation6], 16
        $region100: #{tpu_custom_call.1} parent=87 // pred_fallthru
          _
        // Predicated region
        $region101: #{tpu_custom_call.1} parent=87 // pred_check
          %p682 = pneg %p126
        $region102: #{tpu_custom_call.1} parent=87 // pred_check_branch
          %684 = sbr.rel (%p682) target = $region104
        $region103: #{tpu_custom_call.1} parent=87 // pred_region
          %685 = dma.done [#allocation9], 16
        $region104: #{tpu_custom_call.1} parent=87 // pred_fallthru
          _
        // Predicated region
        $region105: #{tpu_custom_call.1} parent=87 // pred_check
          %p686 = pneg %p147
        $region106: #{tpu_custom_call.1} parent=87 // pred_check_branch
          %688 = sbr.rel (%p686) target = $region108
        $region107: #{tpu_custom_call.1} parent=87 // pred_region
          %689 = dma.done [#allocation9], 192
        $region108: #{tpu_custom_call.1} parent=87 // pred_fallthru
          _
        // Predicated region
        $region109: #{tpu_custom_call.1} parent=87 // pred_check
          %p690 = pneg %p168
        $region110: #{tpu_custom_call.1} parent=87 // pred_check_branch
          %692 = sbr.rel (%p690) target = $region112
        $region111: #{tpu_custom_call.1} parent=87 // pred_region
          %693 = dma.done [#allocation12], 192
        $region112: #{tpu_custom_call.1} parent=87 // pred_fallthru
          _
        // Predicated region
        $region113: #{tpu_custom_call.1} parent=87 // pred_check
          %p694 = pneg %p189
        $region114: #{tpu_custom_call.1} parent=87 // pred_check_branch
          %696 = sbr.rel (%p694) target = $region116
        $region115: #{tpu_custom_call.1} parent=87 // pred_region
          %697 = dma.done [#allocation12], 192
        $region116: #{tpu_custom_call.1} parent=87 // pred_fallthru
          _
        // Predicated region
        $region117: #{tpu_custom_call.1} parent=87 // pred_check
          %p698 = pneg %p210
        $region118: #{tpu_custom_call.1} parent=87 // pred_check_branch
          %700 = sbr.rel (%p698) target = $region120
        $region119: #{tpu_custom_call.1} parent=87 // pred_region
          %701 = dma.done [#allocation15], 384
        $region120: #{tpu_custom_call.1} parent=87 // pred_fallthru
          _
        // Predicated region
        $region121: #{tpu_custom_call.1} parent=87 // pred_check
          %p702 = pneg %p231
        $region122: #{tpu_custom_call.1} parent=87 // pred_check_branch
          %704 = sbr.rel (%p702) target = $region124
        $region123: #{tpu_custom_call.1} parent=87 // pred_region
          %705 = dma.done [#allocation15], 16
        $region124: #{tpu_custom_call.1} parent=87 // pred_fallthru
          _
        // Predicated region
        $region125: #{tpu_custom_call.1} parent=87 // pred_check
          %p706 = pneg %p252
        $region126: #{tpu_custom_call.1} parent=87 // pred_check_branch
          %708 = sbr.rel (%p706) target = $region128
        $region127: #{tpu_custom_call.1} parent=87 // pred_region
          %709 = dma.done [#allocation18], 16
        $region128: #{tpu_custom_call.1} parent=87 // pred_fallthru
          _
        // Predicated region
        $region129: #{tpu_custom_call.1} parent=87 // pred_check
          %p710 = pneg %p273
        $region130: #{tpu_custom_call.1} parent=87 // pred_check_branch
          %712 = sbr.rel (%p710) target = $region132
        $region131: #{tpu_custom_call.1} parent=87 // pred_region
          %713 = dma.done [#allocation18], 384
        $region132: #{tpu_custom_call.1} parent=87 // pred_fallthru
          _
        // Predicated region
        $region133: #{tpu_custom_call.1} parent=87 // pred_check
          %p714 = pneg %p294
        $region134: #{tpu_custom_call.1} parent=87 // pred_check_branch
          %716 = sbr.rel (%p714) target = $region136
        $region135: #{tpu_custom_call.1} parent=87 // pred_region
          %717 = dma.done [#allocation21], 384
        $region136: #{tpu_custom_call.1} parent=87 // pred_fallthru
          _
        // Predicated region
        $region137: #{tpu_custom_call.1} parent=87 // pred_check
          %p718 = pneg %p315
        $region138: #{tpu_custom_call.1} parent=87 // pred_check_branch
          %720 = sbr.rel (%p718) target = $region140
        $region139: #{tpu_custom_call.1} parent=87 // pred_region
          %721 = dma.done [#allocation21], 256
        $region140: #{tpu_custom_call.1} parent=87 // pred_fallthru
          _
        // Predicated region
        $region141: #{tpu_custom_call.1} parent=87 // pred_check
          %p722 = pneg %p336
        $region142: #{tpu_custom_call.1} parent=87 // pred_check_branch
          %724 = sbr.rel (%p722) target = $region144
        $region143: #{tpu_custom_call.1} parent=87 // pred_region
          %725 = dma.done [#allocation24], 256
        $region144: #{tpu_custom_call.1} parent=87 // pred_fallthru
          _
        // Predicated region
        $region145: #{tpu_custom_call.1} parent=87 // pred_check
          %p726 = pneg %p357
        $region146: #{tpu_custom_call.1} parent=87 // pred_check_branch
          %728 = sbr.rel (%p726) target = $region148
        $region147: #{tpu_custom_call.1} parent=87 // pred_region
          %729 = dma.done [#allocation24], 384
        $region148: #{tpu_custom_call.1} parent=87 // pred_fallthru
          _
        // Predicated region
        $region149: #{tpu_custom_call.1} parent=87 // pred_check
          %p730 = pneg %p378
        $region150: #{tpu_custom_call.1} parent=87 // pred_check_branch
          %732 = sbr.rel (%p730) target = $region152
        $region151: #{tpu_custom_call.1} parent=87 // pred_region
          %733 = dma.done [#allocation27], 128
        $region152: #{tpu_custom_call.1} parent=87 // pred_fallthru
          _
        // Predicated region
        $region153: #{tpu_custom_call.1} parent=87 // pred_check
          %p734 = pneg %p399
        $region154: #{tpu_custom_call.1} parent=87 // pred_check_branch
          %736 = sbr.rel (%p734) target = $region156
        $region155: #{tpu_custom_call.1} parent=87 // pred_region
          %737 = dma.done [#allocation27], 128
        $region156: #{tpu_custom_call.1} parent=87 // pred_fallthru
          _
        %s738 = sand.u32 %s50, 1
        %s739 = scalar_lea.sflag [#allocation3], %s738
        %s740 = sand.u32 %s50, 1
        %s741 = smul.addr %s740, 4
        %s742 = scalar_lea.vmem [#allocation2], %s741
        %p743 = pneg %p63
        %p744 = pneg %p60
        %p745 = pneg %p84
        %p746 = pneg %p81
        %p747 = pneg %p105
        %p748 = pneg %p102
        %p749 = pneg %p126
        %p750 = pneg %p123
        %p751 = pneg %p147
        %p752 = pneg %p144
        %p753 = pneg %p168
        %p754 = pneg %p165
        %p755 = pneg %p189
        %p756 = pneg %p186
        %p757 = pneg %p210
        %p758 = pneg %p207
        %p759 = pneg %p231
        %p760 = pneg %p228
        %p761 = pneg %p252
        %p762 = pneg %p249
        %p763 = pneg %p273
        %p764 = pneg %p270
        %p765 = pneg %p294
        %p766 = pneg %p291
        %p767 = pneg %p315
        %p768 = pneg %p312
        %p769 = pneg %p336
        %p770 = pneg %p333
        %p771 = pneg %p357
        %p772 = pneg %p354
        %p773 = pneg %p378
        %p774 = pneg %p375
        %p775 = pneg %p399
        %p776 = pneg %p396
        %p777 = pneg %p425
        %p778 = pneg %p422
        %s779 = sand.u32 %s412, 1
        %s780 = scalar_lea.sflag [#allocation4], %s779
        %s781 = sand.u32 %s412, 1
        %s782 = scalar_lea.vmem [#allocation29], %s781
        %v784 = vld [vmem:[%s669] sm:$0xf]
        %v785 = vld [vmem:[#allocation5] sm:$0xf]
        %v786 = vld [vmem:[#allocation5 + $0x4] sm:$0xf]
        %v787 = vld [vmem:[#allocation5 + $0x8] sm:$0xf]
        %v788 = vld [vmem:[#allocation5 + $0xc] sm:$0xf]
        %v789 = vld [vmem:[#allocation5 + $0x10] sm:$0xf]
        %v790 = vld [vmem:[#allocation5 + $0x14] sm:$0xf]
        %v797 = vunpack.c.l.b16 %v785
        %v798 = vunpack.c.l.b16 %v786
        %v799 = vunpack.c.l.b16 %v787
        %v800 = vunpack.c.l.b16 %v788
        %v801 = vunpack.c.l.b16 %v789
        %v802 = vunpack.c.l.b16 %v790
        %v803 = vpack.c.b16 %v798, %v797
        %v804 = vpack.c.b16 %v800, %v799
        %v805 = vpack.c.b16 %v802, %v801
        %vm809 = vcmask 392192
        %v811 = vsel %vm809, %v784, 0
        %813 = vmatprep.subr.bf16.mxu0 0
        %814 = vmatpush1.bf16.msra.mxu0 %v803
        %815 = vmatprep.subr.bf16.mxu0 0
        %816 = vmatpush1.bf16.msra.mxu0 %v804
        %817 = vmatprep.subr.bf16.mxu0 0
        %818 = vmatpush1.bf16.msra.mxu0 %v805
        %819 = vmatprep.subr.bf16.mxu0 0
        %820 = vmatpush1.bf16.msra.mxu0 0
        %821 = vmatprep.subr.bf16.mxu0 0
        %822 = vmatpush1.bf16.msra.mxu0 0
        %823 = vmatprep.subr.bf16.mxu0 0
        %824 = vmatpush1.bf16.msra.mxu0 0
        %825 = vmatprep.subr.bf16.mxu0 0
        %826 = vmatpush1.bf16.msra.mxu0 0
        %827 = vmatprep.subr.bf16.mxu0 0
        %828 = vmatpush1.bf16.msra.mxu0 0
        %829 = vmatprep.subr.bf16.mxu0 0
        %830 = vmatpush1.bf16.msra.mxu0 0
        %831 = vmatprep.subr.bf16.mxu0 0
        %832 = vmatpush1.bf16.msra.mxu0 0
        %833 = vmatprep.subr.bf16.mxu0 0
        %834 = vmatpush1.bf16.msra.mxu0 0
        %835 = vmatprep.subr.bf16.mxu0 0
        %836 = vmatpush1.bf16.msra.mxu0 0
        %837 = vmatprep.subr.bf16.mxu0 0
        %838 = vmatpush1.bf16.msra.mxu0 0
        %839 = vmatprep.subr.bf16.mxu0 0
        %840 = vmatpush1.bf16.msra.mxu0 0
        %841 = vmatprep.subr.bf16.mxu0 0
        %842 = vmatpush1.bf16.msra.mxu0 0
        %843 = vmatprep.subr.bf16.mxu0 0
        %844 = vmatpush1.bf16.msra.mxu0 0
        %845 = vmatprep.mubr.bf16.mxu0 0
        %846 = vmatmul.mubr.bf16.gmra.mrb[0].mxu0 %v811
        %v847 = vpop.f32.mrb[0].mxu0
        %v848 = vadd.f32 0.0, %v847
        %v849 = vpop.f32.mrb[0].mxu0
        %v850 = vpop.f32.mrb[0].mxu0
        %v851 = vpop.f32.mrb[0].mxu0
        %852 = vdwg.mxu0
        %v853 = vld [vmem:[#allocation7] sm:$0x1]
        %v854 = vld [vmem:[#allocation8] sm:$0x1]
        %vm855 = vcmask 195584
        %v856 = vsel %vm855, %v848, 0.0
        %857 = vadd.xlane.f32.xlu0 %v856
        %v858 = vpop.xlane.xlu0 %857
        %v859 = vrcp.pop 24.0
        %v860 = vmul.f32 %v858, %v859
        %v861 = vsub.f32 %v848, %v860
        %v862 = vmul.f32 %v861, %v861
        %v863 = vsel %vm855, %v862, 0.0
        %864 = vadd.xlane.f32.xlu0 %v863
        %v865 = vpop.xlane.xlu0 %864
        %v866 = vmul.f32 %v865, %v859
        %v867 = vadd.f32 %v866, 1e-05
        %v868 = vrsqrt.pop %v867
        %v869 = vmul.f32 %v861, %v868
        %v871 = vlaneseq
        %v872 = vshrl.u32 %v871, 7
        %v873 = vsub.s32 0, %v872
        %v874 = vrot.slane %v853, %v873
        %v876 = vmul.f32 %v869, %v874
        %v878 = vlaneseq
        %v879 = vshrl.u32 %v878, 7
        %v880 = vsub.s32 0, %v879
        %v881 = vrot.slane %v854, %v880
        %v883 = vadd.f32 %v876, %v881
        %v884 = vpack.c.bf16 %v883, %v883
        %v885 = vld [vmem:[#allocation10] sm:$0xf]
        %v886 = vld [vmem:[#allocation10 + $0x4] sm:$0xf]
        %v887 = vld [vmem:[#allocation10 + $0x8] sm:$0xf]
        %v891 = vunpack.c.l.b16 %v885
        %v892 = vunpack.c.l.b16 %v886
        %v893 = vunpack.c.l.b16 %v887
        %v894 = vpack.c.b16 %v892, %v891
        %v895 = vpack.c.b16 %v893, %v893
        %v898 = vsel %vm855, %v884, 0
        %vm900 = vcmask 1043456
        %v902 = vsel %vm900, %v895, 0
        %904 = vmatprep.subr.bf16.mxu0 0
        %905 = vmatpush1.bf16.msra.mxu0 %v894
        %906 = vmatprep.subr.bf16.mxu0 0
        %907 = vmatpush1.bf16.msra.mxu0 %v902
        %908 = vmatprep.subr.bf16.mxu0 0
        %909 = vmatpush1.bf16.msra.mxu0 0
        %910 = vmatprep.subr.bf16.mxu0 0
        %911 = vmatpush1.bf16.msra.mxu0 0
        %912 = vmatprep.subr.bf16.mxu0 0
        %913 = vmatpush1.bf16.msra.mxu0 0
        %914 = vmatprep.subr.bf16.mxu0 0
        %915 = vmatpush1.bf16.msra.mxu0 0
        %916 = vmatprep.subr.bf16.mxu0 0
        %917 = vmatpush1.bf16.msra.mxu0 0
        %918 = vmatprep.subr.bf16.mxu0 0
        %919 = vmatpush1.bf16.msra.mxu0 0
        %920 = vmatprep.subr.bf16.mxu0 0
        %921 = vmatpush1.bf16.msra.mxu0 0
        %922 = vmatprep.subr.bf16.mxu0 0
        %923 = vmatpush1.bf16.msra.mxu0 0
        %924 = vmatprep.subr.bf16.mxu0 0
        %925 = vmatpush1.bf16.msra.mxu0 0
        %926 = vmatprep.subr.bf16.mxu0 0
        %927 = vmatpush1.bf16.msra.mxu0 0
        %928 = vmatprep.subr.bf16.mxu0 0
        %929 = vmatpush1.bf16.msra.mxu0 0
        %930 = vmatprep.subr.bf16.mxu0 0
        %931 = vmatpush1.bf16.msra.mxu0 0
        %932 = vmatprep.subr.bf16.mxu0 0
        %933 = vmatpush1.bf16.msra.mxu0 0
        %934 = vmatprep.subr.bf16.mxu0 0
        %935 = vmatpush1.bf16.msra.mxu0 0
        %936 = vmatprep.mubr.bf16.mxu0 0
        %937 = vmatmul.mubr.bf16.gmra.mrb[0].mxu0 %v898
        %v938 = vpop.f32.mrb[0].mxu0
        %v939 = vadd.f32 0.0, %v938
        %v940 = vpop.f32.mrb[0].mxu0
        %v941 = vpop.f32.mrb[0].mxu0
        %v942 = vpop.f32.mrb[0].mxu0
        %943 = vdwg.mxu0
        %v944 = vld [vmem:[#allocation11] sm:$0xf]
        %v945 = vld [vmem:[#allocation11 + $0x4] sm:$0xf]
        %v946 = vld [vmem:[#allocation11 + $0x8] sm:$0xf]
        %v950 = vunpack.c.l.b16 %v944
        %v951 = vunpack.c.l.b16 %v945
        %v952 = vunpack.c.l.b16 %v946
        %v953 = vpack.c.b16 %v951, %v950
        %v954 = vpack.c.b16 %v952, %v952
        %v957 = vsel %vm900, %v954, 0
        %959 = vmatprep.subr.bf16.mxu0 0
        %960 = vmatpush1.bf16.msra.mxu0 %v953
        %961 = vmatprep.subr.bf16.mxu0 0
        %962 = vmatpush1.bf16.msra.mxu0 %v957
        %963 = vmatprep.subr.bf16.mxu0 0
        %964 = vmatpush1.bf16.msra.mxu0 0
        %965 = vmatprep.subr.bf16.mxu0 0
        %966 = vmatpush1.bf16.msra.mxu0 0
        %967 = vmatprep.subr.bf16.mxu0 0
        %968 = vmatpush1.bf16.msra.mxu0 0
        %969 = vmatprep.subr.bf16.mxu0 0
        %970 = vmatpush1.bf16.msra.mxu0 0
        %971 = vmatprep.subr.bf16.mxu0 0
        %972 = vmatpush1.bf16.msra.mxu0 0
        %973 = vmatprep.subr.bf16.mxu0 0
        %974 = vmatpush1.bf16.msra.mxu0 0
        %975 = vmatprep.subr.bf16.mxu0 0
        %976 = vmatpush1.bf16.msra.mxu0 0
        %977 = vmatprep.subr.bf16.mxu0 0
        %978 = vmatpush1.bf16.msra.mxu0 0
        %979 = vmatprep.subr.bf16.mxu0 0
        %980 = vmatpush1.bf16.msra.mxu0 0
        %981 = vmatprep.subr.bf16.mxu0 0
        %982 = vmatpush1.bf16.msra.mxu0 0
        %983 = vmatprep.subr.bf16.mxu0 0
        %984 = vmatpush1.bf16.msra.mxu0 0
        %985 = vmatprep.subr.bf16.mxu0 0
        %986 = vmatpush1.bf16.msra.mxu0 0
        %987 = vmatprep.subr.bf16.mxu0 0
        %988 = vmatpush1.bf16.msra.mxu0 0
        %989 = vmatprep.subr.bf16.mxu0 0
        %990 = vmatpush1.bf16.msra.mxu0 0
        %991 = vmatprep.mubr.bf16.mxu0 0
        %992 = vmatmul.mubr.bf16.gmra.mrb[0].mxu0 %v898
        %v993 = vpop.f32.mrb[0].mxu0
        %v994 = vadd.f32 0.0, %v993
        %v995 = vpop.f32.mrb[0].mxu0
        %v996 = vpop.f32.mrb[0].mxu0
        %v997 = vpop.f32.mrb[0].mxu0
        %998 = vdwg.mxu0
        %v999 = vld [vmem:[#allocation13] sm:$0xf]
        %v1000 = vld [vmem:[#allocation13 + $0x4] sm:$0xf]
        %v1001 = vld [vmem:[#allocation13 + $0x8] sm:$0xf]
        %v1005 = vunpack.c.l.b16 %v999
        %v1006 = vunpack.c.l.b16 %v1000
        %v1007 = vunpack.c.l.b16 %v1001
        %v1008 = vpack.c.b16 %v1006, %v1005
        %v1009 = vpack.c.b16 %v1007, %v1007
        %v1012 = vsel %vm900, %v1009, 0
        %1014 = vmatprep.subr.bf16.mxu0 0
        %1015 = vmatpush1.bf16.msra.mxu0 %v1008
        %1016 = vmatprep.subr.bf16.mxu0 0
        %1017 = vmatpush1.bf16.msra.mxu0 %v1012
        %1018 = vmatprep.subr.bf16.mxu0 0
        %1019 = vmatpush1.bf16.msra.mxu0 0
        %1020 = vmatprep.subr.bf16.mxu0 0
        %1021 = vmatpush1.bf16.msra.mxu0 0
        %1022 = vmatprep.subr.bf16.mxu0 0
        %1023 = vmatpush1.bf16.msra.mxu0 0
        %1024 = vmatprep.subr.bf16.mxu0 0
        %1025 = vmatpush1.bf16.msra.mxu0 0
        %1026 = vmatprep.subr.bf16.mxu0 0
        %1027 = vmatpush1.bf16.msra.mxu0 0
        %1028 = vmatprep.subr.bf16.mxu0 0
        %1029 = vmatpush1.bf16.msra.mxu0 0
        %1030 = vmatprep.subr.bf16.mxu0 0
        %1031 = vmatpush1.bf16.msra.mxu0 0
        %1032 = vmatprep.subr.bf16.mxu0 0
        %1033 = vmatpush1.bf16.msra.mxu0 0
        %1034 = vmatprep.subr.bf16.mxu0 0
        %1035 = vmatpush1.bf16.msra.mxu0 0
        %1036 = vmatprep.subr.bf16.mxu0 0
        %1037 = vmatpush1.bf16.msra.mxu0 0
        %1038 = vmatprep.subr.bf16.mxu0 0
        %1039 = vmatpush1.bf16.msra.mxu0 0
        %1040 = vmatprep.subr.bf16.mxu0 0
        %1041 = vmatpush1.bf16.msra.mxu0 0
        %1042 = vmatprep.subr.bf16.mxu0 0
        %1043 = vmatpush1.bf16.msra.mxu0 0
        %1044 = vmatprep.subr.bf16.mxu0 0
        %1045 = vmatpush1.bf16.msra.mxu0 0
        %1046 = vmatprep.mubr.bf16.mxu0 0
        %1047 = vmatmul.mubr.bf16.gmra.mrb[0].mxu0 %v898
        %v1048 = vpop.f32.mrb[0].mxu0
        %v1049 = vadd.f32 0.0, %v1048
        %v1050 = vpop.f32.mrb[0].mxu0
        %v1051 = vpop.f32.mrb[0].mxu0
        %v1052 = vpop.f32.mrb[0].mxu0
        %1053 = vdwg.mxu0
        %v1054 = vld [vmem:[#allocation14] sm:$0xf]
        %v1055 = vld [vmem:[#allocation14 + $0x4] sm:$0xf]
        %v1056 = vld [vmem:[#allocation14 + $0x8] sm:$0xf]
        %v1057 = vld [vmem:[#allocation14 + $0xc] sm:$0xf]
        %v1058 = vld [vmem:[#allocation14 + $0x10] sm:$0xf]
        %v1059 = vld [vmem:[#allocation14 + $0x14] sm:$0xf]
        %v1066 = vunpack.c.l.b16 %v1054
        %v1067 = vunpack.c.l.b16 %v1055
        %v1068 = vunpack.c.l.b16 %v1056
        %v1069 = vunpack.c.l.b16 %v1057
        %v1070 = vunpack.c.l.b16 %v1058
        %v1071 = vunpack.c.l.b16 %v1059
        %v1072 = vpack.c.b16 %v1067, %v1066
        %v1073 = vpack.c.b16 %v1069, %v1068
        %v1074 = vpack.c.b16 %v1071, %v1070
        %1078 = vmatprep.subr.bf16.mxu0 0
        %1079 = vmatpush1.bf16.msra.mxu0 %v1072
        %1080 = vmatprep.subr.bf16.mxu0 0
        %1081 = vmatpush1.bf16.msra.mxu0 %v1073
        %1082 = vmatprep.subr.bf16.mxu0 0
        %1083 = vmatpush1.bf16.msra.mxu0 %v1074
        %1084 = vmatprep.subr.bf16.mxu0 0
        %1085 = vmatpush1.bf16.msra.mxu0 0
        %1086 = vmatprep.subr.bf16.mxu0 0
        %1087 = vmatpush1.bf16.msra.mxu0 0
        %1088 = vmatprep.subr.bf16.mxu0 0
        %1089 = vmatpush1.bf16.msra.mxu0 0
        %1090 = vmatprep.subr.bf16.mxu0 0
        %1091 = vmatpush1.bf16.msra.mxu0 0
        %1092 = vmatprep.subr.bf16.mxu0 0
        %1093 = vmatpush1.bf16.msra.mxu0 0
        %1094 = vmatprep.subr.bf16.mxu0 0
        %1095 = vmatpush1.bf16.msra.mxu0 0
        %1096 = vmatprep.subr.bf16.mxu0 0
        %1097 = vmatpush1.bf16.msra.mxu0 0
        %1098 = vmatprep.subr.bf16.mxu0 0
        %1099 = vmatpush1.bf16.msra.mxu0 0
        %1100 = vmatprep.subr.bf16.mxu0 0
        %1101 = vmatpush1.bf16.msra.mxu0 0
        %1102 = vmatprep.subr.bf16.mxu0 0
        %1103 = vmatpush1.bf16.msra.mxu0 0
        %1104 = vmatprep.subr.bf16.mxu0 0
        %1105 = vmatpush1.bf16.msra.mxu0 0
        %1106 = vmatprep.subr.bf16.mxu0 0
        %1107 = vmatpush1.bf16.msra.mxu0 0
        %1108 = vmatprep.subr.bf16.mxu0 0
        %1109 = vmatpush1.bf16.msra.mxu0 0
        %1110 = vmatprep.mubr.bf16.mxu0 0
        %1111 = vmatmul.mubr.bf16.gmra.mrb[0].mxu0 %v811
        %v1112 = vpop.f32.mrb[0].mxu0
        %v1113 = vadd.f32 0.0, %v1112
        %v1114 = vpop.f32.mrb[0].mxu0
        %v1115 = vpop.f32.mrb[0].mxu0
        %v1116 = vpop.f32.mrb[0].mxu0
        %1117 = vdwg.mxu0
        %v1118 = vld [vmem:[#allocation16] sm:$0x1]
        %v1119 = vld [vmem:[#allocation17] sm:$0x1]
        %vm1120 = vcmask 261120
        %v1121 = vsel %vm1120, %v1113, 0.0
        %1122 = vadd.xlane.f32.xlu0 %v1121
        %v1123 = vpop.xlane.xlu0 %1122
        %v1124 = vrcp.pop 32.0
        %v1125 = vmul.f32 %v1123, %v1124
        %v1126 = vsub.f32 %v1113, %v1125
        %v1127 = vmul.f32 %v1126, %v1126
        %v1128 = vsel %vm1120, %v1127, 0.0
        %1129 = vadd.xlane.f32.xlu0 %v1128
        %v1130 = vpop.xlane.xlu0 %1129
        %v1131 = vmul.f32 %v1130, %v1124
        %v1132 = vadd.f32 %v1131, 1e-05
        %v1133 = vrsqrt.pop %v1132
        %v1134 = vmul.f32 %v1126, %v1133
        %v1136 = vlaneseq
        %v1137 = vshrl.u32 %v1136, 7
        %v1138 = vsub.s32 0, %v1137
        %v1139 = vrot.slane %v1118, %v1138
        %v1141 = vmul.f32 %v1134, %v1139
        %v1143 = vlaneseq
        %v1144 = vshrl.u32 %v1143, 7
        %v1145 = vsub.s32 0, %v1144
        %v1146 = vrot.slane %v1119, %v1145
        %v1148 = vadd.f32 %v1141, %v1146
        %v1149 = vpack.c.bf16 %v1148, %v1148
        %v1150 = vld [vmem:[#allocation22] sm:$0xf]
        %v1151 = vld [vmem:[#allocation22 + $0x4] sm:$0xf]
        %v1152 = vld [vmem:[#allocation22 + $0x8] sm:$0xf]
        %v1153 = vld [vmem:[#allocation22 + $0xc] sm:$0xf]
        %v1158 = vunpack.c.l.b16 %v1150
        %v1159 = vunpack.c.l.b16 %v1151
        %v1160 = vunpack.c.l.b16 %v1152
        %v1161 = vunpack.c.l.b16 %v1153
        %v1162 = vpack.c.b16 %v1159, %v1158
        %v1163 = vpack.c.b16 %v1161, %v1160
        %v1167 = vsel %vm1120, %v1149, 0
        %1169 = vmatprep.subr.bf16.mxu0 0
        %1170 = vmatpush1.bf16.msra.mxu0 %v1162
        %1171 = vmatprep.subr.bf16.mxu0 0
        %1172 = vmatpush1.bf16.msra.mxu0 %v1163
        %1173 = vmatprep.subr.bf16.mxu0 0
        %1174 = vmatpush1.bf16.msra.mxu0 0
        %1175 = vmatprep.subr.bf16.mxu0 0
        %1176 = vmatpush1.bf16.msra.mxu0 0
        %1177 = vmatprep.subr.bf16.mxu0 0
        %1178 = vmatpush1.bf16.msra.mxu0 0
        %1179 = vmatprep.subr.bf16.mxu0 0
        %1180 = vmatpush1.bf16.msra.mxu0 0
        %1181 = vmatprep.subr.bf16.mxu0 0
        %1182 = vmatpush1.bf16.msra.mxu0 0
        %1183 = vmatprep.subr.bf16.mxu0 0
        %1184 = vmatpush1.bf16.msra.mxu0 0
        %1185 = vmatprep.subr.bf16.mxu0 0
        %1186 = vmatpush1.bf16.msra.mxu0 0
        %1187 = vmatprep.subr.bf16.mxu0 0
        %1188 = vmatpush1.bf16.msra.mxu0 0
        %1189 = vmatprep.subr.bf16.mxu0 0
        %1190 = vmatpush1.bf16.msra.mxu0 0
        %1191 = vmatprep.subr.bf16.mxu0 0
        %1192 = vmatpush1.bf16.msra.mxu0 0
        %1193 = vmatprep.subr.bf16.mxu0 0
        %1194 = vmatpush1.bf16.msra.mxu0 0
        %1195 = vmatprep.subr.bf16.mxu0 0
        %1196 = vmatpush1.bf16.msra.mxu0 0
        %1197 = vmatprep.subr.bf16.mxu0 0
        %1198 = vmatpush1.bf16.msra.mxu0 0
        %1199 = vmatprep.subr.bf16.mxu0 0
        %1200 = vmatpush1.bf16.msra.mxu0 0
        %1201 = vmatprep.mubr.bf16.mxu0 0
        %1202 = vmatmul.mubr.bf16.gmra.mrb[0].mxu0 %v1167
        %v1203 = vpop.f32.mrb[0].mxu0
        %v1204 = vadd.f32 0.0, %v1203
        %v1205 = vpop.f32.mrb[0].mxu0
        %v1206 = vpop.f32.mrb[0].mxu0
        %v1207 = vpop.f32.mrb[0].mxu0
        %1208 = vdwg.mxu0
        %v1209 = vld [vmem:[#allocation23] sm:$0xf]
        %v1210 = vld [vmem:[#allocation23 + $0x4] sm:$0xf]
        %v1211 = vld [vmem:[#allocation23 + $0x8] sm:$0xf]
        %v1212 = vld [vmem:[#allocation23 + $0xc] sm:$0xf]
        %v1217 = vunpack.c.l.b16 %v1209
        %v1218 = vunpack.c.l.b16 %v1210
        %v1219 = vunpack.c.l.b16 %v1211
        %v1220 = vunpack.c.l.b16 %v1212
        %v1221 = vpack.c.b16 %v1218, %v1217
        %v1222 = vpack.c.b16 %v1220, %v1219
        %1225 = vmatprep.subr.bf16.mxu0 0
        %1226 = vmatpush1.bf16.msra.mxu0 %v1221
        %1227 = vmatprep.subr.bf16.mxu0 0
        %1228 = vmatpush1.bf16.msra.mxu0 %v1222
        %1229 = vmatprep.subr.bf16.mxu0 0
        %1230 = vmatpush1.bf16.msra.mxu0 0
        %1231 = vmatprep.subr.bf16.mxu0 0
        %1232 = vmatpush1.bf16.msra.mxu0 0
        %1233 = vmatprep.subr.bf16.mxu0 0
        %1234 = vmatpush1.bf16.msra.mxu0 0
        %1235 = vmatprep.subr.bf16.mxu0 0
        %1236 = vmatpush1.bf16.msra.mxu0 0
        %1237 = vmatprep.subr.bf16.mxu0 0
        %1238 = vmatpush1.bf16.msra.mxu0 0
        %1239 = vmatprep.subr.bf16.mxu0 0
        %1240 = vmatpush1.bf16.msra.mxu0 0
        %1241 = vmatprep.subr.bf16.mxu0 0
        %1242 = vmatpush1.bf16.msra.mxu0 0
        %1243 = vmatprep.subr.bf16.mxu0 0
        %1244 = vmatpush1.bf16.msra.mxu0 0
        %1245 = vmatprep.subr.bf16.mxu0 0
        %1246 = vmatpush1.bf16.msra.mxu0 0
        %1247 = vmatprep.subr.bf16.mxu0 0
        %1248 = vmatpush1.bf16.msra.mxu0 0
        %1249 = vmatprep.subr.bf16.mxu0 0
        %1250 = vmatpush1.bf16.msra.mxu0 0
        %1251 = vmatprep.subr.bf16.mxu0 0
        %1252 = vmatpush1.bf16.msra.mxu0 0
        %1253 = vmatprep.subr.bf16.mxu0 0
        %1254 = vmatpush1.bf16.msra.mxu0 0
        %1255 = vmatprep.subr.bf16.mxu0 0
        %1256 = vmatpush1.bf16.msra.mxu0 0
        %1257 = vmatprep.mubr.bf16.mxu0 0
        %1258 = vmatmul.mubr.bf16.gmra.mrb[0].mxu0 %v1167
        %v1259 = vpop.f32.mrb[0].mxu0
        %v1260 = vadd.f32 0.0, %v1259
        %v1261 = vpop.f32.mrb[0].mxu0
        %v1262 = vpop.f32.mrb[0].mxu0
        %v1263 = vpop.f32.mrb[0].mxu0
        %1264 = vdwg.mxu0
        %v1265 = vpack.c.bf16 %v1260, %v1260
        %v1266 = vld [vmem:[#allocation19] sm:$0xf]
        %v1267 = vld [vmem:[#allocation19 + $0x4] sm:$0xf]
        %v1268 = vld [vmem:[#allocation19 + $0x8] sm:$0xf]
        %v1269 = vld [vmem:[#allocation19 + $0xc] sm:$0xf]
        %v1270 = vld [vmem:[#allocation19 + $0x10] sm:$0xf]
        %v1271 = vld [vmem:[#allocation19 + $0x14] sm:$0xf]
        %v1278 = vunpack.c.l.b16 %v1266
        %v1279 = vunpack.c.l.b16 %v1267
        %v1280 = vunpack.c.l.b16 %v1268
        %v1281 = vunpack.c.l.b16 %v1269
        %v1282 = vunpack.c.l.b16 %v1270
        %v1283 = vunpack.c.l.b16 %v1271
        %v1284 = vpack.c.b16 %v1279, %v1278
        %v1285 = vpack.c.b16 %v1281, %v1280
        %v1286 = vpack.c.b16 %v1283, %v1282
        %1290 = vmatprep.subr.bf16.mxu0 0
        %1291 = vmatpush1.bf16.msra.mxu0 %v1284
        %1292 = vmatprep.subr.bf16.mxu0 0
        %1293 = vmatpush1.bf16.msra.mxu0 %v1285
        %1294 = vmatprep.subr.bf16.mxu0 0
        %1295 = vmatpush1.bf16.msra.mxu0 %v1286
        %1296 = vmatprep.subr.bf16.mxu0 0
        %1297 = vmatpush1.bf16.msra.mxu0 0
        %1298 = vmatprep.subr.bf16.mxu0 0
        %1299 = vmatpush1.bf16.msra.mxu0 0
        %1300 = vmatprep.subr.bf16.mxu0 0
        %1301 = vmatpush1.bf16.msra.mxu0 0
        %1302 = vmatprep.subr.bf16.mxu0 0
        %1303 = vmatpush1.bf16.msra.mxu0 0
        %1304 = vmatprep.subr.bf16.mxu0 0
        %1305 = vmatpush1.bf16.msra.mxu0 0
        %1306 = vmatprep.subr.bf16.mxu0 0
        %1307 = vmatpush1.bf16.msra.mxu0 0
        %1308 = vmatprep.subr.bf16.mxu0 0
        %1309 = vmatpush1.bf16.msra.mxu0 0
        %1310 = vmatprep.subr.bf16.mxu0 0
        %1311 = vmatpush1.bf16.msra.mxu0 0
        %1312 = vmatprep.subr.bf16.mxu0 0
        %1313 = vmatpush1.bf16.msra.mxu0 0
        %1314 = vmatprep.subr.bf16.mxu0 0
        %1315 = vmatpush1.bf16.msra.mxu0 0
        %1316 = vmatprep.subr.bf16.mxu0 0
        %1317 = vmatpush1.bf16.msra.mxu0 0
        %1318 = vmatprep.subr.bf16.mxu0 0
        %1319 = vmatpush1.bf16.msra.mxu0 0
        %1320 = vmatprep.subr.bf16.mxu0 0
        %1321 = vmatpush1.bf16.msra.mxu0 0
        %1322 = vmatprep.mubr.bf16.mxu0 0
        %1323 = vmatmul.mubr.bf16.gmra.mrb[0].mxu0 %v811
        %v1324 = vpop.f32.mrb[0].mxu0
        %v1325 = vadd.f32 0.0, %v1324
        %v1326 = vpop.f32.mrb[0].mxu0
        %v1327 = vpop.f32.mrb[0].mxu0
        %v1328 = vpop.f32.mrb[0].mxu0
        %1329 = vdwg.mxu0
        %v1330 = vld [vmem:[#allocation20] sm:$0xf]
        %v1331 = vld [vmem:[#allocation20 + $0x4] sm:$0xf]
        %v1332 = vld [vmem:[#allocation20 + $0x8] sm:$0xf]
        %v1333 = vld [vmem:[#allocation20 + $0xc] sm:$0xf]
        %v1334 = vld [vmem:[#allocation20 + $0x10] sm:$0xf]
        %v1335 = vld [vmem:[#allocation20 + $0x14] sm:$0xf]
        %v1342 = vunpack.c.l.b16 %v1330
        %v1343 = vunpack.c.l.b16 %v1331
        %v1344 = vunpack.c.l.b16 %v1332
        %v1345 = vunpack.c.l.b16 %v1333
        %v1346 = vunpack.c.l.b16 %v1334
        %v1347 = vunpack.c.l.b16 %v1335
        %v1348 = vpack.c.b16 %v1343, %v1342
        %v1349 = vpack.c.b16 %v1345, %v1344
        %v1350 = vpack.c.b16 %v1347, %v1346
        %1354 = vmatprep.subr.bf16.mxu0 0
        %1355 = vmatpush1.bf16.msra.mxu0 %v1348
        %1356 = vmatprep.subr.bf16.mxu0 0
        %1357 = vmatpush1.bf16.msra.mxu0 %v1349
        %1358 = vmatprep.subr.bf16.mxu0 0
        %1359 = vmatpush1.bf16.msra.mxu0 %v1350
        %1360 = vmatprep.subr.bf16.mxu0 0
        %1361 = vmatpush1.bf16.msra.mxu0 0
        %1362 = vmatprep.subr.bf16.mxu0 0
        %1363 = vmatpush1.bf16.msra.mxu0 0
        %1364 = vmatprep.subr.bf16.mxu0 0
        %1365 = vmatpush1.bf16.msra.mxu0 0
        %1366 = vmatprep.subr.bf16.mxu0 0
        %1367 = vmatpush1.bf16.msra.mxu0 0
        %1368 = vmatprep.subr.bf16.mxu0 0
        %1369 = vmatpush1.bf16.msra.mxu0 0
        %1370 = vmatprep.subr.bf16.mxu0 0
        %1371 = vmatpush1.bf16.msra.mxu0 0
        %1372 = vmatprep.subr.bf16.mxu0 0
        %1373 = vmatpush1.bf16.msra.mxu0 0
        %1374 = vmatprep.subr.bf16.mxu0 0
        %1375 = vmatpush1.bf16.msra.mxu0 0
        %1376 = vmatprep.subr.bf16.mxu0 0
        %1377 = vmatpush1.bf16.msra.mxu0 0
        %1378 = vmatprep.subr.bf16.mxu0 0
        %1379 = vmatpush1.bf16.msra.mxu0 0
        %1380 = vmatprep.subr.bf16.mxu0 0
        %1381 = vmatpush1.bf16.msra.mxu0 0
        %1382 = vmatprep.subr.bf16.mxu0 0
        %1383 = vmatpush1.bf16.msra.mxu0 0
        %1384 = vmatprep.subr.bf16.mxu0 0
        %1385 = vmatpush1.bf16.msra.mxu0 0
        %1386 = vmatprep.mubr.bf16.mxu0 0
        %1387 = vmatmul.mubr.bf16.gmra.mrb[0].mxu0 %v811
        %v1388 = vpop.f32.mrb[0].mxu0
        %v1389 = vadd.f32 0.0, %v1388
        %v1390 = vpop.f32.mrb[0].mxu0
        %v1391 = vpop.f32.mrb[0].mxu0
        %v1392 = vpop.f32.mrb[0].mxu0
        %1393 = vdwg.mxu0
        %v1394 = vld [vmem:[#allocation26] sm:$0xff]
        %v1395 = vld [vmem:[#allocation28] sm:$0xff]
        %v1396 = vmul.f32 %v1325, %v1394
        %v1397 = vmul.f32 %v1389, %v1395
        %v1398 = vsub.f32 %v1396, %v1397
        %v1399 = vmul.f32 %v1389, %v1394
        %v1400 = vmul.f32 %v1325, %v1395
        %v1401 = vadd.f32 %v1399, %v1400
        %v1402 = vlaneseq
        %v1403 = vshrl.u32 %v1402, 7
        %v1404 = vlaneseq
        %v1405 = vand.u32 %v1404, 127
        %vm1406 = vcmp.ge.s32.totalorder %v1403, %v1405
        %v1407 = vmul.f32 %v994, %v1394
        %v1408 = vmul.f32 %v1049, %v1395
        %v1409 = vsub.f32 %v1407, %v1408
        %v1410 = vmul.f32 %v1049, %v1394
        %v1411 = vmul.f32 %v994, %v1395
        %v1412 = vadd.f32 %v1410, %v1411
        %1414 = vrot.lane.b32.xlu0 %v1409, 6
        %v1415 = vpop.permute.xlu0 %1414
        %1418 = vrot.lane.b32.xlu0 %v1412, 9
        %v1419 = vpop.permute.xlu0 %1418
        %vm1421 = vcmask 48128
        %v1422 = vsel %vm1421, %v939, %v1415
        %vm1423 = vcmask 72704
        %v1424 = vsel %vm1423, %v1422, %v1419
        %v1425 = vpack.c.bf16 %v1424, %v1424
        %1427 = vrot.lane.b32.xlu0 %v1398, 6
        %v1428 = vpop.permute.xlu0 %1427
        %1431 = vrot.lane.b32.xlu0 %v1401, 9
        %v1432 = vpop.permute.xlu0 %1431
        %v1434 = vsel %vm1421, %v1204, %v1428
        %v1435 = vsel %vm1423, %v1434, %v1432
        %v1436 = vpack.c.bf16 %v1435, %v1435
        %vm1437 = vcmask 97280
        %v1439 = vsel %vm1437, %v1425, 0
        %v1442 = vsel %vm1437, %v1436, 0
        %1444 = vmatprep.subr.bf16.mxu0 0
        %1445 = vmatpush1.bf16.xpose.msra.mxu0 %v1442
        %1446 = vmatprep.subr.bf16.mxu0 0
        %1447 = vmatpush1.bf16.xpose.msra.mxu0 0
        %1448 = vmatprep.subr.bf16.mxu0 0
        %1449 = vmatpush1.bf16.xpose.msra.mxu0 0
        %1450 = vmatprep.subr.bf16.mxu0 0
        %1451 = vmatpush1.bf16.xpose.msra.mxu0 0
        %1452 = vmatprep.subr.bf16.mxu0 0
        %1453 = vmatpush1.bf16.xpose.msra.mxu0 0
        %1454 = vmatprep.subr.bf16.mxu0 0
        %1455 = vmatpush1.bf16.xpose.msra.mxu0 0
        %1456 = vmatprep.subr.bf16.mxu0 0
        %1457 = vmatpush1.bf16.xpose.msra.mxu0 0
        %1458 = vmatprep.subr.bf16.mxu0 0
        %1459 = vmatpush1.bf16.xpose.msra.mxu0 0
        %1460 = vmatprep.subr.bf16.mxu0 0
        %1461 = vmatpush1.bf16.xpose.msra.mxu0 0
        %1462 = vmatprep.subr.bf16.mxu0 0
        %1463 = vmatpush1.bf16.xpose.msra.mxu0 0
        %1464 = vmatprep.subr.bf16.mxu0 0
        %1465 = vmatpush1.bf16.xpose.msra.mxu0 0
        %1466 = vmatprep.subr.bf16.mxu0 0
        %1467 = vmatpush1.bf16.xpose.msra.mxu0 0
        %1468 = vmatprep.subr.bf16.mxu0 0
        %1469 = vmatpush1.bf16.xpose.msra.mxu0 0
        %1470 = vmatprep.subr.bf16.mxu0 0
        %1471 = vmatpush1.bf16.xpose.msra.mxu0 0
        %1472 = vmatprep.subr.bf16.mxu0 0
        %1473 = vmatpush1.bf16.xpose.msra.mxu0 0
        %1474 = vmatprep.subr.bf16.mxu0 0
        %1475 = vmatpush1.bf16.xpose.msra.mxu0 0
        %1476 = vmatprep.mubr.bf16.mxu0 0
        %1477 = vmatmul.mubr.bf16.gmra.mrb[0].mxu0 %v1439
        %v1478 = vpop.f32.mrb[0].mxu0
        %v1479 = vadd.f32 0.0, %v1478
        %v1480 = vpop.f32.mrb[0].mxu0
        %v1481 = vpop.f32.mrb[0].mxu0
        %v1482 = vpop.f32.mrb[0].mxu0
        %1483 = vdwg.mxu0
        %v1484 = vsel %vm1406, %v1479, -1e+30
        %vm1485 = vcmask 64512
        %v1486 = vsel %vm1485, %v1484, -inf
        %1487 = vmax.xlane.f32.xlu0 %v1486
        %v1488 = vpop.xlane.xlu0 %1487
        %v1489 = vsub.f32 %v1484, %v1488
        %v1490 = vmul.f32 %v1489, 1.442695
        %v1491 = vpow.pop %v1490
        %v1492 = vsel %vm1485, %v1491, 0.0
        %1493 = vadd.xlane.f32.xlu0 %v1492
        %v1494 = vpop.xlane.xlu0 %1493
        %v1495 = vrcp.pop %v1494
        %v1496 = vmul.f32 %v1491, %v1495
        %v1497 = vsel %vm1485, %v1496, 0.0
        %v1498 = vrot.slane %v1497, 4
        %v1499 = vadd.f32 %v1497, %v1498
        %v1500 = vrot.slane %v1499, 2
        %v1501 = vadd.f32 %v1499, %v1500
        %v1502 = vrot.slane %v1501, 1
        %v1503 = vadd.f32 %v1501, %v1502
        %v1504 = vmul.f32 %v1503, 0.125
        %v1505 = vpack.c.bf16 %v1504, %v1504
        %v1507 = vsel %vm1485, %v1505, 0
        %v1510 = vsel %vm900, %v1265, 0
        %1512 = vmatprep.subr.bf16.mxu0 0
        %1513 = vmatpush1.bf16.msra.mxu0 %v1510
        %1514 = vmatprep.subr.bf16.mxu0 0
        %1515 = vmatpush1.bf16.msra.mxu0 0
        %1516 = vmatprep.subr.bf16.mxu0 0
        %1517 = vmatpush1.bf16.msra.mxu0 0
        %1518 = vmatprep.subr.bf16.mxu0 0
        %1519 = vmatpush1.bf16.msra.mxu0 0
        %1520 = vmatprep.subr.bf16.mxu0 0
        %1521 = vmatpush1.bf16.msra.mxu0 0
        %1522 = vmatprep.subr.bf16.mxu0 0
        %1523 = vmatpush1.bf16.msra.mxu0 0
        %1524 = vmatprep.subr.bf16.mxu0 0
        %1525 = vmatpush1.bf16.msra.mxu0 0
        %1526 = vmatprep.subr.bf16.mxu0 0
        %1527 = vmatpush1.bf16.msra.mxu0 0
        %1528 = vmatprep.subr.bf16.mxu0 0
        %1529 = vmatpush1.bf16.msra.mxu0 0
        %1530 = vmatprep.subr.bf16.mxu0 0
        %1531 = vmatpush1.bf16.msra.mxu0 0
        %1532 = vmatprep.subr.bf16.mxu0 0
        %1533 = vmatpush1.bf16.msra.mxu0 0
        %1534 = vmatprep.subr.bf16.mxu0 0
        %1535 = vmatpush1.bf16.msra.mxu0 0
        %1536 = vmatprep.subr.bf16.mxu0 0
        %1537 = vmatpush1.bf16.msra.mxu0 0
        %1538 = vmatprep.subr.bf16.mxu0 0
        %1539 = vmatpush1.bf16.msra.mxu0 0
        %1540 = vmatprep.subr.bf16.mxu0 0
        %1541 = vmatpush1.bf16.msra.mxu0 0
        %1542 = vmatprep.subr.bf16.mxu0 0
        %1543 = vmatpush1.bf16.msra.mxu0 0
        %1544 = vmatprep.mubr.bf16.mxu0 0
        %1545 = vmatmul.mubr.bf16.gmra.mrb[0].mxu0 %v1507
        %v1546 = vpop.f32.mrb[0].mxu0
        %v1547 = vadd.f32 0.0, %v1546
        %v1548 = vpop.f32.mrb[0].mxu0
        %v1549 = vpop.f32.mrb[0].mxu0
        %v1550 = vpop.f32.mrb[0].mxu0
        %1551 = vdwg.mxu0
        %1553 = vrot.lane.b32.xlu0 %v1394, 3
        %v1554 = vpop.permute.xlu0 %1553
        %v1556 = vmul.f32 %v994, %v1554
        %1558 = vrot.lane.b32.xlu0 %v1395, 3
        %v1559 = vpop.permute.xlu0 %1558
        %v1561 = vmul.f32 %v1049, %v1559
        %v1562 = vsub.f32 %v1556, %v1561
        %v1563 = vmul.f32 %v1049, %v1554
        %v1564 = vmul.f32 %v994, %v1559
        %v1565 = vadd.f32 %v1563, %v1564
        %1567 = vrot.lane.b32.xlu0 %v939, 122
        %v1568 = vpop.permute.xlu0 %1567
        %1571 = vrot.lane.b32.xlu0 %v1562, 3
        %v1572 = vpop.permute.xlu0 %1571
        %1575 = vrot.lane.b32.xlu0 %v1565, 6
        %v1576 = vpop.permute.xlu0 %1575
        %v1578 = vsel %vm1421, %v1568, %v1572
        %v1579 = vsel %vm1423, %v1578, %v1576
        %v1580 = vpack.c.bf16 %v1579, %v1579
        %1582 = vrot.lane.b32.xlu0 %v1204, 122
        %v1583 = vpop.permute.xlu0 %1582
        %v1585 = vsel %vm1421, %v1583, %v1428
        %v1586 = vsel %vm1423, %v1585, %v1432
        %v1587 = vpack.c.bf16 %v1586, %v1586
        %v1589 = vsel %vm1437, %v1580, 0
        %v1592 = vsel %vm1437, %v1587, 0
        %1594 = vmatprep.subr.bf16.mxu0 0
        %1595 = vmatpush1.bf16.xpose.msra.mxu0 %v1592
        %1596 = vmatprep.subr.bf16.mxu0 0
        %1597 = vmatpush1.bf16.xpose.msra.mxu0 0
        %1598 = vmatprep.subr.bf16.mxu0 0
        %1599 = vmatpush1.bf16.xpose.msra.mxu0 0
        %1600 = vmatprep.subr.bf16.mxu0 0
        %1601 = vmatpush1.bf16.xpose.msra.mxu0 0
        %1602 = vmatprep.subr.bf16.mxu0 0
        %1603 = vmatpush1.bf16.xpose.msra.mxu0 0
        %1604 = vmatprep.subr.bf16.mxu0 0
        %1605 = vmatpush1.bf16.xpose.msra.mxu0 0
        %1606 = vmatprep.subr.bf16.mxu0 0
        %1607 = vmatpush1.bf16.xpose.msra.mxu0 0
        %1608 = vmatprep.subr.bf16.mxu0 0
        %1609 = vmatpush1.bf16.xpose.msra.mxu0 0
        %1610 = vmatprep.subr.bf16.mxu0 0
        %1611 = vmatpush1.bf16.xpose.msra.mxu0 0
        %1612 = vmatprep.subr.bf16.mxu0 0
        %1613 = vmatpush1.bf16.xpose.msra.mxu0 0
        %1614 = vmatprep.subr.bf16.mxu0 0
        %1615 = vmatpush1.bf16.xpose.msra.mxu0 0
        %1616 = vmatprep.subr.bf16.mxu0 0
        %1617 = vmatpush1.bf16.xpose.msra.mxu0 0
        %1618 = vmatprep.subr.bf16.mxu0 0
        %1619 = vmatpush1.bf16.xpose.msra.mxu0 0
        %1620 = vmatprep.subr.bf16.mxu0 0
        %1621 = vmatpush1.bf16.xpose.msra.mxu0 0
        %1622 = vmatprep.subr.bf16.mxu0 0
        %1623 = vmatpush1.bf16.xpose.msra.mxu0 0
        %1624 = vmatprep.subr.bf16.mxu0 0
        %1625 = vmatpush1.bf16.xpose.msra.mxu0 0
        %1626 = vmatprep.mubr.bf16.mxu0 0
        %1627 = vmatmul.mubr.bf16.gmra.mrb[0].mxu0 %v1589
        %v1628 = vpop.f32.mrb[0].mxu0
        %v1629 = vadd.f32 0.0, %v1628
        %v1630 = vpop.f32.mrb[0].mxu0
        %v1631 = vpop.f32.mrb[0].mxu0
        %v1632 = vpop.f32.mrb[0].mxu0
        %1633 = vdwg.mxu0
        %v1634 = vsel %vm1406, %v1629, -1e+30
        %v1635 = vsel %vm1485, %v1634, -inf
        %1636 = vmax.xlane.f32.xlu0 %v1635
        %v1637 = vpop.xlane.xlu0 %1636
        %v1638 = vsub.f32 %v1634, %v1637
        %v1639 = vmul.f32 %v1638, 1.442695
        %v1640 = vpow.pop %v1639
        %v1641 = vsel %vm1485, %v1640, 0.0
        %1642 = vadd.xlane.f32.xlu0 %v1641
        %v1643 = vpop.xlane.xlu0 %1642
        %v1644 = vrcp.pop %v1643
        %v1645 = vmul.f32 %v1640, %v1644
        %v1646 = vsel %vm1485, %v1645, 0.0
        %v1647 = vrot.slane %v1646, 4
        %v1648 = vadd.f32 %v1646, %v1647
        %v1649 = vrot.slane %v1648, 2
        %v1650 = vadd.f32 %v1648, %v1649
        %v1651 = vrot.slane %v1650, 1
        %v1652 = vadd.f32 %v1650, %v1651
        %v1653 = vmul.f32 %v1652, 0.125
        %v1654 = vpack.c.bf16 %v1653, %v1653
        %1656 = vrot.lane.b32.xlu0 %v1265, 116
        %v1657 = vpop.permute.xlu0 %1656
        %v1659 = vsel %vm1485, %v1654, 0
        %v1662 = vsel %vm900, %v1657, 0
        %1664 = vmatprep.subr.bf16.mxu0 0
        %1665 = vmatpush1.bf16.msra.mxu0 %v1662
        %1666 = vmatprep.subr.bf16.mxu0 0
        %1667 = vmatpush1.bf16.msra.mxu0 0
        %1668 = vmatprep.subr.bf16.mxu0 0
        %1669 = vmatpush1.bf16.msra.mxu0 0
        %1670 = vmatprep.subr.bf16.mxu0 0
        %1671 = vmatpush1.bf16.msra.mxu0 0
        %1672 = vmatprep.subr.bf16.mxu0 0
        %1673 = vmatpush1.bf16.msra.mxu0 0
        %1674 = vmatprep.subr.bf16.mxu0 0
        %1675 = vmatpush1.bf16.msra.mxu0 0
        %1676 = vmatprep.subr.bf16.mxu0 0
        %1677 = vmatpush1.bf16.msra.mxu0 0
        %1678 = vmatprep.subr.bf16.mxu0 0
        %1679 = vmatpush1.bf16.msra.mxu0 0
        %1680 = vmatprep.subr.bf16.mxu0 0
        %1681 = vmatpush1.bf16.msra.mxu0 0
        %1682 = vmatprep.subr.bf16.mxu0 0
        %1683 = vmatpush1.bf16.msra.mxu0 0
        %1684 = vmatprep.subr.bf16.mxu0 0
        %1685 = vmatpush1.bf16.msra.mxu0 0
        %1686 = vmatprep.subr.bf16.mxu0 0
        %1687 = vmatpush1.bf16.msra.mxu0 0
        %1688 = vmatprep.subr.bf16.mxu0 0
        %1689 = vmatpush1.bf16.msra.mxu0 0
        %1690 = vmatprep.subr.bf16.mxu0 0
        %1691 = vmatpush1.bf16.msra.mxu0 0
        %1692 = vmatprep.subr.bf16.mxu0 0
        %1693 = vmatpush1.bf16.msra.mxu0 0
        %1694 = vmatprep.subr.bf16.mxu0 0
        %1695 = vmatpush1.bf16.msra.mxu0 0
        %1696 = vmatprep.mubr.bf16.mxu0 0
        %1697 = vmatmul.mubr.bf16.gmra.mrb[0].mxu0 %v1659
        %v1698 = vpop.f32.mrb[0].mxu0
        %v1699 = vadd.f32 0.0, %v1698
        %v1700 = vpop.f32.mrb[0].mxu0
        %v1701 = vpop.f32.mrb[0].mxu0
        %v1702 = vpop.f32.mrb[0].mxu0
        %1703 = vdwg.mxu0
        %1704 = vrot.lane.b32.xlu0 %v1394, 6
        %v1705 = vpop.permute.xlu0 %1704
        %v1707 = vmul.f32 %v994, %v1705
        %1708 = vrot.lane.b32.xlu0 %v1395, 6
        %v1709 = vpop.permute.xlu0 %1708
        %v1711 = vmul.f32 %v1049, %v1709
        %v1712 = vsub.f32 %v1707, %v1711
        %v1713 = vmul.f32 %v1049, %v1705
        %v1714 = vmul.f32 %v994, %v1709
        %v1715 = vadd.f32 %v1713, %v1714
        %1716 = vrot.lane.b32.xlu0 %v939, 116
        %v1717 = vpop.permute.xlu0 %1716
        %1720 = vrot.lane.b32.xlu0 %v1715, 3
        %v1721 = vpop.permute.xlu0 %1720
        %v1723 = vsel %vm1421, %v1717, %v1712
        %v1724 = vsel %vm1423, %v1723, %v1721
        %v1725 = vpack.c.bf16 %v1724, %v1724
        %1726 = vrot.lane.b32.xlu0 %v1204, 116
        %v1727 = vpop.permute.xlu0 %1726
        %v1729 = vsel %vm1421, %v1727, %v1428
        %v1730 = vsel %vm1423, %v1729, %v1432
        %v1731 = vpack.c.bf16 %v1730, %v1730
        %v1733 = vsel %vm1437, %v1725, 0
        %v1736 = vsel %vm1437, %v1731, 0
        %1738 = vmatprep.subr.bf16.mxu0 0
        %1739 = vmatpush1.bf16.xpose.msra.mxu0 %v1736
        %1740 = vmatprep.subr.bf16.mxu0 0
        %1741 = vmatpush1.bf16.xpose.msra.mxu0 0
        %1742 = vmatprep.subr.bf16.mxu0 0
        %1743 = vmatpush1.bf16.xpose.msra.mxu0 0
        %1744 = vmatprep.subr.bf16.mxu0 0
        %1745 = vmatpush1.bf16.xpose.msra.mxu0 0
        %1746 = vmatprep.subr.bf16.mxu0 0
        %1747 = vmatpush1.bf16.xpose.msra.mxu0 0
        %1748 = vmatprep.subr.bf16.mxu0 0
        %1749 = vmatpush1.bf16.xpose.msra.mxu0 0
        %1750 = vmatprep.subr.bf16.mxu0 0
        %1751 = vmatpush1.bf16.xpose.msra.mxu0 0
        %1752 = vmatprep.subr.bf16.mxu0 0
        %1753 = vmatpush1.bf16.xpose.msra.mxu0 0
        %1754 = vmatprep.subr.bf16.mxu0 0
        %1755 = vmatpush1.bf16.xpose.msra.mxu0 0
        %1756 = vmatprep.subr.bf16.mxu0 0
        %1757 = vmatpush1.bf16.xpose.msra.mxu0 0
        %1758 = vmatprep.subr.bf16.mxu0 0
        %1759 = vmatpush1.bf16.xpose.msra.mxu0 0
        %1760 = vmatprep.subr.bf16.mxu0 0
        %1761 = vmatpush1.bf16.xpose.msra.mxu0 0
        %1762 = vmatprep.subr.bf16.mxu0 0
        %1763 = vmatpush1.bf16.xpose.msra.mxu0 0
        %1764 = vmatprep.subr.bf16.mxu0 0
        %1765 = vmatpush1.bf16.xpose.msra.mxu0 0
        %1766 = vmatprep.subr.bf16.mxu0 0
        %1767 = vmatpush1.bf16.xpose.msra.mxu0 0
        %1768 = vmatprep.subr.bf16.mxu0 0
        %1769 = vmatpush1.bf16.xpose.msra.mxu0 0
        %1770 = vmatprep.mubr.bf16.mxu0 0
        %1771 = vmatmul.mubr.bf16.gmra.mrb[0].mxu0 %v1733
        %v1772 = vpop.f32.mrb[0].mxu0
        %v1773 = vadd.f32 0.0, %v1772
        %v1774 = vpop.f32.mrb[0].mxu0
        %v1775 = vpop.f32.mrb[0].mxu0
        %v1776 = vpop.f32.mrb[0].mxu0
        %1777 = vdwg.mxu0
        %v1778 = vsel %vm1406, %v1773, -1e+30
        %v1779 = vsel %vm1485, %v1778, -inf
        %1780 = vmax.xlane.f32.xlu0 %v1779
        %v1781 = vpop.xlane.xlu0 %1780
        %v1782 = vsub.f32 %v1778, %v1781
        %v1783 = vmul.f32 %v1782, 1.442695
        %v1784 = vpow.pop %v1783
        %v1785 = vsel %vm1485, %v1784, 0.0
        %1786 = vadd.xlane.f32.xlu0 %v1785
        %v1787 = vpop.xlane.xlu0 %1786
        %v1788 = vrcp.pop %v1787
        %v1789 = vmul.f32 %v1784, %v1788
        %v1790 = vsel %vm1485, %v1789, 0.0
        %v1791 = vrot.slane %v1790, 4
        %v1792 = vadd.f32 %v1790, %v1791
        %v1793 = vrot.slane %v1792, 2
        %v1794 = vadd.f32 %v1792, %v1793
        %v1795 = vrot.slane %v1794, 1
        %v1796 = vadd.f32 %v1794, %v1795
        %v1797 = vmul.f32 %v1796, 0.125
        %v1798 = vpack.c.bf16 %v1797, %v1797
        %1799 = vrot.lane.b32.xlu0 %v1265, 104
        %v1800 = vpop.permute.xlu0 %1799
        %v1802 = vsel %vm1485, %v1798, 0
        %v1805 = vsel %vm900, %v1800, 0
        %1807 = vmatprep.subr.bf16.mxu0 0
        %1808 = vmatpush1.bf16.msra.mxu0 %v1805
        %1809 = vmatprep.subr.bf16.mxu0 0
        %1810 = vmatpush1.bf16.msra.mxu0 0
        %1811 = vmatprep.subr.bf16.mxu0 0
        %1812 = vmatpush1.bf16.msra.mxu0 0
        %1813 = vmatprep.subr.bf16.mxu0 0
        %1814 = vmatpush1.bf16.msra.mxu0 0
        %1815 = vmatprep.subr.bf16.mxu0 0
        %1816 = vmatpush1.bf16.msra.mxu0 0
        %1817 = vmatprep.subr.bf16.mxu0 0
        %1818 = vmatpush1.bf16.msra.mxu0 0
        %1819 = vmatprep.subr.bf16.mxu0 0
        %1820 = vmatpush1.bf16.msra.mxu0 0
        %1821 = vmatprep.subr.bf16.mxu0 0
        %1822 = vmatpush1.bf16.msra.mxu0 0
        %1823 = vmatprep.subr.bf16.mxu0 0
        %1824 = vmatpush1.bf16.msra.mxu0 0
        %1825 = vmatprep.subr.bf16.mxu0 0
        %1826 = vmatpush1.bf16.msra.mxu0 0
        %1827 = vmatprep.subr.bf16.mxu0 0
        %1828 = vmatpush1.bf16.msra.mxu0 0
        %1829 = vmatprep.subr.bf16.mxu0 0
        %1830 = vmatpush1.bf16.msra.mxu0 0
        %1831 = vmatprep.subr.bf16.mxu0 0
        %1832 = vmatpush1.bf16.msra.mxu0 0
        %1833 = vmatprep.subr.bf16.mxu0 0
        %1834 = vmatpush1.bf16.msra.mxu0 0
        %1835 = vmatprep.subr.bf16.mxu0 0
        %1836 = vmatpush1.bf16.msra.mxu0 0
        %1837 = vmatprep.subr.bf16.mxu0 0
        %1838 = vmatpush1.bf16.msra.mxu0 0
        %1839 = vmatprep.mubr.bf16.mxu0 0
        %1840 = vmatmul.mubr.bf16.gmra.mrb[0].mxu0 %v1802
        %v1841 = vpop.f32.mrb[0].mxu0
        %v1842 = vadd.f32 0.0, %v1841
        %v1843 = vpop.f32.mrb[0].mxu0
        %v1844 = vpop.f32.mrb[0].mxu0
        %v1845 = vpop.f32.mrb[0].mxu0
        %1846 = vdwg.mxu0
        %1847 = vrot.lane.b32.xlu0 %v1394, 9
        %v1848 = vpop.permute.xlu0 %1847
        %v1850 = vmul.f32 %v994, %v1848
        %1851 = vrot.lane.b32.xlu0 %v1395, 9
        %v1852 = vpop.permute.xlu0 %1851
        %v1854 = vmul.f32 %v1049, %v1852
        %v1855 = vsub.f32 %v1850, %v1854
        %v1856 = vmul.f32 %v1049, %v1848
        %v1857 = vmul.f32 %v994, %v1852
        %v1858 = vadd.f32 %v1856, %v1857
        %1859 = vrot.lane.b32.xlu0 %v939, 110
        %v1860 = vpop.permute.xlu0 %1859
        %1863 = vrot.lane.b32.xlu0 %v1855, 125
        %v1864 = vpop.permute.xlu0 %1863
        %v1866 = vsel %vm1421, %v1860, %v1864
        %v1867 = vsel %vm1423, %v1866, %v1858
        %v1868 = vpack.c.bf16 %v1867, %v1867
        %1869 = vrot.lane.b32.xlu0 %v1204, 110
        %v1870 = vpop.permute.xlu0 %1869
        %v1872 = vsel %vm1421, %v1870, %v1428
        %v1873 = vsel %vm1423, %v1872, %v1432
        %v1874 = vpack.c.bf16 %v1873, %v1873
        %v1876 = vsel %vm1437, %v1868, 0
        %v1879 = vsel %vm1437, %v1874, 0
        %1881 = vmatprep.subr.bf16.mxu0 0
        %1882 = vmatpush1.bf16.xpose.msra.mxu0 %v1879
        %1883 = vmatprep.subr.bf16.mxu0 0
        %1884 = vmatpush1.bf16.xpose.msra.mxu0 0
        %1885 = vmatprep.subr.bf16.mxu0 0
        %1886 = vmatpush1.bf16.xpose.msra.mxu0 0
        %1887 = vmatprep.subr.bf16.mxu0 0
        %1888 = vmatpush1.bf16.xpose.msra.mxu0 0
        %1889 = vmatprep.subr.bf16.mxu0 0
        %1890 = vmatpush1.bf16.xpose.msra.mxu0 0
        %1891 = vmatprep.subr.bf16.mxu0 0
        %1892 = vmatpush1.bf16.xpose.msra.mxu0 0
        %1893 = vmatprep.subr.bf16.mxu0 0
        %1894 = vmatpush1.bf16.xpose.msra.mxu0 0
        %1895 = vmatprep.subr.bf16.mxu0 0
        %1896 = vmatpush1.bf16.xpose.msra.mxu0 0
        %1897 = vmatprep.subr.bf16.mxu0 0
        %1898 = vmatpush1.bf16.xpose.msra.mxu0 0
        %1899 = vmatprep.subr.bf16.mxu0 0
        %1900 = vmatpush1.bf16.xpose.msra.mxu0 0
        %1901 = vmatprep.subr.bf16.mxu0 0
        %1902 = vmatpush1.bf16.xpose.msra.mxu0 0
        %1903 = vmatprep.subr.bf16.mxu0 0
        %1904 = vmatpush1.bf16.xpose.msra.mxu0 0
        %1905 = vmatprep.subr.bf16.mxu0 0
        %1906 = vmatpush1.bf16.xpose.msra.mxu0 0
        %1907 = vmatprep.subr.bf16.mxu0 0
        %1908 = vmatpush1.bf16.xpose.msra.mxu0 0
        %1909 = vmatprep.subr.bf16.mxu0 0
        %1910 = vmatpush1.bf16.xpose.msra.mxu0 0
        %1911 = vmatprep.subr.bf16.mxu0 0
        %1912 = vmatpush1.bf16.xpose.msra.mxu0 0
        %1913 = vmatprep.mubr.bf16.mxu0 0
        %1914 = vmatmul.mubr.bf16.gmra.mrb[0].mxu0 %v1876
        %v1915 = vpop.f32.mrb[0].mxu0
        %v1916 = vadd.f32 0.0, %v1915
        %v1917 = vpop.f32.mrb[0].mxu0
        %v1918 = vpop.f32.mrb[0].mxu0
        %v1919 = vpop.f32.mrb[0].mxu0
        %1920 = vdwg.mxu0
        %v1921 = vsel %vm1406, %v1916, -1e+30
        %v1922 = vsel %vm1485, %v1921, -inf
        %1923 = vmax.xlane.f32.xlu0 %v1922
        %v1924 = vpop.xlane.xlu0 %1923
        %v1925 = vsub.f32 %v1921, %v1924
        %v1926 = vmul.f32 %v1925, 1.442695
        %v1927 = vpow.pop %v1926
        %v1928 = vsel %vm1485, %v1927, 0.0
        %1929 = vadd.xlane.f32.xlu0 %v1928
        %v1930 = vpop.xlane.xlu0 %1929
        %v1931 = vrcp.pop %v1930
        %v1932 = vmul.f32 %v1927, %v1931
        %v1933 = vsel %vm1485, %v1932, 0.0
        %v1934 = vrot.slane %v1933, 4
        %v1935 = vadd.f32 %v1933, %v1934
        %v1936 = vrot.slane %v1935, 2
        %v1937 = vadd.f32 %v1935, %v1936
        %v1938 = vrot.slane %v1937, 1
        %v1939 = vadd.f32 %v1937, %v1938
        %v1940 = vmul.f32 %v1939, 0.125
        %v1941 = vpack.c.bf16 %v1940, %v1940
        %1942 = vrot.lane.b32.xlu0 %v1265, 92
        %v1943 = vpop.permute.xlu0 %1942
        %v1945 = vsel %vm1485, %v1941, 0
        %v1948 = vsel %vm900, %v1943, 0
        %1950 = vmatprep.subr.bf16.mxu0 0
        %1951 = vmatpush1.bf16.msra.mxu0 %v1948
        %1952 = vmatprep.subr.bf16.mxu0 0
        %1953 = vmatpush1.bf16.msra.mxu0 0
        %1954 = vmatprep.subr.bf16.mxu0 0
        %1955 = vmatpush1.bf16.msra.mxu0 0
        %1956 = vmatprep.subr.bf16.mxu0 0
        %1957 = vmatpush1.bf16.msra.mxu0 0
        %1958 = vmatprep.subr.bf16.mxu0 0
        %1959 = vmatpush1.bf16.msra.mxu0 0
        %1960 = vmatprep.subr.bf16.mxu0 0
        %1961 = vmatpush1.bf16.msra.mxu0 0
        %1962 = vmatprep.subr.bf16.mxu0 0
        %1963 = vmatpush1.bf16.msra.mxu0 0
        %1964 = vmatprep.subr.bf16.mxu0 0
        %1965 = vmatpush1.bf16.msra.mxu0 0
        %1966 = vmatprep.subr.bf16.mxu0 0
        %1967 = vmatpush1.bf16.msra.mxu0 0
        %1968 = vmatprep.subr.bf16.mxu0 0
        %1969 = vmatpush1.bf16.msra.mxu0 0
        %1970 = vmatprep.subr.bf16.mxu0 0
        %1971 = vmatpush1.bf16.msra.mxu0 0
        %1972 = vmatprep.subr.bf16.mxu0 0
        %1973 = vmatpush1.bf16.msra.mxu0 0
        %1974 = vmatprep.subr.bf16.mxu0 0
        %1975 = vmatpush1.bf16.msra.mxu0 0
        %1976 = vmatprep.subr.bf16.mxu0 0
        %1977 = vmatpush1.bf16.msra.mxu0 0
        %1978 = vmatprep.subr.bf16.mxu0 0
        %1979 = vmatpush1.bf16.msra.mxu0 0
        %1980 = vmatprep.subr.bf16.mxu0 0
        %1981 = vmatpush1.bf16.msra.mxu0 0
        %1982 = vmatprep.mubr.bf16.mxu0 0
        %1983 = vmatmul.mubr.bf16.gmra.mrb[0].mxu0 %v1945
        %v1984 = vpop.f32.mrb[0].mxu0
        %v1985 = vadd.f32 0.0, %v1984
        %v1986 = vpop.f32.mrb[0].mxu0
        %v1987 = vpop.f32.mrb[0].mxu0
        %v1988 = vpop.f32.mrb[0].mxu0
        %1989 = vdwg.mxu0
        %1991 = vrot.lane.b32.xlu0 %v1699, 12
        %v1992 = vpop.permute.xlu0 %1991
        %1995 = vrot.lane.b32.xlu0 %v1842, 24
        %v1996 = vpop.permute.xlu0 %1995
        %1999 = vrot.lane.b32.xlu0 %v1985, 36
        %v2000 = vpop.permute.xlu0 %1999
        %v2002 = vsel %vm1437, %v1547, %v1992
        %v2003 = vsel %vm855, %v2002, %v1996
        %vm2004 = vcmask 293888
        %v2005 = vsel %vm2004, %v2003, %v2000
        %v2006 = vpack.c.bf16 %v2005, %v2005
        %v2007 = vld [vmem:[#allocation25] sm:$0xf]
        %v2008 = vld [vmem:[#allocation25 + $0x4] sm:$0xf]
        %v2009 = vld [vmem:[#allocation25 + $0x8] sm:$0xf]
        %v2010 = vld [vmem:[#allocation25 + $0xc] sm:$0xf]
        %v2011 = vld [vmem:[#allocation25 + $0x10] sm:$0xf]
        %v2012 = vld [vmem:[#allocation25 + $0x14] sm:$0xf]
        %v2019 = vunpack.c.l.b16 %v2007
        %v2020 = vunpack.c.l.b16 %v2008
        %v2021 = vunpack.c.l.b16 %v2009
        %v2022 = vunpack.c.l.b16 %v2010
        %v2023 = vunpack.c.l.b16 %v2011
        %v2024 = vunpack.c.l.b16 %v2012
        %v2025 = vpack.c.b16 %v2020, %v2019
        %v2026 = vpack.c.b16 %v2022, %v2021
        %v2027 = vpack.c.b16 %v2024, %v2023
        %v2032 = vsel %vm809, %v2006, 0
        %2034 = vmatprep.subr.bf16.mxu0 0
        %2035 = vmatpush1.bf16.msra.mxu0 %v2025
        %2036 = vmatprep.subr.bf16.mxu0 0
        %2037 = vmatpush1.bf16.msra.mxu0 %v2026
        %2038 = vmatprep.subr.bf16.mxu0 0
        %2039 = vmatpush1.bf16.msra.mxu0 %v2027
        %2040 = vmatprep.subr.bf16.mxu0 0
        %2041 = vmatpush1.bf16.msra.mxu0 0
        %2042 = vmatprep.subr.bf16.mxu0 0
        %2043 = vmatpush1.bf16.msra.mxu0 0
        %2044 = vmatprep.subr.bf16.mxu0 0
        %2045 = vmatpush1.bf16.msra.mxu0 0
        %2046 = vmatprep.subr.bf16.mxu0 0
        %2047 = vmatpush1.bf16.msra.mxu0 0
        %2048 = vmatprep.subr.bf16.mxu0 0
        %2049 = vmatpush1.bf16.msra.mxu0 0
        %2050 = vmatprep.subr.bf16.mxu0 0
        %2051 = vmatpush1.bf16.msra.mxu0 0
        %2052 = vmatprep.subr.bf16.mxu0 0
        %2053 = vmatpush1.bf16.msra.mxu0 0
        %2054 = vmatprep.subr.bf16.mxu0 0
        %2055 = vmatpush1.bf16.msra.mxu0 0
        %2056 = vmatprep.subr.bf16.mxu0 0
        %2057 = vmatpush1.bf16.msra.mxu0 0
        %2058 = vmatprep.subr.bf16.mxu0 0
        %2059 = vmatpush1.bf16.msra.mxu0 0
        %2060 = vmatprep.subr.bf16.mxu0 0
        %2061 = vmatpush1.bf16.msra.mxu0 0
        %2062 = vmatprep.subr.bf16.mxu0 0
        %2063 = vmatpush1.bf16.msra.mxu0 0
        %2064 = vmatprep.subr.bf16.mxu0 0
        %2065 = vmatpush1.bf16.msra.mxu0 0
        %2066 = vmatprep.mubr.bf16.mxu0 0
        %2067 = vmatmul.mubr.bf16.gmra.mrb[0].mxu0 %v2032
        %v2068 = vpop.f32.mrb[0].mxu0
        %v2069 = vadd.f32 0.0, %v2068
        %v2070 = vpop.f32.mrb[0].mxu0
        %v2071 = vpop.f32.mrb[0].mxu0
        %v2072 = vpop.f32.mrb[0].mxu0
        %2073 = vdwg.mxu0
        %vm2074 = vcmask 385024
        %2075 = vst.msk [vmem:[%s782] sm:$0x1] %vm2074, %v2069
        %s2076 = sand.u32 %s412, 1
        %s2077 = scalar_lea.sflag [#allocation4], %s2076
        %s2078 = sand.u32 %s412, 1
        %s2079 = scalar_lea.vmem [#allocation29], %s2078
        // Predicated region
        $region157: #{tpu_custom_call.1} parent=87 // pred_check
          %p2080 = pneg %p422
        $region158: #{tpu_custom_call.1} parent=87 // pred_check_branch
          %2082 = sbr.rel (%p2080) target = $region160
        $region159: #{tpu_custom_call.1} parent=87 // pred_region
          %s2084 = ssub.s32 16, 16
          %2085 = vsyncadd %s2077, %s2084
          %s2086 = smul.addr %s42, 16
          %s2087 = scalar_lea.hbm %s17, %s2086
          %s2089 = sshll.u32 %s2079, 4
          %s2090 = int_to_ptr.vmem [resolvable:$true] %s2089
          %2092 = dma.vmem_to_hbm [thread:$0]  %s2090, 16, %s2087, %s2077
        $region160: #{tpu_custom_call.1} parent=87 // pred_fallthru
          _
      $region88: #{tpu_custom_call.1} parent=5 // pred_fallthru
        _
      %p2093 = scmp.le.s32.totalorder 2, %s37
      // Predicated region
      $region161: #{tpu_custom_call.1} parent=5 // pred_check
        %p2094 = pneg %p2093
      $region162: #{tpu_custom_call.1} parent=5 // pred_check_branch
        %2096 = sbr.rel (%p2094) target = $region164
      $region163: #{tpu_custom_call.1} parent=5 // pred_region
        %s2097 = ssub.s32 %s37, 2
        // Predicated region
        $region165: #{tpu_custom_call.1} parent=163 // pred_check
          %p2098 = pneg %p428
        $region166: #{tpu_custom_call.1} parent=163 // pred_check_branch
          %2100 = sbr.rel (%p2098) target = $region168
        $region167: #{tpu_custom_call.1} parent=163 // pred_region
          %s2101 = sand.u32 %s413, 1
          %s2102 = scalar_lea.sflag [#allocation4], %s2101
          %s2103 = sand.u32 %s413, 1
          %s2104 = scalar_lea.vmem [#allocation29], %s2103
          %2105 = dma.done %s2102, 16
        $region168: #{tpu_custom_call.1} parent=163 // pred_fallthru
          _
      $region164: #{tpu_custom_call.1} parent=5 // pred_fallthru
        _
    $region6: #{tpu_custom_call.1} parent=1 // loop_footer
      %s41 = sadd.s32 1, %s37
    $region7: #{tpu_custom_call.1} parent=1 // loop_footer_branch
      %36 = sbr.rel target = $region3
    $region8: #{tpu_custom_call.1} parent=1 // loop_exit
      _
    %2106 = vsyncpa [#allocation3], 1
    %s2107 = scalar_lea.sflag [#allocation3], 1
    %2108 = vsyncpa %s2107, 1
    %2109 = vsyncpa [#allocation6], 1
    %2110 = vsyncpa [#allocation9], 1
    %2111 = vsyncpa [#allocation12], 1
    %2112 = vsyncpa [#allocation15], 1
    %2113 = vsyncpa [#allocation18], 1
    %2114 = vsyncpa [#allocation21], 1
    %2115 = vsyncpa [#allocation24], 1
    %2116 = vsyncpa [#allocation27], 1
    %2117 = vsyncpa [#allocation4], 1
    %s2118 = scalar_lea.sflag [#allocation4], 1
    %2119 = vsyncpa %s2118, 1

// kernel: tpu_custom_call.1
$region0: #{tpu_custom_call.1}
  #allocation0 [shape = 'u32[]', space=smem, size = 0x4, offset = 0x4, fixed_abs, tag = 'smem constant byte address 0x4 - core index']
  #allocation1 [shape = 'u32[144,128]{1,0:T(1,128)}', space=vmem, size = 0x12000, scoped, tag = 'internal scratch']
  %s0 = inlined_call_operand.hbm [shape: bf16[2,8,48], index: 0, kind: input, shape index: {}]
  %s1 = inlined_call_operand.hbm [shape: bf16[48,24], index: 1, kind: input, shape index: {}]
  %s2 = inlined_call_operand.hbm [shape: f32[1,24], index: 2, kind: input, shape index: {}]
  %s3 = inlined_call_operand.hbm [shape: f32[1,24], index: 3, kind: input, shape index: {}]
  %s4 = inlined_call_operand.hbm [shape: bf16[24,24], index: 4, kind: input, shape index: {}]
  %s5 = inlined_call_operand.hbm [shape: bf16[24,12], index: 5, kind: input, shape index: {}]
  %s6 = inlined_call_operand.hbm [shape: bf16[24,12], index: 6, kind: input, shape index: {}]
  %s7 = inlined_call_operand.hbm [shape: bf16[48,32], index: 7, kind: input, shape index: {}]
  %s8 = inlined_call_operand.hbm [shape: f32[1,32], index: 8, kind: input, shape index: {}]
  %s9 = inlined_call_operand.hbm [shape: f32[1,32], index: 9, kind: input, shape index: {}]
  %s10 = inlined_call_operand.hbm [shape: bf16[48,3], index: 10, kind: input, shape index: {}]
  %s11 = inlined_call_operand.hbm [shape: bf16[48,3], index: 11, kind: input, shape index: {}]
  %s12 = inlined_call_operand.hbm [shape: bf16[32,24], index: 12, kind: input, shape index: {}]
  %s13 = inlined_call_operand.hbm [shape: bf16[32,48], index: 13, kind: input, shape index: {}]
  %s14 = inlined_call_operand.hbm [shape: bf16[48,48], index: 14, kind: input, shape index: {}]
  %s15 = inlined_call_operand.hbm [shape: f32[8,3], index: 15, kind: input, shape index: {}]
  %s16 = inlined_call_operand.hbm [shape: f32[8,3], index: 16, kind: input, shape index: {}]
  %s17 = inlined_call_operand.hbm [shape: f32[2,1,48], index: 17, kind: output, shape index: {}]
  %s18 = sld [smem:[#allocation0]]
  $region169: #{tpu_custom_call.1} parent=0
    _
  %s20 = ssub.s32 1, %s18
  %s21 = scalar_select 0, %s20, %s18
  $region1: #{tpu_custom_call.1} parent=0
    #allocation2 [shape = 'u8[4096]{0}', space=vmem, size = 0x1000, scoped, tag = 'input window, operand 0']
    #allocation3 [shape = 's32[2]{0}', space=sflag, size = 0x8, scoped, tag = 'scoped memory for tpu_custom_call.1']
    #allocation4 [shape = 's32[2]{0}', space=sflag, size = 0x8, scoped, tag = 'scoped memory for tpu_custom_call.1']
    #allocation5 [shape = 'u8[12288]{0}', space=vmem, size = 0x3000, scoped, tag = 'input window, operand 1, single buffered']
    #allocation6 [shape = 's32[1]{0}', space=sflag, size = 0x4, scoped, tag = 'scoped memory for tpu_custom_call.1']
    #allocation7 [shape = 'u8[512]{0}', space=vmem, size = 0x400, scoped, tag = 'input window, operand 2, single buffered']
    #allocation8 [shape = 'u8[512]{0}', space=vmem, size = 0x400, scoped, tag = 'input window, operand 3, single buffered']
    #allocation9 [shape = 's32[1]{0}', space=sflag, size = 0x4, scoped, tag = 'scoped memory for tpu_custom_call.1']
    #allocation10 [shape = 'u8[6144]{0}', space=vmem, size = 0x1800, scoped, tag = 'input window, operand 4, single buffered']
    #allocation11 [shape = 'u8[6144]{0}', space=vmem, size = 0x1800, scoped, tag = 'input window, operand 5, single buffered']
    #allocation12 [shape = 's32[1]{0}', space=sflag, size = 0x4, scoped, tag = 'scoped memory for tpu_custom_call.1']
    #allocation13 [shape = 'u8[6144]{0}', space=vmem, size = 0x1800, scoped, tag = 'input window, operand 6, single buffered']
    #allocation14 [shape = 'u8[12288]{0}', space=vmem, size = 0x3000, scoped, tag = 'input window, operand 7, single buffered']
    #allocation15 [shape = 's32[1]{0}', space=sflag, size = 0x4, scoped, tag = 'scoped memory for tpu_custom_call.1']
    #allocation16 [shape = 'u8[512]{0}', space=vmem, size = 0x400, scoped, tag = 'input window, operand 8, single buffered']
    #allocation17 [shape = 'u8[512]{0}', space=vmem, size = 0x400, scoped, tag = 'input window, operand 9, single buffered']
    #allocation18 [shape = 's32[1]{0}', space=sflag, size = 0x4, scoped, tag = 'scoped memory for tpu_custom_call.1']
    #allocation19 [shape = 'u8[12288]{0}', space=vmem, size = 0x3000, scoped, tag = 'input window, operand 10, single buffered']
    #allocation20 [shape = 'u8[12288]{0}', space=vmem, size = 0x3000, scoped, tag = 'input window, operand 11, single buffered']
    #allocation21 [shape = 's32[1]{0}', space=sflag, size = 0x4, scoped, tag = 'scoped memory for tpu_custom_call.1']
    #allocation22 [shape = 'u8[8192]{0}', space=vmem, size = 0x2000, scoped, tag = 'input window, operand 12, single buffered']
    #allocation23 [shape = 'u8[8192]{0}', space=vmem, size = 0x2000, scoped, tag = 'input window, operand 13, single buffered']
    #allocation24 [shape = 's32[1]{0}', space=sflag, size = 0x4, scoped, tag = 'scoped memory for tpu_custom_call.1']
    #allocation25 [shape = 'u8[12288]{0}', space=vmem, size = 0x3000, scoped, tag = 'input window, operand 14, single buffered']
    #allocation26 [shape = 'u8[4096]{0}', space=vmem, size = 0x1000, scoped, tag = 'input window, operand 15, single buffered']
    #allocation27 [shape = 's32[1]{0}', space=sflag, size = 0x4, scoped, tag = 'scoped memory for tpu_custom_call.1']
    #allocation28 [shape = 'u8[4096]{0}', space=vmem, size = 0x1000, scoped, tag = 'input window, operand 16, single buffered']
    #allocation29 [shape = 'u8[1024]{0}', space=vmem, size = 0x400, scoped, tag = 'output window, operand 0']
    %22 = vsyncpa [#allocation3], 0
    %s23 = scalar_lea.sflag [#allocation3], 1
    %24 = vsyncpa %s23, 0
    %25 = vsyncpa [#allocation6], 0
    %26 = vsyncpa [#allocation9], 0
    %27 = vsyncpa [#allocation12], 0
    %28 = vsyncpa [#allocation15], 0
    %29 = vsyncpa [#allocation18], 0
    %30 = vsyncpa [#allocation21], 0
    %31 = vsyncpa [#allocation24], 0
    %32 = vsyncpa [#allocation27], 0
    %33 = vsyncpa [#allocation4], 0
    %s34 = scalar_lea.sflag [#allocation4], 1
    %35 = vsyncpa %s34, 0
    loop: start=0, step=1, limit=4
    $region2: #{tpu_custom_call.1} parent=1 // loop_pre_header
      _
    $region3: #{tpu_custom_call.1} parent=1 // loop_header
      %s37 = sphi 0, %s41
      %p38 = scmp.ge.s32.totalorder %s37, 4
      %s47 = sphi 0, %s49
      %s50 = sphi 0, %s47
      %s51 = sphi 0, %s50
      %s67 = sphi 0, %s51
      %s71 = sphi 0, %s71
      %s73 = sphi 0, %s71
      %s74 = sphi 0, %s73
      %s88 = sphi 0, %s74
      %s92 = sphi 0, %s92
      %s94 = sphi 0, %s92
      %s95 = sphi 0, %s94
      %s109 = sphi 0, %s95
      %s113 = sphi 0, %s113
      %s115 = sphi 0, %s113
      %s116 = sphi 0, %s115
      %s130 = sphi 0, %s116
      %s134 = sphi 0, %s134
      %s136 = sphi 0, %s134
      %s137 = sphi 0, %s136
      %s151 = sphi 0, %s137
      %s155 = sphi 0, %s155
      %s157 = sphi 0, %s155
      %s158 = sphi 0, %s157
      %s172 = sphi 0, %s158
      %s176 = sphi 0, %s176
      %s178 = sphi 0, %s176
      %s179 = sphi 0, %s178
      %s193 = sphi 0, %s179
      %s197 = sphi 0, %s197
      %s199 = sphi 0, %s197
      %s200 = sphi 0, %s199
      %s214 = sphi 0, %s200
      %s218 = sphi 0, %s218
      %s220 = sphi 0, %s218
      %s221 = sphi 0, %s220
      %s235 = sphi 0, %s221
      %s239 = sphi 0, %s239
      %s241 = sphi 0, %s239
      %s242 = sphi 0, %s241
      %s256 = sphi 0, %s242
      %s260 = sphi 0, %s260
      %s262 = sphi 0, %s260
      %s263 = sphi 0, %s262
      %s277 = sphi 0, %s263
      %s281 = sphi 0, %s281
      %s283 = sphi 0, %s281
      %s284 = sphi 0, %s283
      %s298 = sphi 0, %s284
      %s302 = sphi 0, %s302
      %s304 = sphi 0, %s302
      %s305 = sphi 0, %s304
      %s319 = sphi 0, %s305
      %s323 = sphi 0, %s323
      %s325 = sphi 0, %s323
      %s326 = sphi 0, %s325
      %s340 = sphi 0, %s326
      %s344 = sphi 0, %s344
      %s346 = sphi 0, %s344
      %s347 = sphi 0, %s346
      %s361 = sphi 0, %s347
      %s365 = sphi 0, %s365
      %s367 = sphi 0, %s365
      %s368 = sphi 0, %s367
      %s382 = sphi 0, %s368
      %s386 = sphi 0, %s386
      %s388 = sphi 0, %s386
      %s389 = sphi 0, %s388
      %s403 = sphi 0, %s389
      %s409 = sphi 0, %s411
      %s412 = sphi 0, %s409
      %s413 = sphi 0, %s412
      %s429 = sphi 0, %s413
    $region4: #{tpu_custom_call.1} parent=1 // loop_header_branch
      %40 = sbr.rel (%p38) target = $region8
    $region5: #{tpu_custom_call.1} parent=1 // loop_body
      %s42 = ssub.s32 %s37, 1
      %s43 = ssub.s32 %s37, 2
      %s44 = sadd.s32 %s37, 1
      %s45 = ssub.s32 %s37, %s44
      %p46 = scmp.eq.s32.totalorder %s45, 0
      %s48 = sadd.s32 %s47, 1
      %s49 = scalar_select %p46, %s47, %s48
      %p52 = pneg %p46
      %p53 = scmp.eq.s32.totalorder %s37, 1
      %p54 = por %p52, %p53
      %p55 = scmp.ne.s32.totalorder %s47, %s50
      %p56 = scmp.eq.s32.totalorder %s37, 0
      %p57 = por %p55, %p56
      %p58 = scmp.ne.s32.totalorder %s47, %s50
      %p59 = scmp.eq.s32.totalorder %s42, 1
      %p60 = por %p58, %p59
      %p61 = scmp.ne.s32.totalorder %s50, %s51
      %p62 = scmp.eq.s32.totalorder %s42, 0
      %p63 = por %p61, %p62
      %p64 = scmp.ne.s32.totalorder %s50, %s51
      %p65 = scmp.eq.s32.totalorder %s43, 1
      %p66 = por %p64, %p65
      %p68 = scmp.ne.s32.totalorder %s51, %s67
      %p69 = scmp.eq.s32.totalorder %s43, 0
      %p70 = por %p68, %p69
      %s72 = sadd.s32 %s71, 1
      %p75 = scmp.eq.s32.totalorder %s37, 1
      %p76 = scmp.ne.s32.totalorder %s71, %s73
      %p77 = scmp.eq.s32.totalorder %s37, 0
      %p78 = por %p76, %p77
      %p79 = scmp.ne.s32.totalorder %s71, %s73
      %p80 = scmp.eq.s32.totalorder %s42, 1
      %p81 = por %p79, %p80
      %p82 = scmp.ne.s32.totalorder %s73, %s74
      %p83 = scmp.eq.s32.totalorder %s42, 0
      %p84 = por %p82, %p83
      %p85 = scmp.ne.s32.totalorder %s73, %s74
      %p86 = scmp.eq.s32.totalorder %s43, 1
      %p87 = por %p85, %p86
      %p89 = scmp.ne.s32.totalorder %s74, %s88
      %p90 = scmp.eq.s32.totalorder %s43, 0
      %p91 = por %p89, %p90
      %s93 = sadd.s32 %s92, 1
      %p96 = scmp.eq.s32.totalorder %s37, 1
      %p97 = scmp.ne.s32.totalorder %s92, %s94
      %p98 = scmp.eq.s32.totalorder %s37, 0
      %p99 = por %p97, %p98
      %p100 = scmp.ne.s32.totalorder %s92, %s94
      %p101 = scmp.eq.s32.totalorder %s42, 1
      %p102 = por %p100, %p101
      %p103 = scmp.ne.s32.totalorder %s94, %s95
      %p104 = scmp.eq.s32.totalorder %s42, 0
      %p105 = por %p103, %p104
      %p106 = scmp.ne.s32.totalorder %s94, %s95
      %p107 = scmp.eq.s32.totalorder %s43, 1
      %p108 = por %p106, %p107
      %p110 = scmp.ne.s32.totalorder %s95, %s109
      %p111 = scmp.eq.s32.totalorder %s43, 0
      %p112 = por %p110, %p111
      %s114 = sadd.s32 %s113, 1
      %p117 = scmp.eq.s32.totalorder %s37, 1
      %p118 = scmp.ne.s32.totalorder %s113, %s115
      %p119 = scmp.eq.s32.totalorder %s37, 0
      %p120 = por %p118, %p119
      %p121 = scmp.ne.s32.totalorder %s113, %s115
      %p122 = scmp.eq.s32.totalorder %s42, 1
      %p123 = por %p121, %p122
      %p124 = scmp.ne.s32.totalorder %s115, %s116
      %p125 = scmp.eq.s32.totalorder %s42, 0
      %p126 = por %p124, %p125
      %p127 = scmp.ne.s32.totalorder %s115, %s116
      %p128 = scmp.eq.s32.totalorder %s43, 1
      %p129 = por %p127, %p128
      %p131 = scmp.ne.s32.totalorder %s116, %s130
      %p132 = scmp.eq.s32.totalorder %s43, 0
      %p133 = por %p131, %p132
      %s135 = sadd.s32 %s134, 1
      %p138 = scmp.eq.s32.totalorder %s37, 1
      %p139 = scmp.ne.s32.totalorder %s134, %s136
      %p140 = scmp.eq.s32.totalorder %s37, 0
      %p141 = por %p139, %p140
      %p142 = scmp.ne.s32.totalorder %s134, %s136
      %p143 = scmp.eq.s32.totalorder %s42, 1
      %p144 = por %p142, %p143
      %p145 = scmp.ne.s32.totalorder %s136, %s137
      %p146 = scmp.eq.s32.totalorder %s42, 0
      %p147 = por %p145, %p146
      %p148 = scmp.ne.s32.totalorder %s136, %s137
      %p149 = scmp.eq.s32.totalorder %s43, 1
      %p150 = por %p148, %p149
      %p152 = scmp.ne.s32.totalorder %s137, %s151
      %p153 = scmp.eq.s32.totalorder %s43, 0
      %p154 = por %p152, %p153
      %s156 = sadd.s32 %s155, 1
      %p159 = scmp.eq.s32.totalorder %s37, 1
      %p160 = scmp.ne.s32.totalorder %s155, %s157
      %p161 = scmp.eq.s32.totalorder %s37, 0
      %p162 = por %p160, %p161
      %p163 = scmp.ne.s32.totalorder %s155, %s157
      %p164 = scmp.eq.s32.totalorder %s42, 1
      %p165 = por %p163, %p164
      %p166 = scmp.ne.s32.totalorder %s157, %s158
      %p167 = scmp.eq.s32.totalorder %s42, 0
      %p168 = por %p166, %p167
      %p169 = scmp.ne.s32.totalorder %s157, %s158
      %p170 = scmp.eq.s32.totalorder %s43, 1
      %p171 = por %p169, %p170
      %p173 = scmp.ne.s32.totalorder %s158, %s172
      %p174 = scmp.eq.s32.totalorder %s43, 0
      %p175 = por %p173, %p174
      %s177 = sadd.s32 %s176, 1
      %p180 = scmp.eq.s32.totalorder %s37, 1
      %p181 = scmp.ne.s32.totalorder %s176, %s178
      %p182 = scmp.eq.s32.totalorder %s37, 0
      %p183 = por %p181, %p182
      %p184 = scmp.ne.s32.totalorder %s176, %s178
      %p185 = scmp.eq.s32.totalorder %s42, 1
      %p186 = por %p184, %p185
      %p187 = scmp.ne.s32.totalorder %s178, %s179
      %p188 = scmp.eq.s32.totalorder %s42, 0
      %p189 = por %p187, %p188
      %p190 = scmp.ne.s32.totalorder %s178, %s179
      %p191 = scmp.eq.s32.totalorder %s43, 1
      %p192 = por %p190, %p191
      %p194 = scmp.ne.s32.totalorder %s179, %s193
      %p195 = scmp.eq.s32.totalorder %s43, 0
      %p196 = por %p194, %p195
      %s198 = sadd.s32 %s197, 1
      %p201 = scmp.eq.s32.totalorder %s37, 1
      %p202 = scmp.ne.s32.totalorder %s197, %s199
      %p203 = scmp.eq.s32.totalorder %s37, 0
      %p204 = por %p202, %p203
      %p205 = scmp.ne.s32.totalorder %s197, %s199
      %p206 = scmp.eq.s32.totalorder %s42, 1
      %p207 = por %p205, %p206
      %p208 = scmp.ne.s32.totalorder %s199, %s200
      %p209 = scmp.eq.s32.totalorder %s42, 0
      %p210 = por %p208, %p209
      %p211 = scmp.ne.s32.totalorder %s199, %s200
      %p212 = scmp.eq.s32.totalorder %s43, 1
      %p213 = por %p211, %p212
      %p215 = scmp.ne.s32.totalorder %s200, %s214
      %p216 = scmp.eq.s32.totalorder %s43, 0
      %p217 = por %p215, %p216
      %s219 = sadd.s32 %s218, 1
      %p222 = scmp.eq.s32.totalorder %s37, 1
      %p223 = scmp.ne.s32.totalorder %s218, %s220
      %p224 = scmp.eq.s32.totalorder %s37, 0
      %p225 = por %p223, %p224
      %p226 = scmp.ne.s32.totalorder %s218, %s220
      %p227 = scmp.eq.s32.totalorder %s42, 1
      %p228 = por %p226, %p227
      %p229 = scmp.ne.s32.totalorder %s220, %s221
      %p230 = scmp.eq.s32.totalorder %s42, 0
      %p231 = por %p229, %p230
      %p232 = scmp.ne.s32.totalorder %s220, %s221
      %p233 = scmp.eq.s32.totalorder %s43, 1
      %p234 = por %p232, %p233
      %p236 = scmp.ne.s32.totalorder %s221, %s235
      %p237 = scmp.eq.s32.totalorder %s43, 0
      %p238 = por %p236, %p237
      %s240 = sadd.s32 %s239, 1
      %p243 = scmp.eq.s32.totalorder %s37, 1
      %p244 = scmp.ne.s32.totalorder %s239, %s241
      %p245 = scmp.eq.s32.totalorder %s37, 0
      %p246 = por %p244, %p245
      %p247 = scmp.ne.s32.totalorder %s239, %s241
      %p248 = scmp.eq.s32.totalorder %s42, 1
      %p249 = por %p247, %p248
      %p250 = scmp.ne.s32.totalorder %s241, %s242
      %p251 = scmp.eq.s32.totalorder %s42, 0
      %p252 = por %p250, %p251
      %p253 = scmp.ne.s32.totalorder %s241, %s242
      %p254 = scmp.eq.s32.totalorder %s43, 1
      %p255 = por %p253, %p254
      %p257 = scmp.ne.s32.totalorder %s242, %s256
      %p258 = scmp.eq.s32.totalorder %s43, 0
      %p259 = por %p257, %p258
      %s261 = sadd.s32 %s260, 1
      %p264 = scmp.eq.s32.totalorder %s37, 1
      %p265 = scmp.ne.s32.totalorder %s260, %s262
      %p266 = scmp.eq.s32.totalorder %s37, 0
      %p267 = por %p265, %p266
      %p268 = scmp.ne.s32.totalorder %s260, %s262
      %p269 = scmp.eq.s32.totalorder %s42, 1
      %p270 = por %p268, %p269
      %p271 = scmp.ne.s32.totalorder %s262, %s263
      %p272 = scmp.eq.s32.totalorder %s42, 0
      %p273 = por %p271, %p272
      %p274 = scmp.ne.s32.totalorder %s262, %s263
      %p275 = scmp.eq.s32.totalorder %s43, 1
      %p276 = por %p274, %p275
      %p278 = scmp.ne.s32.totalorder %s263, %s277
      %p279 = scmp.eq.s32.totalorder %s43, 0
      %p280 = por %p278, %p279
      %s282 = sadd.s32 %s281, 1
      %p285 = scmp.eq.s32.totalorder %s37, 1
      %p286 = scmp.ne.s32.totalorder %s281, %s283
      %p287 = scmp.eq.s32.totalorder %s37, 0
      %p288 = por %p286, %p287
      %p289 = scmp.ne.s32.totalorder %s281, %s283
      %p290 = scmp.eq.s32.totalorder %s42, 1
      %p291 = por %p289, %p290
      %p292 = scmp.ne.s32.totalorder %s283, %s284
      %p293 = scmp.eq.s32.totalorder %s42, 0
      %p294 = por %p292, %p293
      %p295 = scmp.ne.s32.totalorder %s283, %s284
      %p296 = scmp.eq.s32.totalorder %s43, 1
      %p297 = por %p295, %p296
      %p299 = scmp.ne.s32.totalorder %s284, %s298
      %p300 = scmp.eq.s32.totalorder %s43, 0
      %p301 = por %p299, %p300
      %s303 = sadd.s32 %s302, 1
      %p306 = scmp.eq.s32.totalorder %s37, 1
      %p307 = scmp.ne.s32.totalorder %s302, %s304
      %p308 = scmp.eq.s32.totalorder %s37, 0
      %p309 = por %p307, %p308
      %p310 = scmp.ne.s32.totalorder %s302, %s304
      %p311 = scmp.eq.s32.totalorder %s42, 1
      %p312 = por %p310, %p311
      %p313 = scmp.ne.s32.totalorder %s304, %s305
      %p314 = scmp.eq.s32.totalorder %s42, 0
      %p315 = por %p313, %p314
      %p316 = scmp.ne.s32.totalorder %s304, %s305
      %p317 = scmp.eq.s32.totalorder %s43, 1
      %p318 = por %p316, %p317
      %p320 = scmp.ne.s32.totalorder %s305, %s319
      %p321 = scmp.eq.s32.totalorder %s43, 0
      %p322 = por %p320, %p321
      %s324 = sadd.s32 %s323, 1
      %p327 = scmp.eq.s32.totalorder %s37, 1
      %p328 = scmp.ne.s32.totalorder %s323, %s325
      %p329 = scmp.eq.s32.totalorder %s37, 0
      %p330 = por %p328, %p329
      %p331 = scmp.ne.s32.totalorder %s323, %s325
      %p332 = scmp.eq.s32.totalorder %s42, 1
      %p333 = por %p331, %p332
      %p334 = scmp.ne.s32.totalorder %s325, %s326
      %p335 = scmp.eq.s32.totalorder %s42, 0
      %p336 = por %p334, %p335
      %p337 = scmp.ne.s32.totalorder %s325, %s326
      %p338 = scmp.eq.s32.totalorder %s43, 1
      %p339 = por %p337, %p338
      %p341 = scmp.ne.s32.totalorder %s326, %s340
      %p342 = scmp.eq.s32.totalorder %s43, 0
      %p343 = por %p341, %p342
      %s345 = sadd.s32 %s344, 1
      %p348 = scmp.eq.s32.totalorder %s37, 1
      %p349 = scmp.ne.s32.totalorder %s344, %s346
      %p350 = scmp.eq.s32.totalorder %s37, 0
      %p351 = por %p349, %p350
      %p352 = scmp.ne.s32.totalorder %s344, %s346
      %p353 = scmp.eq.s32.totalorder %s42, 1
      %p354 = por %p352, %p353
      %p355 = scmp.ne.s32.totalorder %s346, %s347
      %p356 = scmp.eq.s32.totalorder %s42, 0
      %p357 = por %p355, %p356
      %p358 = scmp.ne.s32.totalorder %s346, %s347
      %p359 = scmp.eq.s32.totalorder %s43, 1
      %p360 = por %p358, %p359
      %p362 = scmp.ne.s32.totalorder %s347, %s361
      %p363 = scmp.eq.s32.totalorder %s43, 0
      %p364 = por %p362, %p363
      %s366 = sadd.s32 %s365, 1
      %p369 = scmp.eq.s32.totalorder %s37, 1
      %p370 = scmp.ne.s32.totalorder %s365, %s367
      %p371 = scmp.eq.s32.totalorder %s37, 0
      %p372 = por %p370, %p371
      %p373 = scmp.ne.s32.totalorder %s365, %s367
      %p374 = scmp.eq.s32.totalorder %s42, 1
      %p375 = por %p373, %p374
      %p376 = scmp.ne.s32.totalorder %s367, %s368
      %p377 = scmp.eq.s32.totalorder %s42, 0
      %p378 = por %p376, %p377
      %p379 = scmp.ne.s32.totalorder %s367, %s368
      %p380 = scmp.eq.s32.totalorder %s43, 1
      %p381 = por %p379, %p380
      %p383 = scmp.ne.s32.totalorder %s368, %s382
      %p384 = scmp.eq.s32.totalorder %s43, 0
      %p385 = por %p383, %p384
      %s387 = sadd.s32 %s386, 1
      %p390 = scmp.eq.s32.totalorder %s37, 1
      %p391 = scmp.ne.s32.totalorder %s386, %s388
      %p392 = scmp.eq.s32.totalorder %s37, 0
      %p393 = por %p391, %p392
      %p394 = scmp.ne.s32.totalorder %s386, %s388
      %p395 = scmp.eq.s32.totalorder %s42, 1
      %p396 = por %p394, %p395
      %p397 = scmp.ne.s32.totalorder %s388, %s389
      %p398 = scmp.eq.s32.totalorder %s42, 0
      %p399 = por %p397, %p398
      %p400 = scmp.ne.s32.totalorder %s388, %s389
      %p401 = scmp.eq.s32.totalorder %s43, 1
      %p402 = por %p400, %p401
      %p404 = scmp.ne.s32.totalorder %s389, %s403
      %p405 = scmp.eq.s32.totalorder %s43, 0
      %p406 = por %p404, %p405
      %s407 = ssub.s32 %s37, %s44
      %p408 = scmp.eq.s32.totalorder %s407, 0
      %s410 = sadd.s32 %s409, 1
      %s411 = scalar_select %p408, %s409, %s410
      %p414 = pneg %p408
      %p415 = scmp.eq.s32.totalorder %s37, 1
      %p416 = por %p414, %p415
      %p417 = scmp.ne.s32.totalorder %s409, %s412
      %p418 = scmp.eq.s32.totalorder %s37, 0
      %p419 = por %p417, %p418
      %p420 = scmp.ne.s32.totalorder %s409, %s412
      %p421 = scmp.eq.s32.totalorder %s42, 1
      %p422 = por %p420, %p421
      %p423 = scmp.ne.s32.totalorder %s412, %s413
      %p424 = scmp.eq.s32.totalorder %s42, 0
      %p425 = por %p423, %p424
      %p426 = scmp.ne.s32.totalorder %s412, %s413
      %p427 = scmp.eq.s32.totalorder %s43, 1
      %p428 = por %p426, %p427
      %p430 = scmp.ne.s32.totalorder %s413, %s429
      %p431 = scmp.eq.s32.totalorder %s43, 0
      %p432 = por %p430, %p431
      %p433 = scmp.le.s32.totalorder 1, %s37
      %p434 = scmp.lt.s32.totalorder %s37, 3
      %p435 = pnand %p433, %p434
      %p436 = pneg %p435
      // Predicated region
      $region9: #{tpu_custom_call.1} parent=5 // pred_check
        _
      $region10: #{tpu_custom_call.1} parent=5 // pred_check_branch
        %438 = sbr.rel (%p435) target = $region12
      $region11: #{tpu_custom_call.1} parent=5 // pred_region
        %s439 = ssub.s32 %s37, 1
        // Predicated region
        $region13: #{tpu_custom_call.1} parent=11 // pred_check
          %p440 = pneg %p84
        $region14: #{tpu_custom_call.1} parent=11 // pred_check_branch
          %442 = sbr.rel (%p440) target = $region16
        $region15: #{tpu_custom_call.1} parent=11 // pred_region
          %s444 = ssub.s32 384, 384
          %445 = vsyncadd [#allocation6], %s444
          %s446 = sshll.u32 [#allocation5], 4
          %s447 = int_to_ptr.vmem [resolvable:$true] %s446
          %452 = dma.hbm_to_vmem [thread:$0]  %s1, 384, %s447, [#allocation6], 64, 64, 4
        $region16: #{tpu_custom_call.1} parent=11 // pred_fallthru
          _
        // Predicated region
        $region17: #{tpu_custom_call.1} parent=11 // pred_check
          %p453 = pneg %p105
        $region18: #{tpu_custom_call.1} parent=11 // pred_check_branch
          %455 = sbr.rel (%p453) target = $region20
        $region19: #{tpu_custom_call.1} parent=11 // pred_region
          %s457 = ssub.s32 16, 16
          %458 = vsyncadd [#allocation6], %s457
          %s460 = sshll.u32 [#allocation7], 4
          %s461 = int_to_ptr.vmem [resolvable:$true] %s460
          %463 = dma.hbm_to_vmem [thread:$0]  %s2, 16, %s461, [#allocation6]
        $region20: #{tpu_custom_call.1} parent=11 // pred_fallthru
          _
        // Predicated region
        $region21: #{tpu_custom_call.1} parent=11 // pred_check
          %p464 = pneg %p126
        $region22: #{tpu_custom_call.1} parent=11 // pred_check_branch
          %466 = sbr.rel (%p464) target = $region24
        $region23: #{tpu_custom_call.1} parent=11 // pred_region
          %s468 = ssub.s32 16, 16
          %469 = vsyncadd [#allocation9], %s468
          %s471 = sshll.u32 [#allocation8], 4
          %s472 = int_to_ptr.vmem [resolvable:$true] %s471
          %474 = dma.hbm_to_vmem [thread:$0]  %s3, 16, %s472, [#allocation9]
        $region24: #{tpu_custom_call.1} parent=11 // pred_fallthru
          _
        // Predicated region
        $region25: #{tpu_custom_call.1} parent=11 // pred_check
          %p475 = pneg %p147
        $region26: #{tpu_custom_call.1} parent=11 // pred_check_branch
          %477 = sbr.rel (%p475) target = $region28
        $region27: #{tpu_custom_call.1} parent=11 // pred_region
          %s479 = ssub.s32 192, 192
          %480 = vsyncadd [#allocation9], %s479
          %s481 = sshll.u32 [#allocation10], 4
          %s482 = int_to_ptr.vmem [resolvable:$true] %s481
          %487 = dma.hbm_to_vmem [thread:$0]  %s4, 192, %s482, [#allocation9], 64, 64, 4
        $region28: #{tpu_custom_call.1} parent=11 // pred_fallthru
          _
        // Predicated region
        $region29: #{tpu_custom_call.1} parent=11 // pred_check
          %p488 = pneg %p168
        $region30: #{tpu_custom_call.1} parent=11 // pred_check_branch
          %490 = sbr.rel (%p488) target = $region32
        $region31: #{tpu_custom_call.1} parent=11 // pred_region
          %s492 = ssub.s32 192, 192
          %493 = vsyncadd [#allocation12], %s492
          %s494 = sshll.u32 [#allocation11], 4
          %s495 = int_to_ptr.vmem [resolvable:$true] %s494
          %500 = dma.hbm_to_vmem [thread:$0]  %s5, 192, %s495, [#allocation12], 64, 64, 4
        $region32: #{tpu_custom_call.1} parent=11 // pred_fallthru
          _
        // Predicated region
        $region33: #{tpu_custom_call.1} parent=11 // pred_check
          %p501 = pneg %p189
        $region34: #{tpu_custom_call.1} parent=11 // pred_check_branch
          %503 = sbr.rel (%p501) target = $region36
        $region35: #{tpu_custom_call.1} parent=11 // pred_region
          %s505 = ssub.s32 192, 192
          %506 = vsyncadd [#allocation12], %s505
          %s507 = sshll.u32 [#allocation13], 4
          %s508 = int_to_ptr.vmem [resolvable:$true] %s507
          %513 = dma.hbm_to_vmem [thread:$0]  %s6, 192, %s508, [#allocation12], 64, 64, 4
        $region36: #{tpu_custom_call.1} parent=11 // pred_fallthru
          _
        // Predicated region
        $region37: #{tpu_custom_call.1} parent=11 // pred_check
          %p514 = pneg %p210
        $region38: #{tpu_custom_call.1} parent=11 // pred_check_branch
          %516 = sbr.rel (%p514) target = $region40
        $region39: #{tpu_custom_call.1} parent=11 // pred_region
          %s518 = ssub.s32 384, 384
          %519 = vsyncadd [#allocation15], %s518
          %s520 = sshll.u32 [#allocation14], 4
          %s521 = int_to_ptr.vmem [resolvable:$true] %s520
          %526 = dma.hbm_to_vmem [thread:$0]  %s7, 384, %s521, [#allocation15], 64, 64, 4
        $region40: #{tpu_custom_call.1} parent=11 // pred_fallthru
          _
        // Predicated region
        $region41: #{tpu_custom_call.1} parent=11 // pred_check
          %p527 = pneg %p231
        $region42: #{tpu_custom_call.1} parent=11 // pred_check_branch
          %529 = sbr.rel (%p527) target = $region44
        $region43: #{tpu_custom_call.1} parent=11 // pred_region
          %s531 = ssub.s32 16, 16
          %532 = vsyncadd [#allocation15], %s531
          %s534 = sshll.u32 [#allocation16], 4
          %s535 = int_to_ptr.vmem [resolvable:$true] %s534
          %537 = dma.hbm_to_vmem [thread:$0]  %s8, 16, %s535, [#allocation15]
        $region44: #{tpu_custom_call.1} parent=11 // pred_fallthru
          _
        // Predicated region
        $region45: #{tpu_custom_call.1} parent=11 // pred_check
          %p538 = pneg %p252
        $region46: #{tpu_custom_call.1} parent=11 // pred_check_branch
          %540 = sbr.rel (%p538) target = $region48
        $region47: #{tpu_custom_call.1} parent=11 // pred_region
          %s542 = ssub.s32 16, 16
          %543 = vsyncadd [#allocation18], %s542
          %s545 = sshll.u32 [#allocation17], 4
          %s546 = int_to_ptr.vmem [resolvable:$true] %s545
          %548 = dma.hbm_to_vmem [thread:$0]  %s9, 16, %s546, [#allocation18]
        $region48: #{tpu_custom_call.1} parent=11 // pred_fallthru
          _
        // Predicated region
        $region49: #{tpu_custom_call.1} parent=11 // pred_check
          %p549 = pneg %p273
        $region50: #{tpu_custom_call.1} parent=11 // pred_check_branch
          %551 = sbr.rel (%p549) target = $region52
        $region51: #{tpu_custom_call.1} parent=11 // pred_region
          %s553 = ssub.s32 384, 384
          %554 = vsyncadd [#allocation18], %s553
          %s555 = sshll.u32 [#allocation19], 4
          %s556 = int_to_ptr.vmem [resolvable:$true] %s555
          %561 = dma.hbm_to_vmem [thread:$0]  %s10, 384, %s556, [#allocation18], 64, 64, 4
        $region52: #{tpu_custom_call.1} parent=11 // pred_fallthru
          _
        // Predicated region
        $region53: #{tpu_custom_call.1} parent=11 // pred_check
          %p562 = pneg %p294
        $region54: #{tpu_custom_call.1} parent=11 // pred_check_branch
          %564 = sbr.rel (%p562) target = $region56
        $region55: #{tpu_custom_call.1} parent=11 // pred_region
          %s566 = ssub.s32 384, 384
          %567 = vsyncadd [#allocation21], %s566
          %s568 = sshll.u32 [#allocation20], 4
          %s569 = int_to_ptr.vmem [resolvable:$true] %s568
          %574 = dma.hbm_to_vmem [thread:$0]  %s11, 384, %s569, [#allocation21], 64, 64, 4
        $region56: #{tpu_custom_call.1} parent=11 // pred_fallthru
          _
        // Predicated region
        $region57: #{tpu_custom_call.1} parent=11 // pred_check
          %p575 = pneg %p315
        $region58: #{tpu_custom_call.1} parent=11 // pred_check_branch
          %577 = sbr.rel (%p575) target = $region60
        $region59: #{tpu_custom_call.1} parent=11 // pred_region
          %s579 = ssub.s32 256, 256
          %580 = vsyncadd [#allocation21], %s579
          %s581 = sshll.u32 [#allocation22], 4
          %s582 = int_to_ptr.vmem [resolvable:$true] %s581
          %587 = dma.hbm_to_vmem [thread:$0]  %s12, 256, %s582, [#allocation21], 64, 64, 4
        $region60: #{tpu_custom_call.1} parent=11 // pred_fallthru
          _
        // Predicated region
        $region61: #{tpu_custom_call.1} parent=11 // pred_check
          %p588 = pneg %p336
        $region62: #{tpu_custom_call.1} parent=11 // pred_check_branch
          %590 = sbr.rel (%p588) target = $region64
        $region63: #{tpu_custom_call.1} parent=11 // pred_region
          %s592 = ssub.s32 256, 256
          %593 = vsyncadd [#allocation24], %s592
          %s594 = sshll.u32 [#allocation23], 4
          %s595 = int_to_ptr.vmem [resolvable:$true] %s594
          %600 = dma.hbm_to_vmem [thread:$0]  %s13, 256, %s595, [#allocation24], 64, 64, 4
        $region64: #{tpu_custom_call.1} parent=11 // pred_fallthru
          _
        // Predicated region
        $region65: #{tpu_custom_call.1} parent=11 // pred_check
          %p601 = pneg %p357
        $region66: #{tpu_custom_call.1} parent=11 // pred_check_branch
          %603 = sbr.rel (%p601) target = $region68
        $region67: #{tpu_custom_call.1} parent=11 // pred_region
          %s605 = ssub.s32 384, 384
          %606 = vsyncadd [#allocation24], %s605
          %s607 = sshll.u32 [#allocation25], 4
          %s608 = int_to_ptr.vmem [resolvable:$true] %s607
          %613 = dma.hbm_to_vmem [thread:$0]  %s14, 384, %s608, [#allocation24], 64, 64, 4
        $region68: #{tpu_custom_call.1} parent=11 // pred_fallthru
          _
        // Predicated region
        $region69: #{tpu_custom_call.1} parent=11 // pred_check
          %p614 = pneg %p378
        $region70: #{tpu_custom_call.1} parent=11 // pred_check_branch
          %616 = sbr.rel (%p614) target = $region72
        $region71: #{tpu_custom_call.1} parent=11 // pred_region
          %s618 = ssub.s32 128, 128
          %619 = vsyncadd [#allocation27], %s618
          %s621 = sshll.u32 [#allocation26], 4
          %s622 = int_to_ptr.vmem [resolvable:$true] %s621
          %624 = dma.hbm_to_vmem [thread:$0]  %s15, 128, %s622, [#allocation27]
        $region72: #{tpu_custom_call.1} parent=11 // pred_fallthru
          _
        // Predicated region
        $region73: #{tpu_custom_call.1} parent=11 // pred_check
          %p625 = pneg %p399
        $region74: #{tpu_custom_call.1} parent=11 // pred_check_branch
          %627 = sbr.rel (%p625) target = $region76
        $region75: #{tpu_custom_call.1} parent=11 // pred_region
          %s629 = ssub.s32 128, 128
          %630 = vsyncadd [#allocation27], %s629
          %s632 = sshll.u32 [#allocation28], 4
          %s633 = int_to_ptr.vmem [resolvable:$true] %s632
          %635 = dma.hbm_to_vmem [thread:$0]  %s16, 128, %s633, [#allocation27]
        $region76: #{tpu_custom_call.1} parent=11 // pred_fallthru
          _
      $region12: #{tpu_custom_call.1} parent=5 // pred_fallthru
        _
      %p636 = scmp.lt.s32.totalorder %s37, 2
      // Predicated region
      $region77: #{tpu_custom_call.1} parent=5 // pred_check
        %p637 = pneg %p636
      $region78: #{tpu_custom_call.1} parent=5 // pred_check_branch
        %639 = sbr.rel (%p637) target = $region80
      $region79: #{tpu_custom_call.1} parent=5 // pred_region
        // Predicated region
        $region81: #{tpu_custom_call.1} parent=79 // pred_check
          %p640 = pneg %p57
        $region82: #{tpu_custom_call.1} parent=79 // pred_check_branch
          %642 = sbr.rel (%p640) target = $region84
        $region83: #{tpu_custom_call.1} parent=79 // pred_region
          %s643 = sand.u32 %s47, 1
          %s644 = scalar_lea.sflag [#allocation3], %s643
          %s645 = sand.u32 %s47, 1
          %s646 = smul.addr %s645, 4
          %s647 = scalar_lea.vmem [#allocation2], %s646
          %s649 = ssub.s32 64, 64
          %650 = vsyncadd %s644, %s649
          %s651 = smul.addr %s37, 64
          %s652 = scalar_lea.hbm %s0, %s651
          %s654 = sshll.u32 %s647, 4
          %s655 = int_to_ptr.vmem [resolvable:$true] %s654
          %657 = dma.hbm_to_vmem [thread:$0]  %s652, 64, %s655, %s644
        $region84: #{tpu_custom_call.1} parent=79 // pred_fallthru
          _
      $region80: #{tpu_custom_call.1} parent=5 // pred_fallthru
        _
      %p658 = scmp.le.s32.totalorder 1, %s37
      %p659 = scmp.lt.s32.totalorder %s37, 3
      %p660 = pnand %p658, %p659
      %p661 = pneg %p660
      // Predicated region
      $region85: #{tpu_custom_call.1} parent=5 // pred_check
        _
      $region86: #{tpu_custom_call.1} parent=5 // pred_check_branch
        %663 = sbr.rel (%p660) target = $region88
      $region87: #{tpu_custom_call.1} parent=5 // pred_region
        %s664 = ssub.s32 %s37, 1
        %s665 = sand.u32 %s50, 1
        %s666 = scalar_lea.sflag [#allocation3], %s665
        %s667 = sand.u32 %s50, 1
        %s668 = smul.addr %s667, 4
        %s669 = scalar_lea.vmem [#allocation2], %s668
        // Predicated region
        $region89: #{tpu_custom_call.1} parent=87 // pred_check
          %p670 = pneg %p63
        $region90: #{tpu_custom_call.1} parent=87 // pred_check_branch
          %672 = sbr.rel (%p670) target = $region92
        $region91: #{tpu_custom_call.1} parent=87 // pred_region
          %673 = dma.done %s666, 64
        $region92: #{tpu_custom_call.1} parent=87 // pred_fallthru
          _
        // Predicated region
        $region93: #{tpu_custom_call.1} parent=87 // pred_check
          %p674 = pneg %p84
        $region94: #{tpu_custom_call.1} parent=87 // pred_check_branch
          %676 = sbr.rel (%p674) target = $region96
        $region95: #{tpu_custom_call.1} parent=87 // pred_region
          %677 = dma.done [#allocation6], 384
        $region96: #{tpu_custom_call.1} parent=87 // pred_fallthru
          _
        // Predicated region
        $region97: #{tpu_custom_call.1} parent=87 // pred_check
          %p678 = pneg %p105
        $region98: #{tpu_custom_call.1} parent=87 // pred_check_branch
          %680 = sbr.rel (%p678) target = $region100
        $region99: #{tpu_custom_call.1} parent=87 // pred_region
          %681 = dma.done [#allocation6], 16
        $region100: #{tpu_custom_call.1} parent=87 // pred_fallthru
          _
        // Predicated region
        $region101: #{tpu_custom_call.1} parent=87 // pred_check
          %p682 = pneg %p126
        $region102: #{tpu_custom_call.1} parent=87 // pred_check_branch
          %684 = sbr.rel (%p682) target = $region104
        $region103: #{tpu_custom_call.1} parent=87 // pred_region
          %685 = dma.done [#allocation9], 16
        $region104: #{tpu_custom_call.1} parent=87 // pred_fallthru
          _
        // Predicated region
        $region105: #{tpu_custom_call.1} parent=87 // pred_check
          %p686 = pneg %p147
        $region106: #{tpu_custom_call.1} parent=87 // pred_check_branch
          %688 = sbr.rel (%p686) target = $region108
        $region107: #{tpu_custom_call.1} parent=87 // pred_region
          %689 = dma.done [#allocation9], 192
        $region108: #{tpu_custom_call.1} parent=87 // pred_fallthru
          _
        // Predicated region
        $region109: #{tpu_custom_call.1} parent=87 // pred_check
          %p690 = pneg %p168
        $region110: #{tpu_custom_call.1} parent=87 // pred_check_branch
          %692 = sbr.rel (%p690) target = $region112
        $region111: #{tpu_custom_call.1} parent=87 // pred_region
          %693 = dma.done [#allocation12], 192
        $region112: #{tpu_custom_call.1} parent=87 // pred_fallthru
          _
        // Predicated region
        $region113: #{tpu_custom_call.1} parent=87 // pred_check
          %p694 = pneg %p189
        $region114: #{tpu_custom_call.1} parent=87 // pred_check_branch
          %696 = sbr.rel (%p694) target = $region116
        $region115: #{tpu_custom_call.1} parent=87 // pred_region
          %697 = dma.done [#allocation12], 192
        $region116: #{tpu_custom_call.1} parent=87 // pred_fallthru
          _
        // Predicated region
        $region117: #{tpu_custom_call.1} parent=87 // pred_check
          %p698 = pneg %p210
        $region118: #{tpu_custom_call.1} parent=87 // pred_check_branch
          %700 = sbr.rel (%p698) target = $region120
        $region119: #{tpu_custom_call.1} parent=87 // pred_region
          %701 = dma.done [#allocation15], 384
        $region120: #{tpu_custom_call.1} parent=87 // pred_fallthru
          _
        // Predicated region
        $region121: #{tpu_custom_call.1} parent=87 // pred_check
          %p702 = pneg %p231
        $region122: #{tpu_custom_call.1} parent=87 // pred_check_branch
          %704 = sbr.rel (%p702) target = $region124
        $region123: #{tpu_custom_call.1} parent=87 // pred_region
          %705 = dma.done [#allocation15], 16
        $region124: #{tpu_custom_call.1} parent=87 // pred_fallthru
          _
        // Predicated region
        $region125: #{tpu_custom_call.1} parent=87 // pred_check
          %p706 = pneg %p252
        $region126: #{tpu_custom_call.1} parent=87 // pred_check_branch
          %708 = sbr.rel (%p706) target = $region128
        $region127: #{tpu_custom_call.1} parent=87 // pred_region
          %709 = dma.done [#allocation18], 16
        $region128: #{tpu_custom_call.1} parent=87 // pred_fallthru
          _
        // Predicated region
        $region129: #{tpu_custom_call.1} parent=87 // pred_check
          %p710 = pneg %p273
        $region130: #{tpu_custom_call.1} parent=87 // pred_check_branch
          %712 = sbr.rel (%p710) target = $region132
        $region131: #{tpu_custom_call.1} parent=87 // pred_region
          %713 = dma.done [#allocation18], 384
        $region132: #{tpu_custom_call.1} parent=87 // pred_fallthru
          _
        // Predicated region
        $region133: #{tpu_custom_call.1} parent=87 // pred_check
          %p714 = pneg %p294
        $region134: #{tpu_custom_call.1} parent=87 // pred_check_branch
          %716 = sbr.rel (%p714) target = $region136
        $region135: #{tpu_custom_call.1} parent=87 // pred_region
          %717 = dma.done [#allocation21], 384
        $region136: #{tpu_custom_call.1} parent=87 // pred_fallthru
          _
        // Predicated region
        $region137: #{tpu_custom_call.1} parent=87 // pred_check
          %p718 = pneg %p315
        $region138: #{tpu_custom_call.1} parent=87 // pred_check_branch
          %720 = sbr.rel (%p718) target = $region140
        $region139: #{tpu_custom_call.1} parent=87 // pred_region
          %721 = dma.done [#allocation21], 256
        $region140: #{tpu_custom_call.1} parent=87 // pred_fallthru
          _
        // Predicated region
        $region141: #{tpu_custom_call.1} parent=87 // pred_check
          %p722 = pneg %p336
        $region142: #{tpu_custom_call.1} parent=87 // pred_check_branch
          %724 = sbr.rel (%p722) target = $region144
        $region143: #{tpu_custom_call.1} parent=87 // pred_region
          %725 = dma.done [#allocation24], 256
        $region144: #{tpu_custom_call.1} parent=87 // pred_fallthru
          _
        // Predicated region
        $region145: #{tpu_custom_call.1} parent=87 // pred_check
          %p726 = pneg %p357
        $region146: #{tpu_custom_call.1} parent=87 // pred_check_branch
          %728 = sbr.rel (%p726) target = $region148
        $region147: #{tpu_custom_call.1} parent=87 // pred_region
          %729 = dma.done [#allocation24], 384
        $region148: #{tpu_custom_call.1} parent=87 // pred_fallthru
          _
        // Predicated region
        $region149: #{tpu_custom_call.1} parent=87 // pred_check
          %p730 = pneg %p378
        $region150: #{tpu_custom_call.1} parent=87 // pred_check_branch
          %732 = sbr.rel (%p730) target = $region152
        $region151: #{tpu_custom_call.1} parent=87 // pred_region
          %733 = dma.done [#allocation27], 128
        $region152: #{tpu_custom_call.1} parent=87 // pred_fallthru
          _
        // Predicated region
        $region153: #{tpu_custom_call.1} parent=87 // pred_check
          %p734 = pneg %p399
        $region154: #{tpu_custom_call.1} parent=87 // pred_check_branch
          %736 = sbr.rel (%p734) target = $region156
        $region155: #{tpu_custom_call.1} parent=87 // pred_region
          %737 = dma.done [#allocation27], 128
        $region156: #{tpu_custom_call.1} parent=87 // pred_fallthru
          _
        %s738 = sand.u32 %s50, 1
        %s739 = scalar_lea.sflag [#allocation3], %s738
        %s740 = sand.u32 %s50, 1
        %s741 = smul.addr %s740, 4
        %s742 = scalar_lea.vmem [#allocation2], %s741
        %p743 = pneg %p63
        %p744 = pneg %p60
        %p745 = pneg %p84
        %p746 = pneg %p81
        %p747 = pneg %p105
        %p748 = pneg %p102
        %p749 = pneg %p126
        %p750 = pneg %p123
        %p751 = pneg %p147
        %p752 = pneg %p144
        %p753 = pneg %p168
        %p754 = pneg %p165
        %p755 = pneg %p189
        %p756 = pneg %p186
        %p757 = pneg %p210
        %p758 = pneg %p207
        %p759 = pneg %p231
        %p760 = pneg %p228
        %p761 = pneg %p252
        %p762 = pneg %p249
        %p763 = pneg %p273
        %p764 = pneg %p270
        %p765 = pneg %p294
        %p766 = pneg %p291
        %p767 = pneg %p315
        %p768 = pneg %p312
        %p769 = pneg %p336
        %p770 = pneg %p333
        %p771 = pneg %p357
        %p772 = pneg %p354
        %p773 = pneg %p378
        %p774 = pneg %p375
        %p775 = pneg %p399
        %p776 = pneg %p396
        %p777 = pneg %p425
        %p778 = pneg %p422
        %s779 = sand.u32 %s412, 1
        %s780 = scalar_lea.sflag [#allocation4], %s779
        %s781 = sand.u32 %s412, 1
        %s782 = scalar_lea.vmem [#allocation29], %s781
        %v784 = vld [vmem:[%s669] sm:$0xf]
        %v785 = vld [vmem:[#allocation5] sm:$0xf]
        %v786 = vld [vmem:[#allocation5 + $0x4] sm:$0xf]
        %v787 = vld [vmem:[#allocation5 + $0x8] sm:$0xf]
        %v788 = vld [vmem:[#allocation5 + $0xc] sm:$0xf]
        %v789 = vld [vmem:[#allocation5 + $0x10] sm:$0xf]
        %v790 = vld [vmem:[#allocation5 + $0x14] sm:$0xf]
        %v797 = vunpack.c.l.b16 %v785
        %v798 = vunpack.c.l.b16 %v786
        %v799 = vunpack.c.l.b16 %v787
        %v800 = vunpack.c.l.b16 %v788
        %v801 = vunpack.c.l.b16 %v789
        %v802 = vunpack.c.l.b16 %v790
        %v803 = vpack.c.b16 %v798, %v797
        %v804 = vpack.c.b16 %v800, %v799
        %v805 = vpack.c.b16 %v802, %v801
        %vm809 = vcmask 392192
        %v811 = vsel %vm809, %v784, 0
        %813 = vmatprep.subr.bf16.mxu0 0
        %814 = vmatpush1.bf16.msra.mxu0 %v803
        %815 = vmatprep.subr.bf16.mxu0 0
        %816 = vmatpush1.bf16.msra.mxu0 %v804
        %817 = vmatprep.subr.bf16.mxu0 0
        %818 = vmatpush1.bf16.msra.mxu0 %v805
        %819 = vmatprep.subr.bf16.mxu0 0
        %820 = vmatpush1.bf16.msra.mxu0 0
        %821 = vmatprep.subr.bf16.mxu0 0
        %822 = vmatpush1.bf16.msra.mxu0 0
        %823 = vmatprep.subr.bf16.mxu0 0
        %824 = vmatpush1.bf16.msra.mxu0 0
        %825 = vmatprep.subr.bf16.mxu0 0
        %826 = vmatpush1.bf16.msra.mxu0 0
        %827 = vmatprep.subr.bf16.mxu0 0
        %828 = vmatpush1.bf16.msra.mxu0 0
        %829 = vmatprep.subr.bf16.mxu0 0
        %830 = vmatpush1.bf16.msra.mxu0 0
        %831 = vmatprep.subr.bf16.mxu0 0
        %832 = vmatpush1.bf16.msra.mxu0 0
        %833 = vmatprep.subr.bf16.mxu0 0
        %834 = vmatpush1.bf16.msra.mxu0 0
        %835 = vmatprep.subr.bf16.mxu0 0
        %836 = vmatpush1.bf16.msra.mxu0 0
        %837 = vmatprep.subr.bf16.mxu0 0
        %838 = vmatpush1.bf16.msra.mxu0 0
        %839 = vmatprep.subr.bf16.mxu0 0
        %840 = vmatpush1.bf16.msra.mxu0 0
        %841 = vmatprep.subr.bf16.mxu0 0
        %842 = vmatpush1.bf16.msra.mxu0 0
        %843 = vmatprep.subr.bf16.mxu0 0
        %844 = vmatpush1.bf16.msra.mxu0 0
        %845 = vmatprep.mubr.bf16.mxu0 0
        %846 = vmatmul.mubr.bf16.gmra.mrb[0].mxu0 %v811
        %v847 = vpop.f32.mrb[0].mxu0
        %v848 = vadd.f32 0.0, %v847
        %v849 = vpop.f32.mrb[0].mxu0
        %v850 = vpop.f32.mrb[0].mxu0
        %v851 = vpop.f32.mrb[0].mxu0
        %852 = vdwg.mxu0
        %v853 = vld [vmem:[#allocation7] sm:$0x1]
        %v854 = vld [vmem:[#allocation8] sm:$0x1]
        %vm855 = vcmask 195584
        %v856 = vsel %vm855, %v848, 0.0
        %857 = vadd.xlane.f32.xlu0 %v856
        %v858 = vpop.xlane.xlu0 %857
        %v859 = vrcp.pop 24.0
        %v860 = vmul.f32 %v858, %v859
        %v861 = vsub.f32 %v848, %v860
        %v862 = vmul.f32 %v861, %v861
        %v863 = vsel %vm855, %v862, 0.0
        %864 = vadd.xlane.f32.xlu0 %v863
        %v865 = vpop.xlane.xlu0 %864
        %v866 = vmul.f32 %v865, %v859
        %v867 = vadd.f32 %v866, 1e-05
        %v868 = vrsqrt.pop %v867
        %v869 = vmul.f32 %v861, %v868
        %v871 = vlaneseq
        %v872 = vshrl.u32 %v871, 7
        %v873 = vsub.s32 0, %v872
        %v874 = vrot.slane %v853, %v873
        %v876 = vmul.f32 %v869, %v874
        %v878 = vlaneseq
        %v879 = vshrl.u32 %v878, 7
        %v880 = vsub.s32 0, %v879
        %v881 = vrot.slane %v854, %v880
        %v883 = vadd.f32 %v876, %v881
        %v884 = vpack.c.bf16 %v883, %v883
        %v885 = vld [vmem:[#allocation10] sm:$0xf]
        %v886 = vld [vmem:[#allocation10 + $0x4] sm:$0xf]
        %v887 = vld [vmem:[#allocation10 + $0x8] sm:$0xf]
        %v891 = vunpack.c.l.b16 %v885
        %v892 = vunpack.c.l.b16 %v886
        %v893 = vunpack.c.l.b16 %v887
        %v894 = vpack.c.b16 %v892, %v891
        %v895 = vpack.c.b16 %v893, %v893
        %v898 = vsel %vm855, %v884, 0
        %vm900 = vcmask 1043456
        %v902 = vsel %vm900, %v895, 0
        %904 = vmatprep.subr.bf16.mxu0 0
        %905 = vmatpush1.bf16.msra.mxu0 %v894
        %906 = vmatprep.subr.bf16.mxu0 0
        %907 = vmatpush1.bf16.msra.mxu0 %v902
        %908 = vmatprep.subr.bf16.mxu0 0
        %909 = vmatpush1.bf16.msra.mxu0 0
        %910 = vmatprep.subr.bf16.mxu0 0
        %911 = vmatpush1.bf16.msra.mxu0 0
        %912 = vmatprep.subr.bf16.mxu0 0
        %913 = vmatpush1.bf16.msra.mxu0 0
        %914 = vmatprep.subr.bf16.mxu0 0
        %915 = vmatpush1.bf16.msra.mxu0 0
        %916 = vmatprep.subr.bf16.mxu0 0
        %917 = vmatpush1.bf16.msra.mxu0 0
        %918 = vmatprep.subr.bf16.mxu0 0
        %919 = vmatpush1.bf16.msra.mxu0 0
        %920 = vmatprep.subr.bf16.mxu0 0
        %921 = vmatpush1.bf16.msra.mxu0 0
        %922 = vmatprep.subr.bf16.mxu0 0
        %923 = vmatpush1.bf16.msra.mxu0 0
        %924 = vmatprep.subr.bf16.mxu0 0
        %925 = vmatpush1.bf16.msra.mxu0 0
        %926 = vmatprep.subr.bf16.mxu0 0
        %927 = vmatpush1.bf16.msra.mxu0 0
        %928 = vmatprep.subr.bf16.mxu0 0
        %929 = vmatpush1.bf16.msra.mxu0 0
        %930 = vmatprep.subr.bf16.mxu0 0
        %931 = vmatpush1.bf16.msra.mxu0 0
        %932 = vmatprep.subr.bf16.mxu0 0
        %933 = vmatpush1.bf16.msra.mxu0 0
        %934 = vmatprep.subr.bf16.mxu0 0
        %935 = vmatpush1.bf16.msra.mxu0 0
        %936 = vmatprep.mubr.bf16.mxu0 0
        %937 = vmatmul.mubr.bf16.gmra.mrb[0].mxu0 %v898
        %v938 = vpop.f32.mrb[0].mxu0
        %v939 = vadd.f32 0.0, %v938
        %v940 = vpop.f32.mrb[0].mxu0
        %v941 = vpop.f32.mrb[0].mxu0
        %v942 = vpop.f32.mrb[0].mxu0
        %943 = vdwg.mxu0
        %v944 = vld [vmem:[#allocation11] sm:$0xf]
        %v945 = vld [vmem:[#allocation11 + $0x4] sm:$0xf]
        %v946 = vld [vmem:[#allocation11 + $0x8] sm:$0xf]
        %v950 = vunpack.c.l.b16 %v944
        %v951 = vunpack.c.l.b16 %v945
        %v952 = vunpack.c.l.b16 %v946
        %v953 = vpack.c.b16 %v951, %v950
        %v954 = vpack.c.b16 %v952, %v952
        %v957 = vsel %vm900, %v954, 0
        %959 = vmatprep.subr.bf16.mxu0 0
        %960 = vmatpush1.bf16.msra.mxu0 %v953
        %961 = vmatprep.subr.bf16.mxu0 0
        %962 = vmatpush1.bf16.msra.mxu0 %v957
        %963 = vmatprep.subr.bf16.mxu0 0
        %964 = vmatpush1.bf16.msra.mxu0 0
        %965 = vmatprep.subr.bf16.mxu0 0
        %966 = vmatpush1.bf16.msra.mxu0 0
        %967 = vmatprep.subr.bf16.mxu0 0
        %968 = vmatpush1.bf16.msra.mxu0 0
        %969 = vmatprep.subr.bf16.mxu0 0
        %970 = vmatpush1.bf16.msra.mxu0 0
        %971 = vmatprep.subr.bf16.mxu0 0
        %972 = vmatpush1.bf16.msra.mxu0 0
        %973 = vmatprep.subr.bf16.mxu0 0
        %974 = vmatpush1.bf16.msra.mxu0 0
        %975 = vmatprep.subr.bf16.mxu0 0
        %976 = vmatpush1.bf16.msra.mxu0 0
        %977 = vmatprep.subr.bf16.mxu0 0
        %978 = vmatpush1.bf16.msra.mxu0 0
        %979 = vmatprep.subr.bf16.mxu0 0
        %980 = vmatpush1.bf16.msra.mxu0 0
        %981 = vmatprep.subr.bf16.mxu0 0
        %982 = vmatpush1.bf16.msra.mxu0 0
        %983 = vmatprep.subr.bf16.mxu0 0
        %984 = vmatpush1.bf16.msra.mxu0 0
        %985 = vmatprep.subr.bf16.mxu0 0
        %986 = vmatpush1.bf16.msra.mxu0 0
        %987 = vmatprep.subr.bf16.mxu0 0
        %988 = vmatpush1.bf16.msra.mxu0 0
        %989 = vmatprep.subr.bf16.mxu0 0
        %990 = vmatpush1.bf16.msra.mxu0 0
        %991 = vmatprep.mubr.bf16.mxu0 0
        %992 = vmatmul.mubr.bf16.gmra.mrb[0].mxu0 %v898
        %v993 = vpop.f32.mrb[0].mxu0
        %v994 = vadd.f32 0.0, %v993
        %v995 = vpop.f32.mrb[0].mxu0
        %v996 = vpop.f32.mrb[0].mxu0
        %v997 = vpop.f32.mrb[0].mxu0
        %998 = vdwg.mxu0
        %v999 = vld [vmem:[#allocation13] sm:$0xf]
        %v1000 = vld [vmem:[#allocation13 + $0x4] sm:$0xf]
        %v1001 = vld [vmem:[#allocation13 + $0x8] sm:$0xf]
        %v1005 = vunpack.c.l.b16 %v999
        %v1006 = vunpack.c.l.b16 %v1000
        %v1007 = vunpack.c.l.b16 %v1001
        %v1008 = vpack.c.b16 %v1006, %v1005
        %v1009 = vpack.c.b16 %v1007, %v1007
        %v1012 = vsel %vm900, %v1009, 0
        %1014 = vmatprep.subr.bf16.mxu0 0
        %1015 = vmatpush1.bf16.msra.mxu0 %v1008
        %1016 = vmatprep.subr.bf16.mxu0 0
        %1017 = vmatpush1.bf16.msra.mxu0 %v1012
        %1018 = vmatprep.subr.bf16.mxu0 0
        %1019 = vmatpush1.bf16.msra.mxu0 0
        %1020 = vmatprep.subr.bf16.mxu0 0
        %1021 = vmatpush1.bf16.msra.mxu0 0
        %1022 = vmatprep.subr.bf16.mxu0 0
        %1023 = vmatpush1.bf16.msra.mxu0 0
        %1024 = vmatprep.subr.bf16.mxu0 0
        %1025 = vmatpush1.bf16.msra.mxu0 0
        %1026 = vmatprep.subr.bf16.mxu0 0
        %1027 = vmatpush1.bf16.msra.mxu0 0
        %1028 = vmatprep.subr.bf16.mxu0 0
        %1029 = vmatpush1.bf16.msra.mxu0 0
        %1030 = vmatprep.subr.bf16.mxu0 0
        %1031 = vmatpush1.bf16.msra.mxu0 0
        %1032 = vmatprep.subr.bf16.mxu0 0
        %1033 = vmatpush1.bf16.msra.mxu0 0
        %1034 = vmatprep.subr.bf16.mxu0 0
        %1035 = vmatpush1.bf16.msra.mxu0 0
        %1036 = vmatprep.subr.bf16.mxu0 0
        %1037 = vmatpush1.bf16.msra.mxu0 0
        %1038 = vmatprep.subr.bf16.mxu0 0
        %1039 = vmatpush1.bf16.msra.mxu0 0
        %1040 = vmatprep.subr.bf16.mxu0 0
        %1041 = vmatpush1.bf16.msra.mxu0 0
        %1042 = vmatprep.subr.bf16.mxu0 0
        %1043 = vmatpush1.bf16.msra.mxu0 0
        %1044 = vmatprep.subr.bf16.mxu0 0
        %1045 = vmatpush1.bf16.msra.mxu0 0
        %1046 = vmatprep.mubr.bf16.mxu0 0
        %1047 = vmatmul.mubr.bf16.gmra.mrb[0].mxu0 %v898
        %v1048 = vpop.f32.mrb[0].mxu0
        %v1049 = vadd.f32 0.0, %v1048
        %v1050 = vpop.f32.mrb[0].mxu0
        %v1051 = vpop.f32.mrb[0].mxu0
        %v1052 = vpop.f32.mrb[0].mxu0
        %1053 = vdwg.mxu0
        %v1054 = vld [vmem:[#allocation14] sm:$0xf]
        %v1055 = vld [vmem:[#allocation14 + $0x4] sm:$0xf]
        %v1056 = vld [vmem:[#allocation14 + $0x8] sm:$0xf]
        %v1057 = vld [vmem:[#allocation14 + $0xc] sm:$0xf]
        %v1058 = vld [vmem:[#allocation14 + $0x10] sm:$0xf]
        %v1059 = vld [vmem:[#allocation14 + $0x14] sm:$0xf]
        %v1066 = vunpack.c.l.b16 %v1054
        %v1067 = vunpack.c.l.b16 %v1055
        %v1068 = vunpack.c.l.b16 %v1056
        %v1069 = vunpack.c.l.b16 %v1057
        %v1070 = vunpack.c.l.b16 %v1058
        %v1071 = vunpack.c.l.b16 %v1059
        %v1072 = vpack.c.b16 %v1067, %v1066
        %v1073 = vpack.c.b16 %v1069, %v1068
        %v1074 = vpack.c.b16 %v1071, %v1070
        %1078 = vmatprep.subr.bf16.mxu0 0
        %1079 = vmatpush1.bf16.msra.mxu0 %v1072
        %1080 = vmatprep.subr.bf16.mxu0 0
        %1081 = vmatpush1.bf16.msra.mxu0 %v1073
        %1082 = vmatprep.subr.bf16.mxu0 0
        %1083 = vmatpush1.bf16.msra.mxu0 %v1074
        %1084 = vmatprep.subr.bf16.mxu0 0
        %1085 = vmatpush1.bf16.msra.mxu0 0
        %1086 = vmatprep.subr.bf16.mxu0 0
        %1087 = vmatpush1.bf16.msra.mxu0 0
        %1088 = vmatprep.subr.bf16.mxu0 0
        %1089 = vmatpush1.bf16.msra.mxu0 0
        %1090 = vmatprep.subr.bf16.mxu0 0
        %1091 = vmatpush1.bf16.msra.mxu0 0
        %1092 = vmatprep.subr.bf16.mxu0 0
        %1093 = vmatpush1.bf16.msra.mxu0 0
        %1094 = vmatprep.subr.bf16.mxu0 0
        %1095 = vmatpush1.bf16.msra.mxu0 0
        %1096 = vmatprep.subr.bf16.mxu0 0
        %1097 = vmatpush1.bf16.msra.mxu0 0
        %1098 = vmatprep.subr.bf16.mxu0 0
        %1099 = vmatpush1.bf16.msra.mxu0 0
        %1100 = vmatprep.subr.bf16.mxu0 0
        %1101 = vmatpush1.bf16.msra.mxu0 0
        %1102 = vmatprep.subr.bf16.mxu0 0
        %1103 = vmatpush1.bf16.msra.mxu0 0
        %1104 = vmatprep.subr.bf16.mxu0 0
        %1105 = vmatpush1.bf16.msra.mxu0 0
        %1106 = vmatprep.subr.bf16.mxu0 0
        %1107 = vmatpush1.bf16.msra.mxu0 0
        %1108 = vmatprep.subr.bf16.mxu0 0
        %1109 = vmatpush1.bf16.msra.mxu0 0
        %1110 = vmatprep.mubr.bf16.mxu0 0
        %1111 = vmatmul.mubr.bf16.gmra.mrb[0].mxu0 %v811
        %v1112 = vpop.f32.mrb[0].mxu0
        %v1113 = vadd.f32 0.0, %v1112
        %v1114 = vpop.f32.mrb[0].mxu0
        %v1115 = vpop.f32.mrb[0].mxu0
        %v1116 = vpop.f32.mrb[0].mxu0
        %1117 = vdwg.mxu0
        %v1118 = vld [vmem:[#allocation16] sm:$0x1]
        %v1119 = vld [vmem:[#allocation17] sm:$0x1]
        %vm1120 = vcmask 261120
        %v1121 = vsel %vm1120, %v1113, 0.0
        %1122 = vadd.xlane.f32.xlu0 %v1121
        %v1123 = vpop.xlane.xlu0 %1122
        %v1124 = vrcp.pop 32.0
        %v1125 = vmul.f32 %v1123, %v1124
        %v1126 = vsub.f32 %v1113, %v1125
        %v1127 = vmul.f32 %v1126, %v1126
        %v1128 = vsel %vm1120, %v1127, 0.0
        %1129 = vadd.xlane.f32.xlu0 %v1128
        %v1130 = vpop.xlane.xlu0 %1129
        %v1131 = vmul.f32 %v1130, %v1124
        %v1132 = vadd.f32 %v1131, 1e-05
        %v1133 = vrsqrt.pop %v1132
        %v1134 = vmul.f32 %v1126, %v1133
        %v1136 = vlaneseq
        %v1137 = vshrl.u32 %v1136, 7
        %v1138 = vsub.s32 0, %v1137
        %v1139 = vrot.slane %v1118, %v1138
        %v1141 = vmul.f32 %v1134, %v1139
        %v1143 = vlaneseq
        %v1144 = vshrl.u32 %v1143, 7
        %v1145 = vsub.s32 0, %v1144
        %v1146 = vrot.slane %v1119, %v1145
        %v1148 = vadd.f32 %v1141, %v1146
        %v1149 = vpack.c.bf16 %v1148, %v1148
        %v1150 = vld [vmem:[#allocation22] sm:$0xf]
        %v1151 = vld [vmem:[#allocation22 + $0x4] sm:$0xf]
        %v1152 = vld [vmem:[#allocation22 + $0x8] sm:$0xf]
        %v1153 = vld [vmem:[#allocation22 + $0xc] sm:$0xf]
        %v1158 = vunpack.c.l.b16 %v1150
        %v1159 = vunpack.c.l.b16 %v1151
        %v1160 = vunpack.c.l.b16 %v1152
        %v1161 = vunpack.c.l.b16 %v1153
        %v1162 = vpack.c.b16 %v1159, %v1158
        %v1163 = vpack.c.b16 %v1161, %v1160
        %v1167 = vsel %vm1120, %v1149, 0
        %1169 = vmatprep.subr.bf16.mxu0 0
        %1170 = vmatpush1.bf16.msra.mxu0 %v1162
        %1171 = vmatprep.subr.bf16.mxu0 0
        %1172 = vmatpush1.bf16.msra.mxu0 %v1163
        %1173 = vmatprep.subr.bf16.mxu0 0
        %1174 = vmatpush1.bf16.msra.mxu0 0
        %1175 = vmatprep.subr.bf16.mxu0 0
        %1176 = vmatpush1.bf16.msra.mxu0 0
        %1177 = vmatprep.subr.bf16.mxu0 0
        %1178 = vmatpush1.bf16.msra.mxu0 0
        %1179 = vmatprep.subr.bf16.mxu0 0
        %1180 = vmatpush1.bf16.msra.mxu0 0
        %1181 = vmatprep.subr.bf16.mxu0 0
        %1182 = vmatpush1.bf16.msra.mxu0 0
        %1183 = vmatprep.subr.bf16.mxu0 0
        %1184 = vmatpush1.bf16.msra.mxu0 0
        %1185 = vmatprep.subr.bf16.mxu0 0
        %1186 = vmatpush1.bf16.msra.mxu0 0
        %1187 = vmatprep.subr.bf16.mxu0 0
        %1188 = vmatpush1.bf16.msra.mxu0 0
        %1189 = vmatprep.subr.bf16.mxu0 0
        %1190 = vmatpush1.bf16.msra.mxu0 0
        %1191 = vmatprep.subr.bf16.mxu0 0
        %1192 = vmatpush1.bf16.msra.mxu0 0
        %1193 = vmatprep.subr.bf16.mxu0 0
        %1194 = vmatpush1.bf16.msra.mxu0 0
        %1195 = vmatprep.subr.bf16.mxu0 0
        %1196 = vmatpush1.bf16.msra.mxu0 0
        %1197 = vmatprep.subr.bf16.mxu0 0
        %1198 = vmatpush1.bf16.msra.mxu0 0
        %1199 = vmatprep.subr.bf16.mxu0 0
        %1200 = vmatpush1.bf16.msra.mxu0 0
        %1201 = vmatprep.mubr.bf16.mxu0 0
        %1202 = vmatmul.mubr.bf16.gmra.mrb[0].mxu0 %v1167
        %v1203 = vpop.f32.mrb[0].mxu0
        %v1204 = vadd.f32 0.0, %v1203
        %v1205 = vpop.f32.mrb[0].mxu0
        %v1206 = vpop.f32.mrb[0].mxu0
        %v1207 = vpop.f32.mrb[0].mxu0
        %1208 = vdwg.mxu0
        %v1209 = vld [vmem:[#allocation23] sm:$0xf]
        %v1210 = vld [vmem:[#allocation23 + $0x4] sm:$0xf]
        %v1211 = vld [vmem:[#allocation23 + $0x8] sm:$0xf]
        %v1212 = vld [vmem:[#allocation23 + $0xc] sm:$0xf]
        %v1217 = vunpack.c.l.b16 %v1209
        %v1218 = vunpack.c.l.b16 %v1210
        %v1219 = vunpack.c.l.b16 %v1211
        %v1220 = vunpack.c.l.b16 %v1212
        %v1221 = vpack.c.b16 %v1218, %v1217
        %v1222 = vpack.c.b16 %v1220, %v1219
        %1225 = vmatprep.subr.bf16.mxu0 0
        %1226 = vmatpush1.bf16.msra.mxu0 %v1221
        %1227 = vmatprep.subr.bf16.mxu0 0
        %1228 = vmatpush1.bf16.msra.mxu0 %v1222
        %1229 = vmatprep.subr.bf16.mxu0 0
        %1230 = vmatpush1.bf16.msra.mxu0 0
        %1231 = vmatprep.subr.bf16.mxu0 0
        %1232 = vmatpush1.bf16.msra.mxu0 0
        %1233 = vmatprep.subr.bf16.mxu0 0
        %1234 = vmatpush1.bf16.msra.mxu0 0
        %1235 = vmatprep.subr.bf16.mxu0 0
        %1236 = vmatpush1.bf16.msra.mxu0 0
        %1237 = vmatprep.subr.bf16.mxu0 0
        %1238 = vmatpush1.bf16.msra.mxu0 0
        %1239 = vmatprep.subr.bf16.mxu0 0
        %1240 = vmatpush1.bf16.msra.mxu0 0
        %1241 = vmatprep.subr.bf16.mxu0 0
        %1242 = vmatpush1.bf16.msra.mxu0 0
        %1243 = vmatprep.subr.bf16.mxu0 0
        %1244 = vmatpush1.bf16.msra.mxu0 0
        %1245 = vmatprep.subr.bf16.mxu0 0
        %1246 = vmatpush1.bf16.msra.mxu0 0
        %1247 = vmatprep.subr.bf16.mxu0 0
        %1248 = vmatpush1.bf16.msra.mxu0 0
        %1249 = vmatprep.subr.bf16.mxu0 0
        %1250 = vmatpush1.bf16.msra.mxu0 0
        %1251 = vmatprep.subr.bf16.mxu0 0
        %1252 = vmatpush1.bf16.msra.mxu0 0
        %1253 = vmatprep.subr.bf16.mxu0 0
        %1254 = vmatpush1.bf16.msra.mxu0 0
        %1255 = vmatprep.subr.bf16.mxu0 0
        %1256 = vmatpush1.bf16.msra.mxu0 0
        %1257 = vmatprep.mubr.bf16.mxu0 0
        %1258 = vmatmul.mubr.bf16.gmra.mrb[0].mxu0 %v1167
        %v1259 = vpop.f32.mrb[0].mxu0
        %v1260 = vadd.f32 0.0, %v1259
        %v1261 = vpop.f32.mrb[0].mxu0
        %v1262 = vpop.f32.mrb[0].mxu0
        %v1263 = vpop.f32.mrb[0].mxu0
        %1264 = vdwg.mxu0
        %v1265 = vpack.c.bf16 %v1260, %v1260
        %v1266 = vld [vmem:[#allocation19] sm:$0xf]
        %v1267 = vld [vmem:[#allocation19 + $0x4] sm:$0xf]
        %v1268 = vld [vmem:[#allocation19 + $0x8] sm:$0xf]
        %v1269 = vld [vmem:[#allocation19 + $0xc] sm:$0xf]
        %v1270 = vld [vmem:[#allocation19 + $0x10] sm:$0xf]
        %v1271 = vld [vmem:[#allocation19 + $0x14] sm:$0xf]
        %v1278 = vunpack.c.l.b16 %v1266
        %v1279 = vunpack.c.l.b16 %v1267
        %v1280 = vunpack.c.l.b16 %v1268
        %v1281 = vunpack.c.l.b16 %v1269
        %v1282 = vunpack.c.l.b16 %v1270
        %v1283 = vunpack.c.l.b16 %v1271
        %v1284 = vpack.c.b16 %v1279, %v1278
        %v1285 = vpack.c.b16 %v1281, %v1280
        %v1286 = vpack.c.b16 %v1283, %v1282
        %1290 = vmatprep.subr.bf16.mxu0 0
        %1291 = vmatpush1.bf16.msra.mxu0 %v1284
        %1292 = vmatprep.subr.bf16.mxu0 0
        %1293 = vmatpush1.bf16.msra.mxu0 %v1285
        %1294 = vmatprep.subr.bf16.mxu0 0
        %1295 = vmatpush1.bf16.msra.mxu0 %v1286
        %1296 = vmatprep.subr.bf16.mxu0 0
        %1297 = vmatpush1.bf16.msra.mxu0 0
        %1298 = vmatprep.subr.bf16.mxu0 0
        %1299 = vmatpush1.bf16.msra.mxu0 0
        %1300 = vmatprep.subr.bf16.mxu0 0
        %1301 = vmatpush1.bf16.msra.mxu0 0
        %1302 = vmatprep.subr.bf16.mxu0 0
        %1303 = vmatpush1.bf16.msra.mxu0 0
        %1304 = vmatprep.subr.bf16.mxu0 0
        %1305 = vmatpush1.bf16.msra.mxu0 0
        %1306 = vmatprep.subr.bf16.mxu0 0
        %1307 = vmatpush1.bf16.msra.mxu0 0
        %1308 = vmatprep.subr.bf16.mxu0 0
        %1309 = vmatpush1.bf16.msra.mxu0 0
        %1310 = vmatprep.subr.bf16.mxu0 0
        %1311 = vmatpush1.bf16.msra.mxu0 0
        %1312 = vmatprep.subr.bf16.mxu0 0
        %1313 = vmatpush1.bf16.msra.mxu0 0
        %1314 = vmatprep.subr.bf16.mxu0 0
        %1315 = vmatpush1.bf16.msra.mxu0 0
        %1316 = vmatprep.subr.bf16.mxu0 0
        %1317 = vmatpush1.bf16.msra.mxu0 0
        %1318 = vmatprep.subr.bf16.mxu0 0
        %1319 = vmatpush1.bf16.msra.mxu0 0
        %1320 = vmatprep.subr.bf16.mxu0 0
        %1321 = vmatpush1.bf16.msra.mxu0 0
        %1322 = vmatprep.mubr.bf16.mxu0 0
        %1323 = vmatmul.mubr.bf16.gmra.mrb[0].mxu0 %v811
        %v1324 = vpop.f32.mrb[0].mxu0
        %v1325 = vadd.f32 0.0, %v1324
        %v1326 = vpop.f32.mrb[0].mxu0
        %v1327 = vpop.f32.mrb[0].mxu0
        %v1328 = vpop.f32.mrb[0].mxu0
        %1329 = vdwg.mxu0
        %v1330 = vld [vmem:[#allocation20] sm:$0xf]
        %v1331 = vld [vmem:[#allocation20 + $0x4] sm:$0xf]
        %v1332 = vld [vmem:[#allocation20 + $0x8] sm:$0xf]
        %v1333 = vld [vmem:[#allocation20 + $0xc] sm:$0xf]
        %v1334 = vld [vmem:[#allocation20 + $0x10] sm:$0xf]
        %v1335 = vld [vmem:[#allocation20 + $0x14] sm:$0xf]
        %v1342 = vunpack.c.l.b16 %v1330
        %v1343 = vunpack.c.l.b16 %v1331
        %v1344 = vunpack.c.l.b16 %v1332
        %v1345 = vunpack.c.l.b16 %v1333
        %v1346 = vunpack.c.l.b16 %v1334
        %v1347 = vunpack.c.l.b16 %v1335
        %v1348 = vpack.c.b16 %v1343, %v1342
        %v1349 = vpack.c.b16 %v1345, %v1344
        %v1350 = vpack.c.b16 %v1347, %v1346
        %1354 = vmatprep.subr.bf16.mxu0 0
        %1355 = vmatpush1.bf16.msra.mxu0 %v1348
        %1356 = vmatprep.subr.bf16.mxu0 0
        %1357 = vmatpush1.bf16.msra.mxu0 %v1349
        %1358 = vmatprep.subr.bf16.mxu0 0
        %1359 = vmatpush1.bf16.msra.mxu0 %v1350
        %1360 = vmatprep.subr.bf16.mxu0 0
        %1361 = vmatpush1.bf16.msra.mxu0 0
        %1362 = vmatprep.subr.bf16.mxu0 0
        %1363 = vmatpush1.bf16.msra.mxu0 0
        %1364 = vmatprep.subr.bf16.mxu0 0
        %1365 = vmatpush1.bf16.msra.mxu0 0
        %1366 = vmatprep.subr.bf16.mxu0 0
        %1367 = vmatpush1.bf16.msra.mxu0 0
        %1368 = vmatprep.subr.bf16.mxu0 0
        %1369 = vmatpush1.bf16.msra.mxu0 0
        %1370 = vmatprep.subr.bf16.mxu0 0
        %1371 = vmatpush1.bf16.msra.mxu0 0
        %1372 = vmatprep.subr.bf16.mxu0 0
        %1373 = vmatpush1.bf16.msra.mxu0 0
        %1374 = vmatprep.subr.bf16.mxu0 0
        %1375 = vmatpush1.bf16.msra.mxu0 0
        %1376 = vmatprep.subr.bf16.mxu0 0
        %1377 = vmatpush1.bf16.msra.mxu0 0
        %1378 = vmatprep.subr.bf16.mxu0 0
        %1379 = vmatpush1.bf16.msra.mxu0 0
        %1380 = vmatprep.subr.bf16.mxu0 0
        %1381 = vmatpush1.bf16.msra.mxu0 0
        %1382 = vmatprep.subr.bf16.mxu0 0
        %1383 = vmatpush1.bf16.msra.mxu0 0
        %1384 = vmatprep.subr.bf16.mxu0 0
        %1385 = vmatpush1.bf16.msra.mxu0 0
        %1386 = vmatprep.mubr.bf16.mxu0 0
        %1387 = vmatmul.mubr.bf16.gmra.mrb[0].mxu0 %v811
        %v1388 = vpop.f32.mrb[0].mxu0
        %v1389 = vadd.f32 0.0, %v1388
        %v1390 = vpop.f32.mrb[0].mxu0
        %v1391 = vpop.f32.mrb[0].mxu0
        %v1392 = vpop.f32.mrb[0].mxu0
        %1393 = vdwg.mxu0
        %v1394 = vld [vmem:[#allocation26] sm:$0xff]
        %v1395 = vld [vmem:[#allocation28] sm:$0xff]
        %v1396 = vmul.f32 %v1325, %v1394
        %v1397 = vmul.f32 %v1389, %v1395
        %v1398 = vsub.f32 %v1396, %v1397
        %v1399 = vmul.f32 %v1389, %v1394
        %v1400 = vmul.f32 %v1325, %v1395
        %v1401 = vadd.f32 %v1399, %v1400
        %v1402 = vlaneseq
        %v1403 = vshrl.u32 %v1402, 7
        %v1404 = vlaneseq
        %v1405 = vand.u32 %v1404, 127
        %vm1406 = vcmp.ge.s32.totalorder %v1403, %v1405
        %v1407 = vmul.f32 %v994, %v1394
        %v1408 = vmul.f32 %v1049, %v1395
        %v1409 = vsub.f32 %v1407, %v1408
        %v1410 = vmul.f32 %v1049, %v1394
        %v1411 = vmul.f32 %v994, %v1395
        %v1412 = vadd.f32 %v1410, %v1411
        %1414 = vrot.lane.b32.xlu0 %v1409, 6
        %v1415 = vpop.permute.xlu0 %1414
        %1418 = vrot.lane.b32.xlu0 %v1412, 9
        %v1419 = vpop.permute.xlu0 %1418
        %vm1421 = vcmask 48128
        %v1422 = vsel %vm1421, %v939, %v1415
        %vm1423 = vcmask 72704
        %v1424 = vsel %vm1423, %v1422, %v1419
        %v1425 = vpack.c.bf16 %v1424, %v1424
        %1427 = vrot.lane.b32.xlu0 %v1398, 6
        %v1428 = vpop.permute.xlu0 %1427
        %1431 = vrot.lane.b32.xlu0 %v1401, 9
        %v1432 = vpop.permute.xlu0 %1431
        %v1434 = vsel %vm1421, %v1204, %v1428
        %v1435 = vsel %vm1423, %v1434, %v1432
        %v1436 = vpack.c.bf16 %v1435, %v1435
        %vm1437 = vcmask 97280
        %v1439 = vsel %vm1437, %v1425, 0
        %v1442 = vsel %vm1437, %v1436, 0
        %1444 = vmatprep.subr.bf16.mxu0 0
        %1445 = vmatpush1.bf16.xpose.msra.mxu0 %v1442
        %1446 = vmatprep.subr.bf16.mxu0 0
        %1447 = vmatpush1.bf16.xpose.msra.mxu0 0
        %1448 = vmatprep.subr.bf16.mxu0 0
        %1449 = vmatpush1.bf16.xpose.msra.mxu0 0
        %1450 = vmatprep.subr.bf16.mxu0 0
        %1451 = vmatpush1.bf16.xpose.msra.mxu0 0
        %1452 = vmatprep.subr.bf16.mxu0 0
        %1453 = vmatpush1.bf16.xpose.msra.mxu0 0
        %1454 = vmatprep.subr.bf16.mxu0 0
        %1455 = vmatpush1.bf16.xpose.msra.mxu0 0
        %1456 = vmatprep.subr.bf16.mxu0 0
        %1457 = vmatpush1.bf16.xpose.msra.mxu0 0
        %1458 = vmatprep.subr.bf16.mxu0 0
        %1459 = vmatpush1.bf16.xpose.msra.mxu0 0
        %1460 = vmatprep.subr.bf16.mxu0 0
        %1461 = vmatpush1.bf16.xpose.msra.mxu0 0
        %1462 = vmatprep.subr.bf16.mxu0 0
        %1463 = vmatpush1.bf16.xpose.msra.mxu0 0
        %1464 = vmatprep.subr.bf16.mxu0 0
        %1465 = vmatpush1.bf16.xpose.msra.mxu0 0
        %1466 = vmatprep.subr.bf16.mxu0 0
        %1467 = vmatpush1.bf16.xpose.msra.mxu0 0
        %1468 = vmatprep.subr.bf16.mxu0 0
        %1469 = vmatpush1.bf16.xpose.msra.mxu0 0
        %1470 = vmatprep.subr.bf16.mxu0 0
        %1471 = vmatpush1.bf16.xpose.msra.mxu0 0
        %1472 = vmatprep.subr.bf16.mxu0 0
        %1473 = vmatpush1.bf16.xpose.msra.mxu0 0
        %1474 = vmatprep.subr.bf16.mxu0 0
        %1475 = vmatpush1.bf16.xpose.msra.mxu0 0
        %1476 = vmatprep.mubr.bf16.mxu0 0
        %1477 = vmatmul.mubr.bf16.gmra.mrb[0].mxu0 %v1439
        %v1478 = vpop.f32.mrb[0].mxu0
        %v1479 = vadd.f32 0.0, %v1478
        %v1480 = vpop.f32.mrb[0].mxu0
        %v1481 = vpop.f32.mrb[0].mxu0
        %v1482 = vpop.f32.mrb[0].mxu0
        %1483 = vdwg.mxu0
        %v1484 = vsel %vm1406, %v1479, -1e+30
        %vm1485 = vcmask 64512
        %v1486 = vsel %vm1485, %v1484, -inf
        %1487 = vmax.xlane.f32.xlu0 %v1486
        %v1488 = vpop.xlane.xlu0 %1487
        %v1489 = vsub.f32 %v1484, %v1488
        %v1490 = vmul.f32 %v1489, 1.442695
        %v1491 = vpow.pop %v1490
        %v1492 = vsel %vm1485, %v1491, 0.0
        %1493 = vadd.xlane.f32.xlu0 %v1492
        %v1494 = vpop.xlane.xlu0 %1493
        %v1495 = vrcp.pop %v1494
        %v1496 = vmul.f32 %v1491, %v1495
        %v1497 = vsel %vm1485, %v1496, 0.0
        %v1498 = vrot.slane %v1497, 4
        %v1499 = vadd.f32 %v1497, %v1498
        %v1500 = vrot.slane %v1499, 2
        %v1501 = vadd.f32 %v1499, %v1500
        %v1502 = vrot.slane %v1501, 1
        %v1503 = vadd.f32 %v1501, %v1502
        %v1504 = vmul.f32 %v1503, 0.125
        %v1505 = vpack.c.bf16 %v1504, %v1504
        %v1507 = vsel %vm1485, %v1505, 0
        %v1510 = vsel %vm900, %v1265, 0
        %1512 = vmatprep.subr.bf16.mxu0 0
        %1513 = vmatpush1.bf16.msra.mxu0 %v1510
        %1514 = vmatprep.subr.bf16.mxu0 0
        %1515 = vmatpush1.bf16.msra.mxu0 0
        %1516 = vmatprep.subr.bf16.mxu0 0
        %1517 = vmatpush1.bf16.msra.mxu0 0
        %1518 = vmatprep.subr.bf16.mxu0 0
        %1519 = vmatpush1.bf16.msra.mxu0 0
        %1520 = vmatprep.subr.bf16.mxu0 0
        %1521 = vmatpush1.bf16.msra.mxu0 0
        %1522 = vmatprep.subr.bf16.mxu0 0
        %1523 = vmatpush1.bf16.msra.mxu0 0
        %1524 = vmatprep.subr.bf16.mxu0 0
        %1525 = vmatpush1.bf16.msra.mxu0 0
        %1526 = vmatprep.subr.bf16.mxu0 0
        %1527 = vmatpush1.bf16.msra.mxu0 0
        %1528 = vmatprep.subr.bf16.mxu0 0
        %1529 = vmatpush1.bf16.msra.mxu0 0
        %1530 = vmatprep.subr.bf16.mxu0 0
        %1531 = vmatpush1.bf16.msra.mxu0 0
        %1532 = vmatprep.subr.bf16.mxu0 0
        %1533 = vmatpush1.bf16.msra.mxu0 0
        %1534 = vmatprep.subr.bf16.mxu0 0
        %1535 = vmatpush1.bf16.msra.mxu0 0
        %1536 = vmatprep.subr.bf16.mxu0 0
        %1537 = vmatpush1.bf16.msra.mxu0 0
        %1538 = vmatprep.subr.bf16.mxu0 0
        %1539 = vmatpush1.bf16.msra.mxu0 0
        %1540 = vmatprep.subr.bf16.mxu0 0
        %1541 = vmatpush1.bf16.msra.mxu0 0
        %1542 = vmatprep.subr.bf16.mxu0 0
        %1543 = vmatpush1.bf16.msra.mxu0 0
        %1544 = vmatprep.mubr.bf16.mxu0 0
        %1545 = vmatmul.mubr.bf16.gmra.mrb[0].mxu0 %v1507
        %v1546 = vpop.f32.mrb[0].mxu0
        %v1547 = vadd.f32 0.0, %v1546
        %v1548 = vpop.f32.mrb[0].mxu0
        %v1549 = vpop.f32.mrb[0].mxu0
        %v1550 = vpop.f32.mrb[0].mxu0
        %1551 = vdwg.mxu0
        %1553 = vrot.lane.b32.xlu0 %v1394, 3
        %v1554 = vpop.permute.xlu0 %1553
        %v1556 = vmul.f32 %v994, %v1554
        %1558 = vrot.lane.b32.xlu0 %v1395, 3
        %v1559 = vpop.permute.xlu0 %1558
        %v1561 = vmul.f32 %v1049, %v1559
        %v1562 = vsub.f32 %v1556, %v1561
        %v1563 = vmul.f32 %v1049, %v1554
        %v1564 = vmul.f32 %v994, %v1559
        %v1565 = vadd.f32 %v1563, %v1564
        %1567 = vrot.lane.b32.xlu0 %v939, 122
        %v1568 = vpop.permute.xlu0 %1567
        %1571 = vrot.lane.b32.xlu0 %v1562, 3
        %v1572 = vpop.permute.xlu0 %1571
        %1575 = vrot.lane.b32.xlu0 %v1565, 6
        %v1576 = vpop.permute.xlu0 %1575
        %v1578 = vsel %vm1421, %v1568, %v1572
        %v1579 = vsel %vm1423, %v1578, %v1576
        %v1580 = vpack.c.bf16 %v1579, %v1579
        %1582 = vrot.lane.b32.xlu0 %v1204, 122
        %v1583 = vpop.permute.xlu0 %1582
        %v1585 = vsel %vm1421, %v1583, %v1428
        %v1586 = vsel %vm1423, %v1585, %v1432
        %v1587 = vpack.c.bf16 %v1586, %v1586
        %v1589 = vsel %vm1437, %v1580, 0
        %v1592 = vsel %vm1437, %v1587, 0
        %1594 = vmatprep.subr.bf16.mxu0 0
        %1595 = vmatpush1.bf16.xpose.msra.mxu0 %v1592
        %1596 = vmatprep.subr.bf16.mxu0 0
        %1597 = vmatpush1.bf16.xpose.msra.mxu0 0
        %1598 = vmatprep.subr.bf16.mxu0 0
        %1599 = vmatpush1.bf16.xpose.msra.mxu0 0
        %1600 = vmatprep.subr.bf16.mxu0 0
        %1601 = vmatpush1.bf16.xpose.msra.mxu0 0
        %1602 = vmatprep.subr.bf16.mxu0 0
        %1603 = vmatpush1.bf16.xpose.msra.mxu0 0
        %1604 = vmatprep.subr.bf16.mxu0 0
        %1605 = vmatpush1.bf16.xpose.msra.mxu0 0
        %1606 = vmatprep.subr.bf16.mxu0 0
        %1607 = vmatpush1.bf16.xpose.msra.mxu0 0
        %1608 = vmatprep.subr.bf16.mxu0 0
        %1609 = vmatpush1.bf16.xpose.msra.mxu0 0
        %1610 = vmatprep.subr.bf16.mxu0 0
        %1611 = vmatpush1.bf16.xpose.msra.mxu0 0
        %1612 = vmatprep.subr.bf16.mxu0 0
        %1613 = vmatpush1.bf16.xpose.msra.mxu0 0
        %1614 = vmatprep.subr.bf16.mxu0 0
        %1615 = vmatpush1.bf16.xpose.msra.mxu0 0
        %1616 = vmatprep.subr.bf16.mxu0 0
        %1617 = vmatpush1.bf16.xpose.msra.mxu0 0
        %1618 = vmatprep.subr.bf16.mxu0 0
        %1619 = vmatpush1.bf16.xpose.msra.mxu0 0
        %1620 = vmatprep.subr.bf16.mxu0 0
        %1621 = vmatpush1.bf16.xpose.msra.mxu0 0
        %1622 = vmatprep.subr.bf16.mxu0 0
        %1623 = vmatpush1.bf16.xpose.msra.mxu0 0
        %1624 = vmatprep.subr.bf16.mxu0 0
        %1625 = vmatpush1.bf16.xpose.msra.mxu0 0
        %1626 = vmatprep.mubr.bf16.mxu0 0
        %1627 = vmatmul.mubr.bf16.gmra.mrb[0].mxu0 %v1589
        %v1628 = vpop.f32.mrb[0].mxu0
        %v1629 = vadd.f32 0.0, %v1628
        %v1630 = vpop.f32.mrb[0].mxu0
        %v1631 = vpop.f32.mrb[0].mxu0
        %v1632 = vpop.f32.mrb[0].mxu0
        %1633 = vdwg.mxu0
        %v1634 = vsel %vm1406, %v1629, -1e+30
        %v1635 = vsel %vm1485, %v1634, -inf
        %1636 = vmax.xlane.f32.xlu0 %v1635
        %v1637 = vpop.xlane.xlu0 %1636
        %v1638 = vsub.f32 %v1634, %v1637
        %v1639 = vmul.f32 %v1638, 1.442695
        %v1640 = vpow.pop %v1639
        %v1641 = vsel %vm1485, %v1640, 0.0
        %1642 = vadd.xlane.f32.xlu0 %v1641
        %v1643 = vpop.xlane.xlu0 %1642
        %v1644 = vrcp.pop %v1643
        %v1645 = vmul.f32 %v1640, %v1644
        %v1646 = vsel %vm1485, %v1645, 0.0
        %v1647 = vrot.slane %v1646, 4
        %v1648 = vadd.f32 %v1646, %v1647
        %v1649 = vrot.slane %v1648, 2
        %v1650 = vadd.f32 %v1648, %v1649
        %v1651 = vrot.slane %v1650, 1
        %v1652 = vadd.f32 %v1650, %v1651
        %v1653 = vmul.f32 %v1652, 0.125
        %v1654 = vpack.c.bf16 %v1653, %v1653
        %1656 = vrot.lane.b32.xlu0 %v1265, 116
        %v1657 = vpop.permute.xlu0 %1656
        %v1659 = vsel %vm1485, %v1654, 0
        %v1662 = vsel %vm900, %v1657, 0
        %1664 = vmatprep.subr.bf16.mxu0 0
        %1665 = vmatpush1.bf16.msra.mxu0 %v1662
        %1666 = vmatprep.subr.bf16.mxu0 0
        %1667 = vmatpush1.bf16.msra.mxu0 0
        %1668 = vmatprep.subr.bf16.mxu0 0
        %1669 = vmatpush1.bf16.msra.mxu0 0
        %1670 = vmatprep.subr.bf16.mxu0 0
        %1671 = vmatpush1.bf16.msra.mxu0 0
        %1672 = vmatprep.subr.bf16.mxu0 0
        %1673 = vmatpush1.bf16.msra.mxu0 0
        %1674 = vmatprep.subr.bf16.mxu0 0
        %1675 = vmatpush1.bf16.msra.mxu0 0
        %1676 = vmatprep.subr.bf16.mxu0 0
        %1677 = vmatpush1.bf16.msra.mxu0 0
        %1678 = vmatprep.subr.bf16.mxu0 0
        %1679 = vmatpush1.bf16.msra.mxu0 0
        %1680 = vmatprep.subr.bf16.mxu0 0
        %1681 = vmatpush1.bf16.msra.mxu0 0
        %1682 = vmatprep.subr.bf16.mxu0 0
        %1683 = vmatpush1.bf16.msra.mxu0 0
        %1684 = vmatprep.subr.bf16.mxu0 0
        %1685 = vmatpush1.bf16.msra.mxu0 0
        %1686 = vmatprep.subr.bf16.mxu0 0
        %1687 = vmatpush1.bf16.msra.mxu0 0
        %1688 = vmatprep.subr.bf16.mxu0 0
        %1689 = vmatpush1.bf16.msra.mxu0 0
        %1690 = vmatprep.subr.bf16.mxu0 0
        %1691 = vmatpush1.bf16.msra.mxu0 0
        %1692 = vmatprep.subr.bf16.mxu0 0
        %1693 = vmatpush1.bf16.msra.mxu0 0
        %1694 = vmatprep.subr.bf16.mxu0 0
        %1695 = vmatpush1.bf16.msra.mxu0 0
        %1696 = vmatprep.mubr.bf16.mxu0 0
        %1697 = vmatmul.mubr.bf16.gmra.mrb[0].mxu0 %v1659
        %v1698 = vpop.f32.mrb[0].mxu0
        %v1699 = vadd.f32 0.0, %v1698
        %v1700 = vpop.f32.mrb[0].mxu0
        %v1701 = vpop.f32.mrb[0].mxu0
        %v1702 = vpop.f32.mrb[0].mxu0
        %1703 = vdwg.mxu0
        %1704 = vrot.lane.b32.xlu0 %v1394, 6
        %v1705 = vpop.permute.xlu0 %1704
        %v1707 = vmul.f32 %v994, %v1705
        %1708 = vrot.lane.b32.xlu0 %v1395, 6
        %v1709 = vpop.permute.xlu0 %1708
        %v1711 = vmul.f32 %v1049, %v1709
        %v1712 = vsub.f32 %v1707, %v1711
        %v1713 = vmul.f32 %v1049, %v1705
        %v1714 = vmul.f32 %v994, %v1709
        %v1715 = vadd.f32 %v1713, %v1714
        %1716 = vrot.lane.b32.xlu0 %v939, 116
        %v1717 = vpop.permute.xlu0 %1716
        %1720 = vrot.lane.b32.xlu0 %v1715, 3
        %v1721 = vpop.permute.xlu0 %1720
        %v1723 = vsel %vm1421, %v1717, %v1712
        %v1724 = vsel %vm1423, %v1723, %v1721
        %v1725 = vpack.c.bf16 %v1724, %v1724
        %1726 = vrot.lane.b32.xlu0 %v1204, 116
        %v1727 = vpop.permute.xlu0 %1726
        %v1729 = vsel %vm1421, %v1727, %v1428
        %v1730 = vsel %vm1423, %v1729, %v1432
        %v1731 = vpack.c.bf16 %v1730, %v1730
        %v1733 = vsel %vm1437, %v1725, 0
        %v1736 = vsel %vm1437, %v1731, 0
        %1738 = vmatprep.subr.bf16.mxu0 0
        %1739 = vmatpush1.bf16.xpose.msra.mxu0 %v1736
        %1740 = vmatprep.subr.bf16.mxu0 0
        %1741 = vmatpush1.bf16.xpose.msra.mxu0 0
        %1742 = vmatprep.subr.bf16.mxu0 0
        %1743 = vmatpush1.bf16.xpose.msra.mxu0 0
        %1744 = vmatprep.subr.bf16.mxu0 0
        %1745 = vmatpush1.bf16.xpose.msra.mxu0 0
        %1746 = vmatprep.subr.bf16.mxu0 0
        %1747 = vmatpush1.bf16.xpose.msra.mxu0 0
        %1748 = vmatprep.subr.bf16.mxu0 0
        %1749 = vmatpush1.bf16.xpose.msra.mxu0 0
        %1750 = vmatprep.subr.bf16.mxu0 0
        %1751 = vmatpush1.bf16.xpose.msra.mxu0 0
        %1752 = vmatprep.subr.bf16.mxu0 0
        %1753 = vmatpush1.bf16.xpose.msra.mxu0 0
        %1754 = vmatprep.subr.bf16.mxu0 0
        %1755 = vmatpush1.bf16.xpose.msra.mxu0 0
        %1756 = vmatprep.subr.bf16.mxu0 0
        %1757 = vmatpush1.bf16.xpose.msra.mxu0 0
        %1758 = vmatprep.subr.bf16.mxu0 0
        %1759 = vmatpush1.bf16.xpose.msra.mxu0 0
        %1760 = vmatprep.subr.bf16.mxu0 0
        %1761 = vmatpush1.bf16.xpose.msra.mxu0 0
        %1762 = vmatprep.subr.bf16.mxu0 0
        %1763 = vmatpush1.bf16.xpose.msra.mxu0 0
        %1764 = vmatprep.subr.bf16.mxu0 0
        %1765 = vmatpush1.bf16.xpose.msra.mxu0 0
        %1766 = vmatprep.subr.bf16.mxu0 0
        %1767 = vmatpush1.bf16.xpose.msra.mxu0 0
        %1768 = vmatprep.subr.bf16.mxu0 0
        %1769 = vmatpush1.bf16.xpose.msra.mxu0 0
        %1770 = vmatprep.mubr.bf16.mxu0 0
        %1771 = vmatmul.mubr.bf16.gmra.mrb[0].mxu0 %v1733
        %v1772 = vpop.f32.mrb[0].mxu0
        %v1773 = vadd.f32 0.0, %v1772
        %v1774 = vpop.f32.mrb[0].mxu0
        %v1775 = vpop.f32.mrb[0].mxu0
        %v1776 = vpop.f32.mrb[0].mxu0
        %1777 = vdwg.mxu0
        %v1778 = vsel %vm1406, %v1773, -1e+30
        %v1779 = vsel %vm1485, %v1778, -inf
        %1780 = vmax.xlane.f32.xlu0 %v1779
        %v1781 = vpop.xlane.xlu0 %1780
        %v1782 = vsub.f32 %v1778, %v1781
        %v1783 = vmul.f32 %v1782, 1.442695
        %v1784 = vpow.pop %v1783
        %v1785 = vsel %vm1485, %v1784, 0.0
        %1786 = vadd.xlane.f32.xlu0 %v1785
        %v1787 = vpop.xlane.xlu0 %1786
        %v1788 = vrcp.pop %v1787
        %v1789 = vmul.f32 %v1784, %v1788
        %v1790 = vsel %vm1485, %v1789, 0.0
        %v1791 = vrot.slane %v1790, 4
        %v1792 = vadd.f32 %v1790, %v1791
        %v1793 = vrot.slane %v1792, 2
        %v1794 = vadd.f32 %v1792, %v1793
        %v1795 = vrot.slane %v1794, 1
        %v1796 = vadd.f32 %v1794, %v1795
        %v1797 = vmul.f32 %v1796, 0.125
        %v1798 = vpack.c.bf16 %v1797, %v1797
        %1799 = vrot.lane.b32.xlu0 %v1265, 104
        %v1800 = vpop.permute.xlu0 %1799
        %v1802 = vsel %vm1485, %v1798, 0
        %v1805 = vsel %vm900, %v1800, 0
        %1807 = vmatprep.subr.bf16.mxu0 0
        %1808 = vmatpush1.bf16.msra.mxu0 %v1805
        %1809 = vmatprep.subr.bf16.mxu0 0
        %1810 = vmatpush1.bf16.msra.mxu0 0
        %1811 = vmatprep.subr.bf16.mxu0 0
        %1812 = vmatpush1.bf16.msra.mxu0 0
        %1813 = vmatprep.subr.bf16.mxu0 0
        %1814 = vmatpush1.bf16.msra.mxu0 0
        %1815 = vmatprep.subr.bf16.mxu0 0
        %1816 = vmatpush1.bf16.msra.mxu0 0
        %1817 = vmatprep.subr.bf16.mxu0 0
        %1818 = vmatpush1.bf16.msra.mxu0 0
        %1819 = vmatprep.subr.bf16.mxu0 0
        %1820 = vmatpush1.bf16.msra.mxu0 0
        %1821 = vmatprep.subr.bf16.mxu0 0
        %1822 = vmatpush1.bf16.msra.mxu0 0
        %1823 = vmatprep.subr.bf16.mxu0 0
        %1824 = vmatpush1.bf16.msra.mxu0 0
        %1825 = vmatprep.subr.bf16.mxu0 0
        %1826 = vmatpush1.bf16.msra.mxu0 0
        %1827 = vmatprep.subr.bf16.mxu0 0
        %1828 = vmatpush1.bf16.msra.mxu0 0
        %1829 = vmatprep.subr.bf16.mxu0 0
        %1830 = vmatpush1.bf16.msra.mxu0 0
        %1831 = vmatprep.subr.bf16.mxu0 0
        %1832 = vmatpush1.bf16.msra.mxu0 0
        %1833 = vmatprep.subr.bf16.mxu0 0
        %1834 = vmatpush1.bf16.msra.mxu0 0
        %1835 = vmatprep.subr.bf16.mxu0 0
        %1836 = vmatpush1.bf16.msra.mxu0 0
        %1837 = vmatprep.subr.bf16.mxu0 0
        %1838 = vmatpush1.bf16.msra.mxu0 0
        %1839 = vmatprep.mubr.bf16.mxu0 0
        %1840 = vmatmul.mubr.bf16.gmra.mrb[0].mxu0 %v1802
        %v1841 = vpop.f32.mrb[0].mxu0
        %v1842 = vadd.f32 0.0, %v1841
        %v1843 = vpop.f32.mrb[0].mxu0
        %v1844 = vpop.f32.mrb[0].mxu0
        %v1845 = vpop.f32.mrb[0].mxu0
        %1846 = vdwg.mxu0
        %1847 = vrot.lane.b32.xlu0 %v1394, 9
        %v1848 = vpop.permute.xlu0 %1847
        %v1850 = vmul.f32 %v994, %v1848
        %1851 = vrot.lane.b32.xlu0 %v1395, 9
        %v1852 = vpop.permute.xlu0 %1851
        %v1854 = vmul.f32 %v1049, %v1852
        %v1855 = vsub.f32 %v1850, %v1854
        %v1856 = vmul.f32 %v1049, %v1848
        %v1857 = vmul.f32 %v994, %v1852
        %v1858 = vadd.f32 %v1856, %v1857
        %1859 = vrot.lane.b32.xlu0 %v939, 110
        %v1860 = vpop.permute.xlu0 %1859
        %1863 = vrot.lane.b32.xlu0 %v1855, 125
        %v1864 = vpop.permute.xlu0 %1863
        %v1866 = vsel %vm1421, %v1860, %v1864
        %v1867 = vsel %vm1423, %v1866, %v1858
        %v1868 = vpack.c.bf16 %v1867, %v1867
        %1869 = vrot.lane.b32.xlu0 %v1204, 110
        %v1870 = vpop.permute.xlu0 %1869
        %v1872 = vsel %vm1421, %v1870, %v1428
        %v1873 = vsel %vm1423, %v1872, %v1432
        %v1874 = vpack.c.bf16 %v1873, %v1873
        %v1876 = vsel %vm1437, %v1868, 0
        %v1879 = vsel %vm1437, %v1874, 0
        %1881 = vmatprep.subr.bf16.mxu0 0
        %1882 = vmatpush1.bf16.xpose.msra.mxu0 %v1879
        %1883 = vmatprep.subr.bf16.mxu0 0
        %1884 = vmatpush1.bf16.xpose.msra.mxu0 0
        %1885 = vmatprep.subr.bf16.mxu0 0
        %1886 = vmatpush1.bf16.xpose.msra.mxu0 0
        %1887 = vmatprep.subr.bf16.mxu0 0
        %1888 = vmatpush1.bf16.xpose.msra.mxu0 0
        %1889 = vmatprep.subr.bf16.mxu0 0
        %1890 = vmatpush1.bf16.xpose.msra.mxu0 0
        %1891 = vmatprep.subr.bf16.mxu0 0
        %1892 = vmatpush1.bf16.xpose.msra.mxu0 0
        %1893 = vmatprep.subr.bf16.mxu0 0
        %1894 = vmatpush1.bf16.xpose.msra.mxu0 0
        %1895 = vmatprep.subr.bf16.mxu0 0
        %1896 = vmatpush1.bf16.xpose.msra.mxu0 0
        %1897 = vmatprep.subr.bf16.mxu0 0
        %1898 = vmatpush1.bf16.xpose.msra.mxu0 0
        %1899 = vmatprep.subr.bf16.mxu0 0
        %1900 = vmatpush1.bf16.xpose.msra.mxu0 0
        %1901 = vmatprep.subr.bf16.mxu0 0
        %1902 = vmatpush1.bf16.xpose.msra.mxu0 0
        %1903 = vmatprep.subr.bf16.mxu0 0
        %1904 = vmatpush1.bf16.xpose.msra.mxu0 0
        %1905 = vmatprep.subr.bf16.mxu0 0
        %1906 = vmatpush1.bf16.xpose.msra.mxu0 0
        %1907 = vmatprep.subr.bf16.mxu0 0
        %1908 = vmatpush1.bf16.xpose.msra.mxu0 0
        %1909 = vmatprep.subr.bf16.mxu0 0
        %1910 = vmatpush1.bf16.xpose.msra.mxu0 0
        %1911 = vmatprep.subr.bf16.mxu0 0
        %1912 = vmatpush1.bf16.xpose.msra.mxu0 0
        %1913 = vmatprep.mubr.bf16.mxu0 0
        %1914 = vmatmul.mubr.bf16.gmra.mrb[0].mxu0 %v1876
        %v1915 = vpop.f32.mrb[0].mxu0
        %v1916 = vadd.f32 0.0, %v1915
        %v1917 = vpop.f32.mrb[0].mxu0
        %v1918 = vpop.f32.mrb[0].mxu0
        %v1919 = vpop.f32.mrb[0].mxu0
        %1920 = vdwg.mxu0
        %v1921 = vsel %vm1406, %v1916, -1e+30
        %v1922 = vsel %vm1485, %v1921, -inf
        %1923 = vmax.xlane.f32.xlu0 %v1922
        %v1924 = vpop.xlane.xlu0 %1923
        %v1925 = vsub.f32 %v1921, %v1924
        %v1926 = vmul.f32 %v1925, 1.442695
        %v1927 = vpow.pop %v1926
        %v1928 = vsel %vm1485, %v1927, 0.0
        %1929 = vadd.xlane.f32.xlu0 %v1928
        %v1930 = vpop.xlane.xlu0 %1929
        %v1931 = vrcp.pop %v1930
        %v1932 = vmul.f32 %v1927, %v1931
        %v1933 = vsel %vm1485, %v1932, 0.0
        %v1934 = vrot.slane %v1933, 4
        %v1935 = vadd.f32 %v1933, %v1934
        %v1936 = vrot.slane %v1935, 2
        %v1937 = vadd.f32 %v1935, %v1936
        %v1938 = vrot.slane %v1937, 1
        %v1939 = vadd.f32 %v1937, %v1938
        %v1940 = vmul.f32 %v1939, 0.125
        %v1941 = vpack.c.bf16 %v1940, %v1940
        %1942 = vrot.lane.b32.xlu0 %v1265, 92
        %v1943 = vpop.permute.xlu0 %1942
        %v1945 = vsel %vm1485, %v1941, 0
        %v1948 = vsel %vm900, %v1943, 0
        %1950 = vmatprep.subr.bf16.mxu0 0
        %1951 = vmatpush1.bf16.msra.mxu0 %v1948
        %1952 = vmatprep.subr.bf16.mxu0 0
        %1953 = vmatpush1.bf16.msra.mxu0 0
        %1954 = vmatprep.subr.bf16.mxu0 0
        %1955 = vmatpush1.bf16.msra.mxu0 0
        %1956 = vmatprep.subr.bf16.mxu0 0
        %1957 = vmatpush1.bf16.msra.mxu0 0
        %1958 = vmatprep.subr.bf16.mxu0 0
        %1959 = vmatpush1.bf16.msra.mxu0 0
        %1960 = vmatprep.subr.bf16.mxu0 0
        %1961 = vmatpush1.bf16.msra.mxu0 0
        %1962 = vmatprep.subr.bf16.mxu0 0
        %1963 = vmatpush1.bf16.msra.mxu0 0
        %1964 = vmatprep.subr.bf16.mxu0 0
        %1965 = vmatpush1.bf16.msra.mxu0 0
        %1966 = vmatprep.subr.bf16.mxu0 0
        %1967 = vmatpush1.bf16.msra.mxu0 0
        %1968 = vmatprep.subr.bf16.mxu0 0
        %1969 = vmatpush1.bf16.msra.mxu0 0
        %1970 = vmatprep.subr.bf16.mxu0 0
        %1971 = vmatpush1.bf16.msra.mxu0 0
        %1972 = vmatprep.subr.bf16.mxu0 0
        %1973 = vmatpush1.bf16.msra.mxu0 0
        %1974 = vmatprep.subr.bf16.mxu0 0
        %1975 = vmatpush1.bf16.msra.mxu0 0
        %1976 = vmatprep.subr.bf16.mxu0 0
        %1977 = vmatpush1.bf16.msra.mxu0 0
        %1978 = vmatprep.subr.bf16.mxu0 0
        %1979 = vmatpush1.bf16.msra.mxu0 0
        %1980 = vmatprep.subr.bf16.mxu0 0
        %1981 = vmatpush1.bf16.msra.mxu0 0
        %1982 = vmatprep.mubr.bf16.mxu0 0
        %1983 = vmatmul.mubr.bf16.gmra.mrb[0].mxu0 %v1945
        %v1984 = vpop.f32.mrb[0].mxu0
        %v1985 = vadd.f32 0.0, %v1984
        %v1986 = vpop.f32.mrb[0].mxu0
        %v1987 = vpop.f32.mrb[0].mxu0
        %v1988 = vpop.f32.mrb[0].mxu0
        %1989 = vdwg.mxu0
        %1991 = vrot.lane.b32.xlu0 %v1699, 12
        %v1992 = vpop.permute.xlu0 %1991
        %1995 = vrot.lane.b32.xlu0 %v1842, 24
        %v1996 = vpop.permute.xlu0 %1995
        %1999 = vrot.lane.b32.xlu0 %v1985, 36
        %v2000 = vpop.permute.xlu0 %1999
        %v2002 = vsel %vm1437, %v1547, %v1992
        %v2003 = vsel %vm855, %v2002, %v1996
        %vm2004 = vcmask 293888
        %v2005 = vsel %vm2004, %v2003, %v2000
        %v2006 = vpack.c.bf16 %v2005, %v2005
        %v2007 = vld [vmem:[#allocation25] sm:$0xf]
        %v2008 = vld [vmem:[#allocation25 + $0x4] sm:$0xf]
        %v2009 = vld [vmem:[#allocation25 + $0x8] sm:$0xf]
        %v2010 = vld [vmem:[#allocation25 + $0xc] sm:$0xf]
        %v2011 = vld [vmem:[#allocation25 + $0x10] sm:$0xf]
        %v2012 = vld [vmem:[#allocation25 + $0x14] sm:$0xf]
        %v2019 = vunpack.c.l.b16 %v2007
        %v2020 = vunpack.c.l.b16 %v2008
        %v2021 = vunpack.c.l.b16 %v2009
        %v2022 = vunpack.c.l.b16 %v2010
        %v2023 = vunpack.c.l.b16 %v2011
        %v2024 = vunpack.c.l.b16 %v2012
        %v2025 = vpack.c.b16 %v2020, %v2019
        %v2026 = vpack.c.b16 %v2022, %v2021
        %v2027 = vpack.c.b16 %v2024, %v2023
        %v2032 = vsel %vm809, %v2006, 0
        %2034 = vmatprep.subr.bf16.mxu0 0
        %2035 = vmatpush1.bf16.msra.mxu0 %v2025
        %2036 = vmatprep.subr.bf16.mxu0 0
        %2037 = vmatpush1.bf16.msra.mxu0 %v2026
        %2038 = vmatprep.subr.bf16.mxu0 0
        %2039 = vmatpush1.bf16.msra.mxu0 %v2027
        %2040 = vmatprep.subr.bf16.mxu0 0
        %2041 = vmatpush1.bf16.msra.mxu0 0
        %2042 = vmatprep.subr.bf16.mxu0 0
        %2043 = vmatpush1.bf16.msra.mxu0 0
        %2044 = vmatprep.subr.bf16.mxu0 0
        %2045 = vmatpush1.bf16.msra.mxu0 0
        %2046 = vmatprep.subr.bf16.mxu0 0
        %2047 = vmatpush1.bf16.msra.mxu0 0
        %2048 = vmatprep.subr.bf16.mxu0 0
        %2049 = vmatpush1.bf16.msra.mxu0 0
        %2050 = vmatprep.subr.bf16.mxu0 0
        %2051 = vmatpush1.bf16.msra.mxu0 0
        %2052 = vmatprep.subr.bf16.mxu0 0
        %2053 = vmatpush1.bf16.msra.mxu0 0
        %2054 = vmatprep.subr.bf16.mxu0 0
        %2055 = vmatpush1.bf16.msra.mxu0 0
        %2056 = vmatprep.subr.bf16.mxu0 0
        %2057 = vmatpush1.bf16.msra.mxu0 0
        %2058 = vmatprep.subr.bf16.mxu0 0
        %2059 = vmatpush1.bf16.msra.mxu0 0
        %2060 = vmatprep.subr.bf16.mxu0 0
        %2061 = vmatpush1.bf16.msra.mxu0 0
        %2062 = vmatprep.subr.bf16.mxu0 0
        %2063 = vmatpush1.bf16.msra.mxu0 0
        %2064 = vmatprep.subr.bf16.mxu0 0
        %2065 = vmatpush1.bf16.msra.mxu0 0
        %2066 = vmatprep.mubr.bf16.mxu0 0
        %2067 = vmatmul.mubr.bf16.gmra.mrb[0].mxu0 %v2032
        %v2068 = vpop.f32.mrb[0].mxu0
        %v2069 = vadd.f32 0.0, %v2068
        %v2070 = vpop.f32.mrb[0].mxu0
        %v2071 = vpop.f32.mrb[0].mxu0
        %v2072 = vpop.f32.mrb[0].mxu0
        %2073 = vdwg.mxu0
        %vm2074 = vcmask 385024
        %2075 = vst.msk [vmem:[%s782] sm:$0x1] %vm2074, %v2069
        %s2076 = sand.u32 %s412, 1
        %s2077 = scalar_lea.sflag [#allocation4], %s2076
        %s2078 = sand.u32 %s412, 1
        %s2079 = scalar_lea.vmem [#allocation29], %s2078
        // Predicated region
        $region157: #{tpu_custom_call.1} parent=87 // pred_check
          %p2080 = pneg %p422
        $region158: #{tpu_custom_call.1} parent=87 // pred_check_branch
          %2082 = sbr.rel (%p2080) target = $region160
        $region159: #{tpu_custom_call.1} parent=87 // pred_region
          %s2084 = ssub.s32 16, 16
          %2085 = vsyncadd %s2077, %s2084
          %s2086 = smul.addr %s42, 16
          %s2087 = scalar_lea.hbm %s17, %s2086
          %s2089 = sshll.u32 %s2079, 4
          %s2090 = int_to_ptr.vmem [resolvable:$true] %s2089
          %2092 = dma.vmem_to_hbm [thread:$0]  %s2090, 16, %s2087, %s2077
        $region160: #{tpu_custom_call.1} parent=87 // pred_fallthru
          _
      $region88: #{tpu_custom_call.1} parent=5 // pred_fallthru
        _
      %p2093 = scmp.le.s32.totalorder 2, %s37
      // Predicated region
      $region161: #{tpu_custom_call.1} parent=5 // pred_check
        %p2094 = pneg %p2093
      $region162: #{tpu_custom_call.1} parent=5 // pred_check_branch
        %2096 = sbr.rel (%p2094) target = $region164
      $region163: #{tpu_custom_call.1} parent=5 // pred_region
        %s2097 = ssub.s32 %s37, 2
        // Predicated region
        $region165: #{tpu_custom_call.1} parent=163 // pred_check
          %p2098 = pneg %p428
        $region166: #{tpu_custom_call.1} parent=163 // pred_check_branch
          %2100 = sbr.rel (%p2098) target = $region168
        $region167: #{tpu_custom_call.1} parent=163 // pred_region
          %s2101 = sand.u32 %s413, 1
          %s2102 = scalar_lea.sflag [#allocation4], %s2101
          %s2103 = sand.u32 %s413, 1
          %s2104 = scalar_lea.vmem [#allocation29], %s2103
          %2105 = dma.done %s2102, 16
        $region168: #{tpu_custom_call.1} parent=163 // pred_fallthru
          _
      $region164: #{tpu_custom_call.1} parent=5 // pred_fallthru
        _
    $region6: #{tpu_custom_call.1} parent=1 // loop_footer
      %s41 = sadd.s32 1, %s37
    $region7: #{tpu_custom_call.1} parent=1 // loop_footer_branch
      %36 = sbr.rel target = $region3
    $region8: #{tpu_custom_call.1} parent=1 // loop_exit
      _
    %2106 = vsyncpa [#allocation3], 1
    %s2107 = scalar_lea.sflag [#allocation3], 1
    %2108 = vsyncpa %s2107, 1
    %2109 = vsyncpa [#allocation6], 1
    %2110 = vsyncpa [#allocation9], 1
    %2111 = vsyncpa [#allocation12], 1
    %2112 = vsyncpa [#allocation15], 1
    %2113 = vsyncpa [#allocation18], 1
    %2114 = vsyncpa [#allocation21], 1
    %2115 = vsyncpa [#allocation24], 1
    %2116 = vsyncpa [#allocation27], 1
    %2117 = vsyncpa [#allocation4], 1
    %s2118 = scalar_lea.sflag [#allocation4], 1
    %2119 = vsyncpa %s2118, 1

</llo_original>
